<compile_context>
chip_gen: v6e
topology: v6e:2x2x1
jax: 0.10.0
libtpu: 0.0.40
codegen_flags: <defaults>
</compile_context>

<pallas_src>
import jax
import jax.numpy as jnp
from jax.experimental import pallas as pl
from jax.experimental.pallas import tpu as pltpu

N_EMBD = 192
NUM_HEADS = 6
HEAD_SIZE = N_EMBD // NUM_HEADS        # 32
BLOCK_SIZE = 512                        # causal-mask capacity; T must be <= this
NEG_MASK = -1e30                        # finite "minus infinity" (no NaN hazard)
# TODO(synk): dropout (p=0.1) is treated as identity (eval-mode semantics).


def _q_tile(T):
    """Largest tile dividing T (prefer 256: fewer grid steps, better MXU cadence)."""
    for t in (256, 128, 64):
        if T % t == 0:
            return t
    return T


def qkv_proj_kernel(x_ref, wqkv_ref, q_ref, kT_ref, v_ref):
    """Fused QKV projection for one (batch, token-tile) grid step.

    Emits q/v head-major (1,H,TQ,D) bf16 and K pre-transposed (1,H,D,TQ) bf16.
    The softmax scale is already folded into the Q columns of wqkv.
    """
    x = x_ref[0]                                                         # (TQ, C) bf16
    y = jnp.dot(x, wqkv_ref[...], preferred_element_type=jnp.float32)   # (TQ, 3C) f32
    yb = y.astype(jnp.bfloat16)
    for h in range(NUM_HEADS):
        lo = h * HEAD_SIZE
        q_ref[0, h] = yb[:, lo:lo + HEAD_SIZE]
        # transpose in f32 (XLU), then cast: lane-dense (D, TQ) store
        kT_ref[0, h] = y[:, N_EMBD + lo:N_EMBD + lo + HEAD_SIZE].T.astype(jnp.bfloat16)
        v_ref[0, h] = yb[:, 2 * N_EMBD + lo:2 * N_EMBD + lo + HEAD_SIZE]


def attn_kernel(q_ref, kT_ref, v_ref, wp_ref, bp_ref, o_ref, m_sc, l_sc, acc_sc):
    """Causal MHA with online softmax over KV chunks + fused output projection."""
    qi = pl.program_id(1)
    kv = pl.program_id(2)

    @pl.when(kv == 0)
    def _init():
        m_sc[...] = jnp.full_like(m_sc, NEG_MASK)
        l_sc[...] = jnp.zeros_like(l_sc)
        acc_sc[...] = jnp.zeros_like(acc_sc)

    @pl.when(kv <= qi)            # strictly-upper-triangular chunks: skip all compute
    def _compute():
        q3 = q_ref[0]                          # (H, TQ, D) bf16 (scale pre-folded)
        kT = kT_ref[0]                         # (H, D, TK) bf16 (pre-transposed)
        v3 = v_ref[0]                          # (H, TK, D) bf16
        TQ = q3.shape[1]
        TK = kT.shape[2]

        # batched NN score matmul, f32 accumulation
        s = jnp.einsum('hqd,hdk->hqk', q3, kT,
                       preferred_element_type=jnp.float32)              # (H, TQ, TK)

        # causal mask on global indices (all-true for kv < qi)
        row = qi * TQ + jax.lax.broadcasted_iota(jnp.int32, (TQ, TK), 0)
        col = kv * TK + jax.lax.broadcasted_iota(jnp.int32, (TQ, TK), 1)
        s = jnp.where((row >= col)[None, :, :], s, NEG_MASK)

        # online softmax update (f32)
        m_prev = m_sc[...]
        m_new = jnp.maximum(m_prev, jnp.max(s, axis=-1, keepdims=True))
        alpha = jnp.exp(m_prev - m_new)
        p = jnp.exp(s - m_new)
        l_sc[...] = alpha * l_sc[...] + jnp.sum(p, axis=-1, keepdims=True)
        acc_sc[...] = alpha * acc_sc[...] + jnp.einsum(
            'hqk,hkd->hqd', p.astype(jnp.bfloat16), v3,
            preferred_element_type=jnp.float32)
        m_sc[...] = m_new

    @pl.when(kv == pl.num_programs(2) - 1)     # finalize + fused output projection
    def _finalize():
        inv_l = pl.reciprocal(l_sc[...], approx=True)                   # (H, TQ, 1)
        o3 = acc_sc[...] * inv_l                                        # (H, TQ, D) f32
        # concat heads along lanes -> (TQ, C); one K=192 projection matmul
        o_cat = jnp.concatenate(
            [o3[h].astype(jnp.bfloat16) for h in range(NUM_HEADS)], axis=-1)
        y = jnp.dot(o_cat, wp_ref[...],
                    preferred_element_type=jnp.float32) + bp_ref[...]
        o_ref[0] = y.astype(o_ref.dtype)


@jax.jit
def multi_head_attention(x, wq, wk, wv, wp, bp):
    B, T, C = x.shape
    assert C == N_EMBD and T <= BLOCK_SIZE
    H, D = NUM_HEADS, HEAD_SIZE
    TQ = _q_tile(T)
    n_q = T // TQ
    TK = TQ
    n_kv = n_q

    # Host-side packing / casts (done once per call by XLA, not per grid step).
    # NOTE: the PyTorch module scales by C**-0.5 (n_embd, not head_size); folded
    # into the Q weight columns so the kernel never scales the score tensor.
    scale = float(N_EMBD) ** -0.5
    w_qkv = jnp.concatenate([wq * scale, wk, wv], axis=1).astype(jnp.bfloat16)  # (C, 3C)
    wp_b = wp.astype(jnp.bfloat16)                                              # (C, C)
    bp2 = bp.reshape(1, C).astype(jnp.float32)
    xb = x.astype(jnp.bfloat16)

    # --- call 1: fused QKV projection -> head-major bf16 q / kT / v ---------
    q_shape = jax.ShapeDtypeStruct((B, H, T, D), jnp.bfloat16)
    kT_shape = jax.ShapeDtypeStruct((B, H, D, T), jnp.bfloat16)
    q, kT, v = pl.pallas_call(
        qkv_proj_kernel,
        out_shape=(q_shape, kT_shape, q_shape),
        grid_spec=pltpu.PrefetchScalarGridSpec(
            num_scalar_prefetch=0,
            grid=(B, n_q),
            in_specs=[
                pl.BlockSpec((1, TQ, C), lambda b, t: (b, t, 0)),        # x tile
                pl.BlockSpec((C, 3 * C), lambda b, t: (0, 0)),           # fused W_qkv
            ],
            out_specs=(
                pl.BlockSpec((1, H, TQ, D), lambda b, t: (b, 0, t, 0)),  # q
                pl.BlockSpec((1, H, D, TQ), lambda b, t: (b, 0, 0, t)),  # k^T
                pl.BlockSpec((1, H, TQ, D), lambda b, t: (b, 0, t, 0)),  # v
            ),
        ),
        compiler_params=pltpu.CompilerParams(
            dimension_semantics=("parallel", "parallel")),
    )(xb, w_qkv)

    # --- call 2: causal flash attention + fused output projection -----------
    out = pl.pallas_call(
        attn_kernel,
        out_shape=jax.ShapeDtypeStruct((B, T, C), x.dtype),
        grid_spec=pltpu.PrefetchScalarGridSpec(
            num_scalar_prefetch=0,
            grid=(B, n_q, n_kv),
            in_specs=[
                pl.BlockSpec((1, H, TQ, D), lambda b, qi, kv: (b, 0, qi, 0)),  # q tile
                pl.BlockSpec((1, H, D, TK), lambda b, qi, kv: (b, 0, 0, kv)),  # k^T tile
                pl.BlockSpec((1, H, TK, D), lambda b, qi, kv: (b, 0, kv, 0)),  # v tile
                pl.BlockSpec((C, C), lambda b, qi, kv: (0, 0)),                # Wproj^T
                pl.BlockSpec((1, C), lambda b, qi, kv: (0, 0)),                # proj bias
            ],
            out_specs=pl.BlockSpec((1, TQ, C), lambda b, qi, kv: (b, qi, 0)),
            scratch_shapes=[
                pltpu.VMEM((H, TQ, 1), jnp.float32),   # m (running max)
                pltpu.VMEM((H, TQ, 1), jnp.float32),   # l (running denom)
                pltpu.VMEM((H, TQ, D), jnp.float32),   # acc (running PV)
            ],
        ),
        compiler_params=pltpu.CompilerParams(
            dimension_semantics=("parallel", "parallel", "arbitrary")),
    )(q, kT, v, wp_b, bp2)
    return out


def reference_mha(x, wq, wk, wv, wp, bp):
    """Plain-JAX f32 reference mirroring the PyTorch forward (eval mode)."""
    B, T, C = x.shape
    q = x @ wq
    k = x @ wk
    v = x @ wv
    mask = jnp.tril(jnp.ones((T, T), dtype=bool))
    outs = []
    for h in range(NUM_HEADS):
        lo = h * HEAD_SIZE
        qh = q[..., lo:lo + HEAD_SIZE]
        kh = k[..., lo:lo + HEAD_SIZE]
        vh = v[..., lo:lo + HEAD_SIZE]
        s = jnp.einsum("btd,bsd->bts", qh, kh) * (C ** -0.5)
        s = jnp.where(mask, s, -jnp.inf)
        p = jax.nn.softmax(s, axis=-1)
        outs.append(jnp.einsum("bts,bsd->btd", p, vh))
    cat = jnp.concatenate(outs, axis=-1)
    return cat @ wp + bp


if __name__ == "__main__":
    key = jax.random.PRNGKey(0)
    kx, kq, kk, kv, kp, kb = jax.random.split(key, 6)

    # Deterministic parameter init (PyTorch Linear-style uniform bound 1/sqrt(fan_in)).
    bound = 1.0 / (N_EMBD ** 0.5)
    wq = jax.random.uniform(kq, (N_EMBD, N_EMBD), jnp.float32, -bound, bound)
    wk = jax.random.uniform(kk, (N_EMBD, N_EMBD), jnp.float32, -bound, bound)
    wv = jax.random.uniform(kv, (N_EMBD, N_EMBD), jnp.float32, -bound, bound)
    wp = jax.random.uniform(kp, (N_EMBD, N_EMBD), jnp.float32, -bound, bound)  # proj.weight^T
    bp = jax.random.uniform(kb, (N_EMBD,), jnp.float32, -bound, bound)

    # Single-tile (T=16, T=256) and multi-tile flash path (T=512 -> TQ=256, 2x2 kv grid).
    for (B, T) in ((2, 16), (2, 256), (2, 512)):
        x = jax.random.normal(jax.random.fold_in(kx, T), (B, T, N_EMBD), jnp.float32)
        out = jax.block_until_ready(multi_head_attention(x, wq, wk, wv, wp, bp))
        ref = reference_mha(x, wq, wk, wv, wp, bp)
        assert out.shape == (B, T, N_EMBD)
        max_err = float(jnp.max(jnp.abs(out - ref)))
        # bf16 MXU operands + approx reciprocal -> relaxed tolerance vs f32 reference.
        assert jnp.allclose(out, ref, atol=2e-2, rtol=2e-2), (
            f"mismatch vs reference at T={T}, max abs err {max_err}")
    print("KERNEL_OK")
</pallas_src>

<mosaic_0001>
module attributes {stable_mosaic.version = 11 : i64} {
  func.func @qkv_proj_kernel(%arg0: i32, %arg1: i32, %arg2: memref<1x16x192xbf16, #tpu.memory_space<vmem>>, %arg3: memref<192x576xbf16, #tpu.memory_space<vmem>>, %arg4: memref<1x6x16x32xbf16, #tpu.memory_space<vmem>>, %arg5: memref<1x6x32x16xbf16, #tpu.memory_space<vmem>>, %arg6: memref<1x6x16x32xbf16, #tpu.memory_space<vmem>>) attributes {dimension_semantics = [#tpu.dimension_semantics<parallel>, #tpu.dimension_semantics<parallel>], iteration_bounds = array<i64: 2, 1>, scalar_prefetch = 0 : i64, scratch_operands = 0 : i64, tpu.core_type = #tpu.core_type<tc>, window_params = [{transform_indices = @transform_0, window_bounds = array<i64: 1, 16, 192>}, {pipeline_mode = #tpu.pipeline_mode<synchronous>, transform_indices = @transform_1, window_bounds = array<i64: 192, 576>}, {transform_indices = @transform_2, window_bounds = array<i64: 1, 6, 16, 32>}, {transform_indices = @transform_3, window_bounds = array<i64: 1, 6, 32, 16>}, {transform_indices = @transform_4, window_bounds = array<i64: 1, 6, 16, 32>}]} {
    %c0 = arith.constant 0 : index
    %c0_0 = arith.constant 0 : index
    %c0_1 = arith.constant 0 : index
    %0 = vector.load %arg2[%c0, %c0_0, %c0_1] : memref<1x16x192xbf16, #tpu.memory_space<vmem>>, vector<1x16x192xbf16>
    %1 = vector.shape_cast %0 : vector<1x16x192xbf16> to vector<16x192xbf16>
    %c0_2 = arith.constant 0 : index
    %c0_3 = arith.constant 0 : index
    %2 = vector.load %arg3[%c0_2, %c0_3] : memref<192x576xbf16, #tpu.memory_space<vmem>>, vector<192x576xbf16>
    %cst = arith.constant dense<0.000000e+00> : vector<16x576xf32>
    %3 = tpu.matmul %1, %2, %cst {dimension_numbers = #tpu.dot_dimension_numbers<[1], [0], [0], [1], [0, 0, 1, 1], [], []>} : vector<16x192xbf16>, vector<192x576xbf16>, vector<16x576xf32> -> vector<16x576xf32>
    %4 = arith.truncf %3 : vector<16x576xf32> to vector<16x576xbf16>
    %5 = vector.extract_strided_slice %4 {offsets = [0, 0], sizes = [16, 32], strides = [1, 1]} : vector<16x576xbf16> to vector<16x32xbf16>
    %c0_4 = arith.constant 0 : index
    %c0_5 = arith.constant 0 : index
    %c0_6 = arith.constant 0 : index
    %c0_7 = arith.constant 0 : index
    %6 = vector.load %arg4[%c0_4, %c0_5, %c0_6, %c0_7] : memref<1x6x16x32xbf16, #tpu.memory_space<vmem>>, vector<1x1x16x32xbf16>
    %7 = vector.shape_cast %6 : vector<1x1x16x32xbf16> to vector<16x32xbf16>
    %8 = vector.shape_cast %5 : vector<16x32xbf16> to vector<1x1x16x32xbf16>
    tpu.vector_store %arg4[%c0_4, %c0_5, %c0_6, %c0_7], %8 {strides = array<i32>} : memref<1x6x16x32xbf16, #tpu.memory_space<vmem>>, vector<1x1x16x32xbf16>,
    %9 = vector.extract_strided_slice %3 {offsets = [0, 192], sizes = [16, 32], strides = [1, 1]} : vector<16x576xf32> to vector<16x32xf32>
    %10 = tpu.transpose %9, [1, 0] : vector<16x32xf32> -> vector<32x16xf32>
    %11 = arith.truncf %10 : vector<32x16xf32> to vector<32x16xbf16>
    %c0_8 = arith.constant 0 : index
    %c0_9 = arith.constant 0 : index
    %c0_10 = arith.constant 0 : index
    %c0_11 = arith.constant 0 : index
    %12 = vector.load %arg5[%c0_8, %c0_9, %c0_10, %c0_11] : memref<1x6x32x16xbf16, #tpu.memory_space<vmem>>, vector<1x1x32x16xbf16>
    %13 = vector.shape_cast %12 : vector<1x1x32x16xbf16> to vector<32x16xbf16>
    %14 = vector.shape_cast %11 : vector<32x16xbf16> to vector<1x1x32x16xbf16>
    tpu.vector_store %arg5[%c0_8, %c0_9, %c0_10, %c0_11], %14 {strides = array<i32>} : memref<1x6x32x16xbf16, #tpu.memory_space<vmem>>, vector<1x1x32x16xbf16>,
    %15 = vector.extract_strided_slice %4 {offsets = [0, 384], sizes = [16, 32], strides = [1, 1]} : vector<16x576xbf16> to vector<16x32xbf16>
    %c0_12 = arith.constant 0 : index
    %c0_13 = arith.constant 0 : index
    %c0_14 = arith.constant 0 : index
    %c0_15 = arith.constant 0 : index
    %16 = vector.load %arg6[%c0_12, %c0_13, %c0_14, %c0_15] : memref<1x6x16x32xbf16, #tpu.memory_space<vmem>>, vector<1x1x16x32xbf16>
    %17 = vector.shape_cast %16 : vector<1x1x16x32xbf16> to vector<16x32xbf16>
    %18 = vector.shape_cast %15 : vector<16x32xbf16> to vector<1x1x16x32xbf16>
    tpu.vector_store %arg6[%c0_12, %c0_13, %c0_14, %c0_15], %18 {strides = array<i32>} : memref<1x6x16x32xbf16, #tpu.memory_space<vmem>>, vector<1x1x16x32xbf16>,
    %19 = vector.extract_strided_slice %4 {offsets = [0, 32], sizes = [16, 32], strides = [1, 1]} : vector<16x576xbf16> to vector<16x32xbf16>
    %c0_16 = arith.constant 0 : index
    %c1 = arith.constant 1 : index
    %c0_17 = arith.constant 0 : index
    %c0_18 = arith.constant 0 : index
    %20 = vector.load %arg4[%c0_16, %c1, %c0_17, %c0_18] : memref<1x6x16x32xbf16, #tpu.memory_space<vmem>>, vector<1x1x16x32xbf16>
    %21 = vector.shape_cast %20 : vector<1x1x16x32xbf16> to vector<16x32xbf16>
    %22 = vector.shape_cast %19 : vector<16x32xbf16> to vector<1x1x16x32xbf16>
    tpu.vector_store %arg4[%c0_16, %c1, %c0_17, %c0_18], %22 {strides = array<i32>} : memref<1x6x16x32xbf16, #tpu.memory_space<vmem>>, vector<1x1x16x32xbf16>,
    %23 = vector.extract_strided_slice %3 {offsets = [0, 224], sizes = [16, 32], strides = [1, 1]} : vector<16x576xf32> to vector<16x32xf32>
    %24 = tpu.transpose %23, [1, 0] : vector<16x32xf32> -> vector<32x16xf32>
    %25 = arith.truncf %24 : vector<32x16xf32> to vector<32x16xbf16>
    %c0_19 = arith.constant 0 : index
    %c1_20 = arith.constant 1 : index
    %c0_21 = arith.constant 0 : index
    %c0_22 = arith.constant 0 : index
    %26 = vector.load %arg5[%c0_19, %c1_20, %c0_21, %c0_22] : memref<1x6x32x16xbf16, #tpu.memory_space<vmem>>, vector<1x1x32x16xbf16>
    %27 = vector.shape_cast %26 : vector<1x1x32x16xbf16> to vector<32x16xbf16>
    %28 = vector.shape_cast %25 : vector<32x16xbf16> to vector<1x1x32x16xbf16>
    tpu.vector_store %arg5[%c0_19, %c1_20, %c0_21, %c0_22], %28 {strides = array<i32>} : memref<1x6x32x16xbf16, #tpu.memory_space<vmem>>, vector<1x1x32x16xbf16>,
    %29 = vector.extract_strided_slice %4 {offsets = [0, 416], sizes = [16, 32], strides = [1, 1]} : vector<16x576xbf16> to vector<16x32xbf16>
    %c0_23 = arith.constant 0 : index
    %c1_24 = arith.constant 1 : index
    %c0_25 = arith.constant 0 : index
    %c0_26 = arith.constant 0 : index
    %30 = vector.load %arg6[%c0_23, %c1_24, %c0_25, %c0_26] : memref<1x6x16x32xbf16, #tpu.memory_space<vmem>>, vector<1x1x16x32xbf16>
    %31 = vector.shape_cast %30 : vector<1x1x16x32xbf16> to vector<16x32xbf16>
    %32 = vector.shape_cast %29 : vector<16x32xbf16> to vector<1x1x16x32xbf16>
    tpu.vector_store %arg6[%c0_23, %c1_24, %c0_25, %c0_26], %32 {strides = array<i32>} : memref<1x6x16x32xbf16, #tpu.memory_space<vmem>>, vector<1x1x16x32xbf16>,
    %33 = vector.extract_strided_slice %4 {offsets = [0, 64], sizes = [16, 32], strides = [1, 1]} : vector<16x576xbf16> to vector<16x32xbf16>
    %c0_27 = arith.constant 0 : index
    %c2 = arith.constant 2 : index
    %c0_28 = arith.constant 0 : index
    %c0_29 = arith.constant 0 : index
    %34 = vector.load %arg4[%c0_27, %c2, %c0_28, %c0_29] : memref<1x6x16x32xbf16, #tpu.memory_space<vmem>>, vector<1x1x16x32xbf16>
    %35 = vector.shape_cast %34 : vector<1x1x16x32xbf16> to vector<16x32xbf16>
    %36 = vector.shape_cast %33 : vector<16x32xbf16> to vector<1x1x16x32xbf16>
    tpu.vector_store %arg4[%c0_27, %c2, %c0_28, %c0_29], %36 {strides = array<i32>} : memref<1x6x16x32xbf16, #tpu.memory_space<vmem>>, vector<1x1x16x32xbf16>,
    %37 = vector.extract_strided_slice %3 {offsets = [0, 256], sizes = [16, 32], strides = [1, 1]} : vector<16x576xf32> to vector<16x32xf32>
    %38 = tpu.transpose %37, [1, 0] : vector<16x32xf32> -> vector<32x16xf32>
    %39 = arith.truncf %38 : vector<32x16xf32> to vector<32x16xbf16>
    %c0_30 = arith.constant 0 : index
    %c2_31 = arith.constant 2 : index
    %c0_32 = arith.constant 0 : index
    %c0_33 = arith.constant 0 : index
    %40 = vector.load %arg5[%c0_30, %c2_31, %c0_32, %c0_33] : memref<1x6x32x16xbf16, #tpu.memory_space<vmem>>, vector<1x1x32x16xbf16>
    %41 = vector.shape_cast %40 : vector<1x1x32x16xbf16> to vector<32x16xbf16>
    %42 = vector.shape_cast %39 : vector<32x16xbf16> to vector<1x1x32x16xbf16>
    tpu.vector_store %arg5[%c0_30, %c2_31, %c0_32, %c0_33], %42 {strides = array<i32>} : memref<1x6x32x16xbf16, #tpu.memory_space<vmem>>, vector<1x1x32x16xbf16>,
    %43 = vector.extract_strided_slice %4 {offsets = [0, 448], sizes = [16, 32], strides = [1, 1]} : vector<16x576xbf16> to vector<16x32xbf16>
    %c0_34 = arith.constant 0 : index
    %c2_35 = arith.constant 2 : index
    %c0_36 = arith.constant 0 : index
    %c0_37 = arith.constant 0 : index
    %44 = vector.load %arg6[%c0_34, %c2_35, %c0_36, %c0_37] : memref<1x6x16x32xbf16, #tpu.memory_space<vmem>>, vector<1x1x16x32xbf16>
    %45 = vector.shape_cast %44 : vector<1x1x16x32xbf16> to vector<16x32xbf16>
    %46 = vector.shape_cast %43 : vector<16x32xbf16> to vector<1x1x16x32xbf16>
    tpu.vector_store %arg6[%c0_34, %c2_35, %c0_36, %c0_37], %46 {strides = array<i32>} : memref<1x6x16x32xbf16, #tpu.memory_space<vmem>>, vector<1x1x16x32xbf16>,
    %47 = vector.extract_strided_slice %4 {offsets = [0, 96], sizes = [16, 32], strides = [1, 1]} : vector<16x576xbf16> to vector<16x32xbf16>
    %c0_38 = arith.constant 0 : index
    %c3 = arith.constant 3 : index
    %c0_39 = arith.constant 0 : index
    %c0_40 = arith.constant 0 : index
    %48 = vector.load %arg4[%c0_38, %c3, %c0_39, %c0_40] : memref<1x6x16x32xbf16, #tpu.memory_space<vmem>>, vector<1x1x16x32xbf16>
    %49 = vector.shape_cast %48 : vector<1x1x16x32xbf16> to vector<16x32xbf16>
    %50 = vector.shape_cast %47 : vector<16x32xbf16> to vector<1x1x16x32xbf16>
    tpu.vector_store %arg4[%c0_38, %c3, %c0_39, %c0_40], %50 {strides = array<i32>} : memref<1x6x16x32xbf16, #tpu.memory_space<vmem>>, vector<1x1x16x32xbf16>,
    %51 = vector.extract_strided_slice %3 {offsets = [0, 288], sizes = [16, 32], strides = [1, 1]} : vector<16x576xf32> to vector<16x32xf32>
    %52 = tpu.transpose %51, [1, 0] : vector<16x32xf32> -> vector<32x16xf32>
    %53 = arith.truncf %52 : vector<32x16xf32> to vector<32x16xbf16>
    %c0_41 = arith.constant 0 : index
    %c3_42 = arith.constant 3 : index
    %c0_43 = arith.constant 0 : index
    %c0_44 = arith.constant 0 : index
    %54 = vector.load %arg5[%c0_41, %c3_42, %c0_43, %c0_44] : memref<1x6x32x16xbf16, #tpu.memory_space<vmem>>, vector<1x1x32x16xbf16>
    %55 = vector.shape_cast %54 : vector<1x1x32x16xbf16> to vector<32x16xbf16>
    %56 = vector.shape_cast %53 : vector<32x16xbf16> to vector<1x1x32x16xbf16>
    tpu.vector_store %arg5[%c0_41, %c3_42, %c0_43, %c0_44], %56 {strides = array<i32>} : memref<1x6x32x16xbf16, #tpu.memory_space<vmem>>, vector<1x1x32x16xbf16>,
    %57 = vector.extract_strided_slice %4 {offsets = [0, 480], sizes = [16, 32], strides = [1, 1]} : vector<16x576xbf16> to vector<16x32xbf16>
    %c0_45 = arith.constant 0 : index
    %c3_46 = arith.constant 3 : index
    %c0_47 = arith.constant 0 : index
    %c0_48 = arith.constant 0 : index
    %58 = vector.load %arg6[%c0_45, %c3_46, %c0_47, %c0_48] : memref<1x6x16x32xbf16, #tpu.memory_space<vmem>>, vector<1x1x16x32xbf16>
    %59 = vector.shape_cast %58 : vector<1x1x16x32xbf16> to vector<16x32xbf16>
    %60 = vector.shape_cast %57 : vector<16x32xbf16> to vector<1x1x16x32xbf16>
    tpu.vector_store %arg6[%c0_45, %c3_46, %c0_47, %c0_48], %60 {strides = array<i32>} : memref<1x6x16x32xbf16, #tpu.memory_space<vmem>>, vector<1x1x16x32xbf16>,
    %61 = vector.extract_strided_slice %4 {offsets = [0, 128], sizes = [16, 32], strides = [1, 1]} : vector<16x576xbf16> to vector<16x32xbf16>
    %c0_49 = arith.constant 0 : index
    %c4 = arith.constant 4 : index
    %c0_50 = arith.constant 0 : index
    %c0_51 = arith.constant 0 : index
    %62 = vector.load %arg4[%c0_49, %c4, %c0_50, %c0_51] : memref<1x6x16x32xbf16, #tpu.memory_space<vmem>>, vector<1x1x16x32xbf16>
    %63 = vector.shape_cast %62 : vector<1x1x16x32xbf16> to vector<16x32xbf16>
    %64 = vector.shape_cast %61 : vector<16x32xbf16> to vector<1x1x16x32xbf16>
    tpu.vector_store %arg4[%c0_49, %c4, %c0_50, %c0_51], %64 {strides = array<i32>} : memref<1x6x16x32xbf16, #tpu.memory_space<vmem>>, vector<1x1x16x32xbf16>,
    %65 = vector.extract_strided_slice %3 {offsets = [0, 320], sizes = [16, 32], strides = [1, 1]} : vector<16x576xf32> to vector<16x32xf32>
    %66 = tpu.transpose %65, [1, 0] : vector<16x32xf32> -> vector<32x16xf32>
    %67 = arith.truncf %66 : vector<32x16xf32> to vector<32x16xbf16>
    %c0_52 = arith.constant 0 : index
    %c4_53 = arith.constant 4 : index
    %c0_54 = arith.constant 0 : index
    %c0_55 = arith.constant 0 : index
    %68 = vector.load %arg5[%c0_52, %c4_53, %c0_54, %c0_55] : memref<1x6x32x16xbf16, #tpu.memory_space<vmem>>, vector<1x1x32x16xbf16>
    %69 = vector.shape_cast %68 : vector<1x1x32x16xbf16> to vector<32x16xbf16>
    %70 = vector.shape_cast %67 : vector<32x16xbf16> to vector<1x1x32x16xbf16>
    tpu.vector_store %arg5[%c0_52, %c4_53, %c0_54, %c0_55], %70 {strides = array<i32>} : memref<1x6x32x16xbf16, #tpu.memory_space<vmem>>, vector<1x1x32x16xbf16>,
    %71 = vector.extract_strided_slice %4 {offsets = [0, 512], sizes = [16, 32], strides = [1, 1]} : vector<16x576xbf16> to vector<16x32xbf16>
    %c0_56 = arith.constant 0 : index
    %c4_57 = arith.constant 4 : index
    %c0_58 = arith.constant 0 : index
    %c0_59 = arith.constant 0 : index
    %72 = vector.load %arg6[%c0_56, %c4_57, %c0_58, %c0_59] : memref<1x6x16x32xbf16, #tpu.memory_space<vmem>>, vector<1x1x16x32xbf16>
    %73 = vector.shape_cast %72 : vector<1x1x16x32xbf16> to vector<16x32xbf16>
    %74 = vector.shape_cast %71 : vector<16x32xbf16> to vector<1x1x16x32xbf16>
    tpu.vector_store %arg6[%c0_56, %c4_57, %c0_58, %c0_59], %74 {strides = array<i32>} : memref<1x6x16x32xbf16, #tpu.memory_space<vmem>>, vector<1x1x16x32xbf16>,
    %75 = vector.extract_strided_slice %4 {offsets = [0, 160], sizes = [16, 32], strides = [1, 1]} : vector<16x576xbf16> to vector<16x32xbf16>
    %c0_60 = arith.constant 0 : index
    %c5 = arith.constant 5 : index
    %c0_61 = arith.constant 0 : index
    %c0_62 = arith.constant 0 : index
    %76 = vector.load %arg4[%c0_60, %c5, %c0_61, %c0_62] : memref<1x6x16x32xbf16, #tpu.memory_space<vmem>>, vector<1x1x16x32xbf16>
    %77 = vector.shape_cast %76 : vector<1x1x16x32xbf16> to vector<16x32xbf16>
    %78 = vector.shape_cast %75 : vector<16x32xbf16> to vector<1x1x16x32xbf16>
    tpu.vector_store %arg4[%c0_60, %c5, %c0_61, %c0_62], %78 {strides = array<i32>} : memref<1x6x16x32xbf16, #tpu.memory_space<vmem>>, vector<1x1x16x32xbf16>,
    %79 = vector.extract_strided_slice %3 {offsets = [0, 352], sizes = [16, 32], strides = [1, 1]} : vector<16x576xf32> to vector<16x32xf32>
    %80 = tpu.transpose %79, [1, 0] : vector<16x32xf32> -> vector<32x16xf32>
    %81 = arith.truncf %80 : vector<32x16xf32> to vector<32x16xbf16>
    %c0_63 = arith.constant 0 : index
    %c5_64 = arith.constant 5 : index
    %c0_65 = arith.constant 0 : index
    %c0_66 = arith.constant 0 : index
    %82 = vector.load %arg5[%c0_63, %c5_64, %c0_65, %c0_66] : memref<1x6x32x16xbf16, #tpu.memory_space<vmem>>, vector<1x1x32x16xbf16>
    %83 = vector.shape_cast %82 : vector<1x1x32x16xbf16> to vector<32x16xbf16>
    %84 = vector.shape_cast %81 : vector<32x16xbf16> to vector<1x1x32x16xbf16>
    tpu.vector_store %arg5[%c0_63, %c5_64, %c0_65, %c0_66], %84 {strides = array<i32>} : memref<1x6x32x16xbf16, #tpu.memory_space<vmem>>, vector<1x1x32x16xbf16>,
    %85 = vector.extract_strided_slice %4 {offsets = [0, 544], sizes = [16, 32], strides = [1, 1]} : vector<16x576xbf16> to vector<16x32xbf16>
    %c0_67 = arith.constant 0 : index
    %c5_68 = arith.constant 5 : index
    %c0_69 = arith.constant 0 : index
    %c0_70 = arith.constant 0 : index
    %86 = vector.load %arg6[%c0_67, %c5_68, %c0_69, %c0_70] : memref<1x6x16x32xbf16, #tpu.memory_space<vmem>>, vector<1x1x16x32xbf16>
    %87 = vector.shape_cast %86 : vector<1x1x16x32xbf16> to vector<16x32xbf16>
    %88 = vector.shape_cast %85 : vector<16x32xbf16> to vector<1x1x16x32xbf16>
    tpu.vector_store %arg6[%c0_67, %c5_68, %c0_69, %c0_70], %88 {strides = array<i32>} : memref<1x6x16x32xbf16, #tpu.memory_space<vmem>>, vector<1x1x16x32xbf16>,
    return
  }
  func.func @transform_0(%arg0: i32, %arg1: i32) -> (i32, i32, i32) {
    %c0_i32 = arith.constant 0 : i32
    %c0_i32_0 = arith.constant 0 : i32
    return %arg0, %arg1, %c0_i32 : i32, i32, i32
  }
  func.func @transform_1(%arg0: i32, %arg1: i32) -> (i32, i32) {
    %c0_i32 = arith.constant 0 : i32
    %c0_i32_0 = arith.constant 0 : i32
    %c0_i32_1 = arith.constant 0 : i32
    return %c0_i32, %c0_i32_0 : i32, i32
  }
  func.func @transform_2(%arg0: i32, %arg1: i32) -> (i32, i32, i32, i32) {
    %c0_i32 = arith.constant 0 : i32
    %c0_i32_0 = arith.constant 0 : i32
    %c0_i32_1 = arith.constant 0 : i32
    return %arg0, %c0_i32, %arg1, %c0_i32_0 : i32, i32, i32, i32
  }
  func.func @transform_3(%arg0: i32, %arg1: i32) -> (i32, i32, i32, i32) {
    %c0_i32 = arith.constant 0 : i32
    %c0_i32_0 = arith.constant 0 : i32
    %c0_i32_1 = arith.constant 0 : i32
    return %arg0, %c0_i32, %c0_i32_0, %arg1 : i32, i32, i32, i32
  }
  func.func @transform_4(%arg0: i32, %arg1: i32) -> (i32, i32, i32, i32) {
    %c0_i32 = arith.constant 0 : i32
    %c0_i32_0 = arith.constant 0 : i32
    %c0_i32_1 = arith.constant 0 : i32
    return %arg0, %c0_i32, %arg1, %c0_i32_0 : i32, i32, i32, i32
  }
}

module attributes {stable_mosaic.version = 11 : i64} {
  func.func @attn_kernel(%arg0: i32, %arg1: i32, %arg2: i32, %arg3: memref<1x6x16x32xbf16, #tpu.memory_space<vmem>>, %arg4: memref<1x6x32x16xbf16, #tpu.memory_space<vmem>>, %arg5: memref<1x6x16x32xbf16, #tpu.memory_space<vmem>>, %arg6: memref<192x192xbf16, #tpu.memory_space<vmem>>, %arg7: memref<1x192xf32, #tpu.memory_space<vmem>>, %arg8: memref<1x16x192xf32, #tpu.memory_space<vmem>>, %arg9: memref<6x16x1xf32, #tpu.memory_space<vmem>>, %arg10: memref<6x16x1xf32, #tpu.memory_space<vmem>>, %arg11: memref<6x16x32xf32, #tpu.memory_space<vmem>>) attributes {dimension_semantics = [#tpu.dimension_semantics<parallel>, #tpu.dimension_semantics<parallel>, #tpu.dimension_semantics<arbitrary>], iteration_bounds = array<i64: 2, 1, 1>, scalar_prefetch = 0 : i64, scratch_operands = 3 : i64, tpu.core_type = #tpu.core_type<tc>, window_params = [{transform_indices = @transform_0, window_bounds = array<i64: 1, 6, 16, 32>}, {transform_indices = @transform_1, window_bounds = array<i64: 1, 6, 32, 16>}, {transform_indices = @transform_2, window_bounds = array<i64: 1, 6, 16, 32>}, {pipeline_mode = #tpu.pipeline_mode<synchronous>, transform_indices = @transform_3, window_bounds = array<i64: 192, 192>}, {pipeline_mode = #tpu.pipeline_mode<synchronous>, transform_indices = @transform_4, window_bounds = array<i64: 1, 192>}, {transform_indices = @transform_5, window_bounds = array<i64: 1, 16, 192>}]} {
    %c0_i32 = arith.constant 0 : i32
    %0 = arith.cmpi eq, %arg2, %c0_i32 : i32
    %1 = arith.extui %0 : i1 to i32
    %c0_i32_0 = arith.constant 0 : i32
    %2 = arith.cmpi ne, %1, %c0_i32_0 : i32
    scf.if %2 {
      %cst = arith.constant -1.000000e+30 : f32
      %9 = vector.broadcast %cst : f32 to vector<6x16x1xf32>
      %c0 = arith.constant 0 : index
      %c0_4 = arith.constant 0 : index
      %c0_5 = arith.constant 0 : index
      %10 = vector.load %arg9[%c0, %c0_4, %c0_5] : memref<6x16x1xf32, #tpu.memory_space<vmem>>, vector<6x16x1xf32>
      tpu.vector_store %arg9[%c0, %c0_4, %c0_5], %9 {strides = array<i32>} : memref<6x16x1xf32, #tpu.memory_space<vmem>>, vector<6x16x1xf32>,
      %cst_6 = arith.constant 0.000000e+00 : f32
      %11 = vector.broadcast %cst_6 : f32 to vector<6x16x1xf32>
      %c0_7 = arith.constant 0 : index
      %c0_8 = arith.constant 0 : index
      %c0_9 = arith.constant 0 : index
      %12 = vector.load %arg10[%c0_7, %c0_8, %c0_9] : memref<6x16x1xf32, #tpu.memory_space<vmem>>, vector<6x16x1xf32>
      tpu.vector_store %arg10[%c0_7, %c0_8, %c0_9], %11 {strides = array<i32>} : memref<6x16x1xf32, #tpu.memory_space<vmem>>, vector<6x16x1xf32>,
      %cst_10 = arith.constant 0.000000e+00 : f32
      %13 = vector.broadcast %cst_10 : f32 to vector<6x16x32xf32>
      %c0_11 = arith.constant 0 : index
      %c0_12 = arith.constant 0 : index
      %c0_13 = arith.constant 0 : index
      %14 = vector.load %arg11[%c0_11, %c0_12, %c0_13] : memref<6x16x32xf32, #tpu.memory_space<vmem>>, vector<6x16x32xf32>
      tpu.vector_store %arg11[%c0_11, %c0_12, %c0_13], %13 {strides = array<i32>} : memref<6x16x32xf32, #tpu.memory_space<vmem>>, vector<6x16x32xf32>,
    } else {
    }
    %3 = arith.cmpi sle, %arg2, %arg1 : i32
    %4 = arith.extui %3 : i1 to i32
    %c0_i32_1 = arith.constant 0 : i32
    %5 = arith.cmpi ne, %4, %c0_i32_1 : i32
    scf.if %5 {
      %c0 = arith.constant 0 : index
      %c0_4 = arith.constant 0 : index
      %c0_5 = arith.constant 0 : index
      %c0_6 = arith.constant 0 : index
      %9 = vector.load %arg3[%c0, %c0_4, %c0_5, %c0_6] : memref<1x6x16x32xbf16, #tpu.memory_space<vmem>>, vector<1x6x16x32xbf16>
      %10 = vector.shape_cast %9 : vector<1x6x16x32xbf16> to vector<6x16x32xbf16>
      %c0_7 = arith.constant 0 : index
      %c0_8 = arith.constant 0 : index
      %c0_9 = arith.constant 0 : index
      %c0_10 = arith.constant 0 : index
      %11 = vector.load %arg4[%c0_7, %c0_8, %c0_9, %c0_10] : memref<1x6x32x16xbf16, #tpu.memory_space<vmem>>, vector<1x6x32x16xbf16>
      %12 = vector.shape_cast %11 : vector<1x6x32x16xbf16> to vector<6x32x16xbf16>
      %c0_11 = arith.constant 0 : index
      %c0_12 = arith.constant 0 : index
      %c0_13 = arith.constant 0 : index
      %c0_14 = arith.constant 0 : index
      %13 = vector.load %arg5[%c0_11, %c0_12, %c0_13, %c0_14] : memref<1x6x16x32xbf16, #tpu.memory_space<vmem>>, vector<1x6x16x32xbf16>
      %14 = vector.shape_cast %13 : vector<1x6x16x32xbf16> to vector<6x16x32xbf16>
      "tpu.trace_start"() <{level = 10 : i32, message = "hqd,hdk->hqk"}> : () -> ()
      %cst = arith.constant dense<0.000000e+00> : vector<6x16x16xf32>
      %15 = tpu.matmul %10, %12, %cst {dimension_numbers = #tpu.dot_dimension_numbers<[2], [1], [1], [2], [0, 0, 0, 1, 1, 2], [0], [0]>} : vector<6x16x32xbf16>, vector<6x32x16xbf16>, vector<6x16x16xf32> -> vector<6x16x16xf32>
      "tpu.trace_stop"() : () -> ()
      %c16_i32 = arith.constant 16 : i32
      %16 = arith.muli %arg1, %c16_i32 : i32
      %17 = tpu.iota {dimensions = array<i32: 0>} : vector<16x16xi32>
      %18 = vector.broadcast %16 : i32 to vector<16x16xi32>
      %19 = arith.addi %18, %17 : vector<16x16xi32>
      %c16_i32_15 = arith.constant 16 : i32
      %20 = arith.muli %arg2, %c16_i32_15 : i32
      %21 = tpu.iota {dimensions = array<i32: 1>} : vector<16x16xi32>
      %22 = vector.broadcast %20 : i32 to vector<16x16xi32>
      %23 = arith.addi %22, %21 : vector<16x16xi32>
      %24 = arith.cmpi sge, %19, %23 : vector<16x16xi32>
      %25 = vector.shape_cast %24 : vector<16x16xi1> to vector<1x16x16xi1>
      %cst_16 = arith.constant -1.000000e+30 : f32
      %26 = vector.shape_cast %25 : vector<1x16x16xi1> to vector<1x16x16xi1>
      %27 = vector.broadcast %26 : vector<1x16x16xi1> to vector<6x16x16xi1>
      %28 = vector.broadcast %cst_16 : f32 to vector<6x16x16xf32>
      %29 = arith.select %27, %15, %28 : vector<6x16x16xi1>, vector<6x16x16xf32>
      %c0_17 = arith.constant 0 : index
      %c0_18 = arith.constant 0 : index
      %c0_19 = arith.constant 0 : index
      %30 = vector.load %arg9[%c0_17, %c0_18, %c0_19] : memref<6x16x1xf32, #tpu.memory_space<vmem>>, vector<6x16x1xf32>
      %cst_20 = arith.constant dense<0xFF800000> : vector<6x16xf32>
      %31 = vector.multi_reduction <maximumf>, %29, %cst_20 [2] : vector<6x16x16xf32> to vector<6x16xf32>
      %32 = vector.shape_cast %31 : vector<6x16xf32> to vector<6x16x1xf32>
      %33 = arith.maximumf %30, %32 : vector<6x16x1xf32>
      %34 = arith.subf %30, %33 : vector<6x16x1xf32>
      %35 = math.exp %34 : vector<6x16x1xf32>
      %36 = vector.broadcast %33 : vector<6x16x1xf32> to vector<6x16x16xf32>
      %37 = arith.subf %29, %36 : vector<6x16x16xf32>
      %38 = math.exp %37 : vector<6x16x16xf32>
      %c0_21 = arith.constant 0 : index
      %c0_22 = arith.constant 0 : index
      %c0_23 = arith.constant 0 : index
      %39 = vector.load %arg10[%c0_21, %c0_22, %c0_23] : memref<6x16x1xf32, #tpu.memory_space<vmem>>, vector<6x16x1xf32>
      %40 = arith.mulf %35, %39 : vector<6x16x1xf32>
      %cst_24 = arith.constant dense<0.000000e+00> : vector<6x16xf32>
      %41 = vector.multi_reduction <add>, %38, %cst_24 [2] : vector<6x16x16xf32> to vector<6x16xf32>
      %42 = vector.shape_cast %41 : vector<6x16xf32> to vector<6x16x1xf32>
      %43 = arith.addf %40, %42 : vector<6x16x1xf32>
      %c0_25 = arith.constant 0 : index
      %c0_26 = arith.constant 0 : index
      %c0_27 = arith.constant 0 : index
      %44 = vector.load %arg10[%c0_25, %c0_26, %c0_27] : memref<6x16x1xf32, #tpu.memory_space<vmem>>, vector<6x16x1xf32>
      tpu.vector_store %arg10[%c0_25, %c0_26, %c0_27], %43 {strides = array<i32>} : memref<6x16x1xf32, #tpu.memory_space<vmem>>, vector<6x16x1xf32>,
      %c0_28 = arith.constant 0 : index
      %c0_29 = arith.constant 0 : index
      %c0_30 = arith.constant 0 : index
      %45 = vector.load %arg11[%c0_28, %c0_29, %c0_30] : memref<6x16x32xf32, #tpu.memory_space<vmem>>, vector<6x16x32xf32>
      %46 = vector.broadcast %35 : vector<6x16x1xf32> to vector<6x16x32xf32>
      %47 = arith.mulf %46, %45 : vector<6x16x32xf32>
      %48 = arith.truncf %38 : vector<6x16x16xf32> to vector<6x16x16xbf16>
      "tpu.trace_start"() <{level = 10 : i32, message = "hqk,hkd->hqd"}> : () -> ()
      %cst_31 = arith.constant dense<0.000000e+00> : vector<6x16x32xf32>
      %49 = tpu.matmul %48, %14, %cst_31 {dimension_numbers = #tpu.dot_dimension_numbers<[2], [1], [1], [2], [0, 0, 0, 1, 1, 2], [0], [0]>} : vector<6x16x16xbf16>, vector<6x16x32xbf16>, vector<6x16x32xf32> -> vector<6x16x32xf32>
      "tpu.trace_stop"() : () -> ()
      %50 = arith.addf %47, %49 : vector<6x16x32xf32>
      %c0_32 = arith.constant 0 : index
      %c0_33 = arith.constant 0 : index
      %c0_34 = arith.constant 0 : index
      %51 = vector.load %arg11[%c0_32, %c0_33, %c0_34] : memref<6x16x32xf32, #tpu.memory_space<vmem>>, vector<6x16x32xf32>
      tpu.vector_store %arg11[%c0_32, %c0_33, %c0_34], %50 {strides = array<i32>} : memref<6x16x32xf32, #tpu.memory_space<vmem>>, vector<6x16x32xf32>,
      %c0_35 = arith.constant 0 : index
      %c0_36 = arith.constant 0 : index
      %c0_37 = arith.constant 0 : index
      %52 = vector.load %arg9[%c0_35, %c0_36, %c0_37] : memref<6x16x1xf32, #tpu.memory_space<vmem>>, vector<6x16x1xf32>
      tpu.vector_store %arg9[%c0_35, %c0_36, %c0_37], %33 {strides = array<i32>} : memref<6x16x1xf32, #tpu.memory_space<vmem>>, vector<6x16x1xf32>,
    } else {
    }
    %c0_i32_2 = arith.constant 0 : i32
    %6 = arith.cmpi eq, %arg2, %c0_i32_2 : i32
    %7 = arith.extui %6 : i1 to i32
    %c0_i32_3 = arith.constant 0 : i32
    %8 = arith.cmpi ne, %7, %c0_i32_3 : i32
    scf.if %8 {
      %c0 = arith.constant 0 : index
      %c0_4 = arith.constant 0 : index
      %c0_5 = arith.constant 0 : index
      %9 = vector.load %arg10[%c0, %c0_4, %c0_5] : memref<6x16x1xf32, #tpu.memory_space<vmem>>, vector<6x16x1xf32>
      %10 = tpu.reciprocal %9 {approx = true} : vector<6x16x1xf32> -> vector<6x16x1xf32>
      %c0_6 = arith.constant 0 : index
      %c0_7 = arith.constant 0 : index
      %c0_8 = arith.constant 0 : index
      %11 = vector.load %arg11[%c0_6, %c0_7, %c0_8] : memref<6x16x32xf32, #tpu.memory_space<vmem>>, vector<6x16x32xf32>
      %12 = vector.broadcast %10 : vector<6x16x1xf32> to vector<6x16x32xf32>
      %13 = arith.mulf %11, %12 : vector<6x16x32xf32>
      %14 = vector.extract_strided_slice %13 {offsets = [0, 0, 0], sizes = [1, 16, 32], strides = [1, 1, 1]} : vector<6x16x32xf32> to vector<1x16x32xf32>
      %15 = vector.shape_cast %14 : vector<1x16x32xf32> to vector<16x32xf32>
      %16 = arith.truncf %15 : vector<16x32xf32> to vector<16x32xbf16>
      %17 = vector.extract_strided_slice %13 {offsets = [1, 0, 0], sizes = [1, 16, 32], strides = [1, 1, 1]} : vector<6x16x32xf32> to vector<1x16x32xf32>
      %18 = vector.shape_cast %17 : vector<1x16x32xf32> to vector<16x32xf32>
      %19 = arith.truncf %18 : vector<16x32xf32> to vector<16x32xbf16>
      %20 = vector.extract_strided_slice %13 {offsets = [2, 0, 0], sizes = [1, 16, 32], strides = [1, 1, 1]} : vector<6x16x32xf32> to vector<1x16x32xf32>
      %21 = vector.shape_cast %20 : vector<1x16x32xf32> to vector<16x32xf32>
      %22 = arith.truncf %21 : vector<16x32xf32> to vector<16x32xbf16>
      %23 = vector.extract_strided_slice %13 {offsets = [3, 0, 0], sizes = [1, 16, 32], strides = [1, 1, 1]} : vector<6x16x32xf32> to vector<1x16x32xf32>
      %24 = vector.shape_cast %23 : vector<1x16x32xf32> to vector<16x32xf32>
      %25 = arith.truncf %24 : vector<16x32xf32> to vector<16x32xbf16>
      %26 = vector.extract_strided_slice %13 {offsets = [4, 0, 0], sizes = [1, 16, 32], strides = [1, 1, 1]} : vector<6x16x32xf32> to vector<1x16x32xf32>
      %27 = vector.shape_cast %26 : vector<1x16x32xf32> to vector<16x32xf32>
      %28 = arith.truncf %27 : vector<16x32xf32> to vector<16x32xbf16>
      %29 = vector.extract_strided_slice %13 {offsets = [5, 0, 0], sizes = [1, 16, 32], strides = [1, 1, 1]} : vector<6x16x32xf32> to vector<1x16x32xf32>
      %30 = vector.shape_cast %29 : vector<1x16x32xf32> to vector<16x32xf32>
      %31 = arith.truncf %30 : vector<16x32xf32> to vector<16x32xbf16>
      %32 = tpu.concatenate %16, %19, %22, %25, %28, %31 in 1 : vector<16x32xbf16>, vector<16x32xbf16>, vector<16x32xbf16>, vector<16x32xbf16>, vector<16x32xbf16>, vector<16x32xbf16> -> vector<16x192xbf16>
      %c0_9 = arith.constant 0 : index
      %c0_10 = arith.constant 0 : index
      %33 = vector.load %arg6[%c0_9, %c0_10] : memref<192x192xbf16, #tpu.memory_space<vmem>>, vector<192x192xbf16>
      %cst = arith.constant dense<0.000000e+00> : vector<16x192xf32>
      %34 = tpu.matmul %32, %33, %cst {dimension_numbers = #tpu.dot_dimension_numbers<[1], [0], [0], [1], [0, 0, 1, 1], [], []>} : vector<16x192xbf16>, vector<192x192xbf16>, vector<16x192xf32> -> vector<16x192xf32>
      %c0_11 = arith.constant 0 : index
      %c0_12 = arith.constant 0 : index
      %35 = vector.load %arg7[%c0_11, %c0_12] : memref<1x192xf32, #tpu.memory_space<vmem>>, vector<1x192xf32>
      %36 = vector.broadcast %35 : vector<1x192xf32> to vector<16x192xf32>
      %37 = arith.addf %34, %36 : vector<16x192xf32>
      %c0_13 = arith.constant 0 : index
      %c0_14 = arith.constant 0 : index
      %c0_15 = arith.constant 0 : index
      %38 = vector.load %arg8[%c0_13, %c0_14, %c0_15] : memref<1x16x192xf32, #tpu.memory_space<vmem>>, vector<1x16x192xf32>
      %39 = vector.shape_cast %38 : vector<1x16x192xf32> to vector<16x192xf32>
      %40 = vector.shape_cast %37 : vector<16x192xf32> to vector<1x16x192xf32>
      tpu.vector_store %arg8[%c0_13, %c0_14, %c0_15], %40 {strides = array<i32>} : memref<1x16x192xf32, #tpu.memory_space<vmem>>, vector<1x16x192xf32>,
    } else {
    }
    return
  }
  func.func @transform_0(%arg0: i32, %arg1: i32, %arg2: i32) -> (i32, i32, i32, i32) {
    %c0_i32 = arith.constant 0 : i32
    %c0_i32_0 = arith.constant 0 : i32
    %c0_i32_1 = arith.constant 0 : i32
    return %arg0, %c0_i32, %arg1, %c0_i32_0 : i32, i32, i32, i32
  }
  func.func @transform_1(%arg0: i32, %arg1: i32, %arg2: i32) -> (i32, i32, i32, i32) {
    %c0_i32 = arith.constant 0 : i32
    %c0_i32_0 = arith.constant 0 : i32
    %c0_i32_1 = arith.constant 0 : i32
    return %arg0, %c0_i32, %c0_i32_0, %arg2 : i32, i32, i32, i32
  }
  func.func @transform_2(%arg0: i32, %arg1: i32, %arg2: i32) -> (i32, i32, i32, i32) {
    %c0_i32 = arith.constant 0 : i32
    %c0_i32_0 = arith.constant 0 : i32
    %c0_i32_1 = arith.constant 0 : i32
    return %arg0, %c0_i32, %arg2, %c0_i32_0 : i32, i32, i32, i32
  }
  func.func @transform_3(%arg0: i32, %arg1: i32, %arg2: i32) -> (i32, i32) {
    %c0_i32 = arith.constant 0 : i32
    %c0_i32_0 = arith.constant 0 : i32
    %c0_i32_1 = arith.constant 0 : i32
    return %c0_i32, %c0_i32_0 : i32, i32
  }
  func.func @transform_4(%arg0: i32, %arg1: i32, %arg2: i32) -> (i32, i32) {
    %c0_i32 = arith.constant 0 : i32
    %c0_i32_0 = arith.constant 0 : i32
    %c0_i32_1 = arith.constant 0 : i32
    return %c0_i32, %c0_i32_0 : i32, i32
  }
  func.func @transform_5(%arg0: i32, %arg1: i32, %arg2: i32) -> (i32, i32, i32) {
    %c0_i32 = arith.constant 0 : i32
    %c0_i32_0 = arith.constant 0 : i32
    return %arg0, %arg1, %c0_i32 : i32, i32, i32
  }
}

</mosaic_0001>

<llo_original>
// kernel: multi_head_attention.2
$region0: #{multi_head_attention.2}
  #allocation0 [shape = 'u32[]', space=smem, size = 0x4, offset = 0x4, fixed_abs, tag = 'smem constant byte address 0x4 - core index']
  #allocation1 [shape = 'u32[144,128]{1,0:T(1,128)}', space=vmem, size = 0x12000, scoped, tag = 'internal scratch']
  %s0 = inlined_call_operand.vmem [shape: bf16[2,16,192], index: 0, kind: input, shape index: {}]
  %s1 = inlined_call_operand.vmem [shape: bf16[192,576], index: 1, kind: input, shape index: {}]
  %s2 = inlined_call_operand.vmem [shape: bf16[2,6,16,32], index: 2, kind: output, shape index: {0}]
  %s3 = inlined_call_operand.vmem [shape: bf16[2,6,32,16], index: 3, kind: output, shape index: {1}]
  %s4 = inlined_call_operand.vmem [shape: bf16[2,6,16,32], index: 4, kind: output, shape index: {2}]
  %5 = xla_tuple %s2, %s3, %s4
  %s6 = sld [smem:[#allocation0]]
  $region57: #{multi_head_attention.2} parent=0
    _
  %s8 = ssub.s32 1, %s6
  %s9 = scalar_select 0, %s8, %s6
  loop: start=0, step=1, limit=4
  $region2: #{multi_head_attention.2} parent=0 // loop_pre_header
    _
  $region3: #{multi_head_attention.2} parent=0 // loop_header
    %s11 = sphi 0, %s15
    %p12 = scmp.ge.s32.totalorder %s11, 4
    %s18 = sphi 0, %s30
    %s19 = sphi 0, %s26
    %s20 = sphi 0, %s18
    %s21 = sphi 0, %s19
    %s22 = sphi 0, %s20
    %s23 = sphi 0, %s21
    %s35 = sphi 0, %s37
    %s38 = sphi 0, %s35
    %s39 = sphi 0, %s38
    %s55 = sphi 0, %s39
    %s59 = sphi 0, %s59
    %s61 = sphi 0, %s59
    %s62 = sphi 0, %s61
    %s76 = sphi 0, %s62
    %s84 = sphi 0, %s86
    %s87 = sphi 0, %s84
    %s88 = sphi 0, %s87
    %s104 = sphi 0, %s88
    %s112 = sphi 0, %s114
    %s115 = sphi 0, %s112
    %s116 = sphi 0, %s115
    %s132 = sphi 0, %s116
    %s140 = sphi 0, %s142
    %s143 = sphi 0, %s140
    %s144 = sphi 0, %s143
    %s160 = sphi 0, %s144
  $region4: #{multi_head_attention.2} parent=0 // loop_header_branch
    %14 = sbr.rel (%p12) target = $region8
  $region5: #{multi_head_attention.2} parent=0 // loop_body
    %s16 = ssub.s32 %s11, 1
    %s17 = ssub.s32 %s11, 2
    %s24 = sadd.s32 1, %s19
    %p25 = scmp.ge.s32.totalorder %s24, 1
    %s26 = scalar_select %p25, 0, %s24
    %s27 = sadd.s32 1, %s18
    %s28 = scalar_select %p25, %s27, %s18
    %p29 = scmp.ge.s32.totalorder %s28, 2
    %s30 = scalar_select %p29, 0, %s28
    %s31 = ssub.s32 %s18, %s30
    %s32 = ssub.s32 %s19, %s26
    %s33 = sor.u32 %s31, %s32
    %p34 = scmp.eq.s32.totalorder %s33, 0
    %s36 = sadd.s32 %s35, 1
    %s37 = scalar_select %p34, %s35, %s36
    %p40 = pneg %p34
    %p41 = scmp.eq.s32.totalorder %s11, 1
    %p42 = por %p40, %p41
    %p43 = scmp.ne.s32.totalorder %s35, %s38
    %p44 = scmp.eq.s32.totalorder %s11, 0
    %p45 = por %p43, %p44
    %p46 = scmp.ne.s32.totalorder %s35, %s38
    %p47 = scmp.eq.s32.totalorder %s16, 1
    %p48 = por %p46, %p47
    %p49 = scmp.ne.s32.totalorder %s38, %s39
    %p50 = scmp.eq.s32.totalorder %s16, 0
    %p51 = por %p49, %p50
    %p52 = scmp.ne.s32.totalorder %s38, %s39
    %p53 = scmp.eq.s32.totalorder %s17, 1
    %p54 = por %p52, %p53
    %p56 = scmp.ne.s32.totalorder %s39, %s55
    %p57 = scmp.eq.s32.totalorder %s17, 0
    %p58 = por %p56, %p57
    %s60 = sadd.s32 %s59, 1
    %p63 = scmp.eq.s32.totalorder %s11, 1
    %p64 = scmp.ne.s32.totalorder %s59, %s61
    %p65 = scmp.eq.s32.totalorder %s11, 0
    %p66 = por %p64, %p65
    %p67 = scmp.ne.s32.totalorder %s59, %s61
    %p68 = scmp.eq.s32.totalorder %s16, 1
    %p69 = por %p67, %p68
    %p70 = scmp.ne.s32.totalorder %s61, %s62
    %p71 = scmp.eq.s32.totalorder %s16, 0
    %p72 = por %p70, %p71
    %p73 = scmp.ne.s32.totalorder %s61, %s62
    %p74 = scmp.eq.s32.totalorder %s17, 1
    %p75 = por %p73, %p74
    %p77 = scmp.ne.s32.totalorder %s62, %s76
    %p78 = scmp.eq.s32.totalorder %s17, 0
    %p79 = por %p77, %p78
    %s80 = ssub.s32 %s18, %s30
    %s81 = ssub.s32 %s19, %s26
    %s82 = sor.u32 %s80, %s81
    %p83 = scmp.eq.s32.totalorder %s82, 0
    %s85 = sadd.s32 %s84, 1
    %s86 = scalar_select %p83, %s84, %s85
    %p89 = pneg %p83
    %p90 = scmp.eq.s32.totalorder %s11, 1
    %p91 = por %p89, %p90
    %p92 = scmp.ne.s32.totalorder %s84, %s87
    %p93 = scmp.eq.s32.totalorder %s11, 0
    %p94 = por %p92, %p93
    %p95 = scmp.ne.s32.totalorder %s84, %s87
    %p96 = scmp.eq.s32.totalorder %s16, 1
    %p97 = por %p95, %p96
    %p98 = scmp.ne.s32.totalorder %s87, %s88
    %p99 = scmp.eq.s32.totalorder %s16, 0
    %p100 = por %p98, %p99
    %p101 = scmp.ne.s32.totalorder %s87, %s88
    %p102 = scmp.eq.s32.totalorder %s17, 1
    %p103 = por %p101, %p102
    %p105 = scmp.ne.s32.totalorder %s88, %s104
    %p106 = scmp.eq.s32.totalorder %s17, 0
    %p107 = por %p105, %p106
    %s108 = ssub.s32 %s18, %s30
    %s109 = ssub.s32 %s19, %s26
    %s110 = sor.u32 %s108, %s109
    %p111 = scmp.eq.s32.totalorder %s110, 0
    %s113 = sadd.s32 %s112, 1
    %s114 = scalar_select %p111, %s112, %s113
    %p117 = pneg %p111
    %p118 = scmp.eq.s32.totalorder %s11, 1
    %p119 = por %p117, %p118
    %p120 = scmp.ne.s32.totalorder %s112, %s115
    %p121 = scmp.eq.s32.totalorder %s11, 0
    %p122 = por %p120, %p121
    %p123 = scmp.ne.s32.totalorder %s112, %s115
    %p124 = scmp.eq.s32.totalorder %s16, 1
    %p125 = por %p123, %p124
    %p126 = scmp.ne.s32.totalorder %s115, %s116
    %p127 = scmp.eq.s32.totalorder %s16, 0
    %p128 = por %p126, %p127
    %p129 = scmp.ne.s32.totalorder %s115, %s116
    %p130 = scmp.eq.s32.totalorder %s17, 1
    %p131 = por %p129, %p130
    %p133 = scmp.ne.s32.totalorder %s116, %s132
    %p134 = scmp.eq.s32.totalorder %s17, 0
    %p135 = por %p133, %p134
    %s136 = ssub.s32 %s18, %s30
    %s137 = ssub.s32 %s19, %s26
    %s138 = sor.u32 %s136, %s137
    %p139 = scmp.eq.s32.totalorder %s138, 0
    %s141 = sadd.s32 %s140, 1
    %s142 = scalar_select %p139, %s140, %s141
    %p145 = pneg %p139
    %p146 = scmp.eq.s32.totalorder %s11, 1
    %p147 = por %p145, %p146
    %p148 = scmp.ne.s32.totalorder %s140, %s143
    %p149 = scmp.eq.s32.totalorder %s11, 0
    %p150 = por %p148, %p149
    %p151 = scmp.ne.s32.totalorder %s140, %s143
    %p152 = scmp.eq.s32.totalorder %s16, 1
    %p153 = por %p151, %p152
    %p154 = scmp.ne.s32.totalorder %s143, %s144
    %p155 = scmp.eq.s32.totalorder %s16, 0
    %p156 = por %p154, %p155
    %p157 = scmp.ne.s32.totalorder %s143, %s144
    %p158 = scmp.eq.s32.totalorder %s17, 1
    %p159 = por %p157, %p158
    %p161 = scmp.ne.s32.totalorder %s144, %s160
    %p162 = scmp.eq.s32.totalorder %s17, 0
    %p163 = por %p161, %p162
    %p164 = scmp.le.s32.totalorder 1, %s11
    %p165 = scmp.lt.s32.totalorder %s11, 3
    %p166 = pnand %p164, %p165
    %p167 = pneg %p166
    // Predicated region
    $region9: #{multi_head_attention.2} parent=5 // pred_check
      _
    $region10: #{multi_head_attention.2} parent=5 // pred_check_branch
      %169 = sbr.rel (%p166) target = $region12
    $region11: #{multi_head_attention.2} parent=5 // pred_region
      %s170 = ssub.s32 %s11, 1
      // Predicated region
      $region13: #{multi_head_attention.2} parent=11 // pred_check
        %p171 = pneg %p72
      $region14: #{multi_head_attention.2} parent=11 // pred_check_branch
        %173 = sbr.rel (%p171) target = $region16
      $region15: #{multi_head_attention.2} parent=11 // pred_region
        _
      $region16: #{multi_head_attention.2} parent=11 // pred_fallthru
        _
    $region12: #{multi_head_attention.2} parent=5 // pred_fallthru
      _
    %p174 = scmp.lt.s32.totalorder %s11, 2
    // Predicated region
    $region17: #{multi_head_attention.2} parent=5 // pred_check
      %p175 = pneg %p174
    $region18: #{multi_head_attention.2} parent=5 // pred_check_branch
      %177 = sbr.rel (%p175) target = $region20
    $region19: #{multi_head_attention.2} parent=5 // pred_region
      // Predicated region
      $region21: #{multi_head_attention.2} parent=19 // pred_check
        %p178 = pneg %p45
      $region22: #{multi_head_attention.2} parent=19 // pred_check_branch
        %180 = sbr.rel (%p178) target = $region24
      $region23: #{multi_head_attention.2} parent=19 // pred_region
        %s181 = smul.u32 2, %s19
        %p182 = scmp.lt.s32.totalorder %s18, 1
        %s183 = scalar_select %p182, %s18, 1
        %p184 = scmp.lt.s32.totalorder %s181, 1
        %s185 = scalar_select %p184, %s181, 1
        %s186 = smul.addr %s185, 2
        %s187 = smul.addr %s183, 4
        %s188 = sadd.s32 %s186, %s187
        %s189 = smul.addr %s188, 4
        %s190 = scalar_lea.vmem %s0, %s189
        %s191 = smul.u32 2, %s19
      $region24: #{multi_head_attention.2} parent=19 // pred_fallthru
        _
    $region20: #{multi_head_attention.2} parent=5 // pred_fallthru
      _
    %p192 = scmp.le.s32.totalorder 1, %s11
    %p193 = scmp.lt.s32.totalorder %s11, 3
    %p194 = pnand %p192, %p193
    %p195 = pneg %p194
    // Predicated region
    $region25: #{multi_head_attention.2} parent=5 // pred_check
      _
    $region26: #{multi_head_attention.2} parent=5 // pred_check_branch
      %197 = sbr.rel (%p194) target = $region28
    $region27: #{multi_head_attention.2} parent=5 // pred_region
      %s198 = ssub.s32 %s11, 1
      %s199 = smul.u32 2, %s21
      %p200 = scmp.lt.s32.totalorder %s20, 1
      %s201 = scalar_select %p200, %s20, 1
      %p202 = scmp.lt.s32.totalorder %s199, 1
      %s203 = scalar_select %p202, %s199, 1
      %s204 = smul.addr %s203, 2
      %s205 = smul.addr %s201, 4
      %s206 = sadd.s32 %s204, %s205
      %s207 = smul.addr %s206, 4
      %s208 = scalar_lea.vmem %s0, %s207
      %p209 = pneg %p51
      %p210 = pneg %p48
      %p211 = pneg %p72
      %p212 = pneg %p69
      %p213 = pneg %p100
      %p214 = pneg %p97
      %s215 = smul.u32 2, %s21
      %p216 = scmp.lt.s32.totalorder %s20, 1
      %s217 = scalar_select %p216, %s20, 1
      %p218 = scmp.lt.s32.totalorder %s215, 1
      %s219 = scalar_select %p218, %s215, 1
      %s220 = smul.addr %s217, 12
      %s221 = sadd.s32 %s219, %s220
      %s222 = smul.addr %s221, 4
      %s223 = scalar_lea.vmem %s2, %s222
      %p224 = pneg %p128
      %p225 = pneg %p125
      %p226 = scmp.lt.s32.totalorder %s20, 1
      %s227 = scalar_select %p226, %s20, 1
      %p228 = scmp.lt.s32.totalorder %s21, 0
      %s229 = scalar_select %p228, %s21, 0
      %s230 = smul.addr %s227, 24
      %s231 = sadd.s32 %s229, %s230
      %s232 = smul.addr %s231, 4
      %s233 = scalar_lea.vmem %s3, %s232
      %p234 = pneg %p156
      %p235 = pneg %p153
      %s236 = smul.u32 2, %s21
      %p237 = scmp.lt.s32.totalorder %s20, 1
      %s238 = scalar_select %p237, %s20, 1
      %p239 = scmp.lt.s32.totalorder %s236, 1
      %s240 = scalar_select %p239, %s236, 1
      %s241 = smul.addr %s238, 12
      %s242 = sadd.s32 %s240, %s241
      %s243 = smul.addr %s242, 4
      %s244 = scalar_lea.vmem %s4, %s243
      %s245 = smul.u32 2, %s21
      %p246 = scmp.lt.s32.totalorder %s20, 1
      %s247 = scalar_select %p246, %s20, 1
      %p248 = scmp.lt.s32.totalorder %s245, 1
      %s249 = scalar_select %p248, %s245, 1
      %s250 = smul.addr %s249, 2
      %s251 = smul.addr %s247, 4
      %s252 = sadd.s32 %s250, %s251
      %s253 = smul.addr %s252, 4
      %s254 = scalar_lea.vmem %s0, %s253
      %s255 = smul.u32 2, %s21
      %s256 = smul.u32 2, %s21
      %p257 = scmp.lt.s32.totalorder %s20, 1
      %s258 = scalar_select %p257, %s20, 1
      %p259 = scmp.lt.s32.totalorder %s256, 1
      %s260 = scalar_select %p259, %s256, 1
      %s261 = smul.addr %s258, 12
      %s262 = sadd.s32 %s260, %s261
      %s263 = smul.addr %s262, 4
      %s264 = scalar_lea.vmem %s2, %s263
      %s265 = smul.u32 2, %s21
      %p266 = scmp.lt.s32.totalorder %s20, 1
      %s267 = scalar_select %p266, %s20, 1
      %p268 = scmp.lt.s32.totalorder %s21, 0
      %s269 = scalar_select %p268, %s21, 0
      %s270 = smul.addr %s267, 24
      %s271 = sadd.s32 %s269, %s270
      %s272 = smul.addr %s271, 4
      %s273 = scalar_lea.vmem %s3, %s272
      %s274 = smul.u32 2, %s21
      %p275 = scmp.lt.s32.totalorder %s20, 1
      %s276 = scalar_select %p275, %s20, 1
      %p277 = scmp.lt.s32.totalorder %s274, 1
      %s278 = scalar_select %p277, %s274, 1
      %s279 = smul.addr %s276, 12
      %s280 = sadd.s32 %s278, %s279
      %s281 = smul.addr %s280, 4
      %s282 = scalar_lea.vmem %s4, %s281
      %s283 = smul.u32 2, %s21
      %v285 = vld [vmem:[%s254] sm:$0xff]
      %v286 = vld [vmem:[%s254 + $0x8] sm:$0xff]
      %v287 = vld [vmem:[%s1] sm:$0xff]
      %v288 = vld [vmem:[%s1 + $0x8] sm:$0xff]
      %v289 = vld [vmem:[%s1 + $0x10] sm:$0xf]
      %v290 = vld [vmem:[%s1 + $0x14] sm:$0xff]
      %v291 = vld [vmem:[%s1 + $0x1c] sm:$0xff]
      %v292 = vld [vmem:[%s1 + $0x24] sm:$0xf]
      %v293 = vld [vmem:[%s1 + $0x28] sm:$0xff]
      %v294 = vld [vmem:[%s1 + $0x30] sm:$0xff]
      %v295 = vld [vmem:[%s1 + $0x38] sm:$0xf]
      %v296 = vld [vmem:[%s1 + $0x3c] sm:$0xff]
      %v297 = vld [vmem:[%s1 + $0x44] sm:$0xff]
      %v298 = vld [vmem:[%s1 + $0x4c] sm:$0xf]
      %v299 = vld [vmem:[%s1 + $0x50] sm:$0xff]
      %v300 = vld [vmem:[%s1 + $0x58] sm:$0xff]
      %v301 = vld [vmem:[%s1 + $0x60] sm:$0xf]
      %v302 = vld [vmem:[%s1 + $0x64] sm:$0xff]
      %v303 = vld [vmem:[%s1 + $0x6c] sm:$0xff]
      %v304 = vld [vmem:[%s1 + $0x74] sm:$0xf]
      %v305 = vld [vmem:[%s1 + $0x78] sm:$0xff]
      %v306 = vld [vmem:[%s1 + $0x80] sm:$0xff]
      %v307 = vld [vmem:[%s1 + $0x88] sm:$0xf]
      %v308 = vld [vmem:[%s1 + $0x8c] sm:$0xff]
      %v309 = vld [vmem:[%s1 + $0x94] sm:$0xff]
      %v310 = vld [vmem:[%s1 + $0x9c] sm:$0xf]
      %v311 = vld [vmem:[%s1 + $0xa0] sm:$0xff]
      %v312 = vld [vmem:[%s1 + $0xa8] sm:$0xff]
      %v313 = vld [vmem:[%s1 + $0xb0] sm:$0xf]
      %v314 = vld [vmem:[%s1 + $0xb4] sm:$0xff]
      %v315 = vld [vmem:[%s1 + $0xbc] sm:$0xff]
      %v316 = vld [vmem:[%s1 + $0xc4] sm:$0xf]
      %v317 = vld [vmem:[%s1 + $0xc8] sm:$0xff]
      %v318 = vld [vmem:[%s1 + $0xd0] sm:$0xff]
      %v319 = vld [vmem:[%s1 + $0xd8] sm:$0xf]
      %v320 = vld [vmem:[%s1 + $0xdc] sm:$0xff]
      %v321 = vld [vmem:[%s1 + $0xe4] sm:$0xff]
      %v322 = vld [vmem:[%s1 + $0xec] sm:$0xf]
      %v323 = vld [vmem:[%s1 + $0xf0] sm:$0xff]
      %v324 = vld [vmem:[%s1 + $0xf8] sm:$0xff]
      %v325 = vld [vmem:[%s1 + $0x100] sm:$0xf]
      %v326 = vld [vmem:[%s1 + $0x104] sm:$0xff]
      %v327 = vld [vmem:[%s1 + $0x10c] sm:$0xff]
      %v328 = vld [vmem:[%s1 + $0x114] sm:$0xf]
      %v329 = vld [vmem:[%s1 + $0x118] sm:$0xff]
      %v330 = vld [vmem:[%s1 + $0x120] sm:$0xff]
      %v331 = vld [vmem:[%s1 + $0x128] sm:$0xf]
      %v332 = vld [vmem:[%s1 + $0x12c] sm:$0xff]
      %v333 = vld [vmem:[%s1 + $0x134] sm:$0xff]
      %v334 = vld [vmem:[%s1 + $0x13c] sm:$0xf]
      %v335 = vld [vmem:[%s1 + $0x140] sm:$0xff]
      %v336 = vld [vmem:[%s1 + $0x148] sm:$0xff]
      %v337 = vld [vmem:[%s1 + $0x150] sm:$0xf]
      %v338 = vld [vmem:[%s1 + $0x154] sm:$0xff]
      %v339 = vld [vmem:[%s1 + $0x15c] sm:$0xff]
      %v340 = vld [vmem:[%s1 + $0x164] sm:$0xf]
      %v341 = vld [vmem:[%s1 + $0x168] sm:$0xff]
      %v342 = vld [vmem:[%s1 + $0x170] sm:$0xff]
      %v343 = vld [vmem:[%s1 + $0x178] sm:$0xf]
      %v344 = vld [vmem:[%s1 + $0x17c] sm:$0xff]
      %v345 = vld [vmem:[%s1 + $0x184] sm:$0xff]
      %v346 = vld [vmem:[%s1 + $0x18c] sm:$0xf]
      %v347 = vld [vmem:[%s1 + $0x190] sm:$0xff]
      %v348 = vld [vmem:[%s1 + $0x198] sm:$0xff]
      %v349 = vld [vmem:[%s1 + $0x1a0] sm:$0xf]
      %v350 = vld [vmem:[%s1 + $0x1a4] sm:$0xff]
      %v351 = vld [vmem:[%s1 + $0x1ac] sm:$0xff]
      %v352 = vld [vmem:[%s1 + $0x1b4] sm:$0xf]
      %v353 = vld [vmem:[%s1 + $0x1b8] sm:$0xff]
      %v354 = vld [vmem:[%s1 + $0x1c0] sm:$0xff]
      %v355 = vld [vmem:[%s1 + $0x1c8] sm:$0xf]
      %v356 = vld [vmem:[%s1 + $0x1cc] sm:$0xff]
      %v357 = vld [vmem:[%s1 + $0x1d4] sm:$0xff]
      %v358 = vld [vmem:[%s1 + $0x1dc] sm:$0xf]
      %v361 = vunpack.c.l.b16 %v285
      %v362 = vunpack.c.h.b16 %v285
      %v363 = vunpack.c.l.b16 %v286
      %v364 = vunpack.c.h.b16 %v286
      %v365 = vpack.c.b16 %v363, %v361
      %v366 = vpack.c.b16 %v364, %v362
      %v440 = vunpack.c.l.b16 %v287
      %v441 = vunpack.c.h.b16 %v287
      %v442 = vunpack.c.l.b16 %v288
      %v443 = vunpack.c.h.b16 %v288
      %v444 = vunpack.c.l.b16 %v289
      %v445 = vunpack.c.l.b16 %v290
      %v446 = vunpack.c.h.b16 %v290
      %v447 = vunpack.c.l.b16 %v291
      %v448 = vunpack.c.h.b16 %v291
      %v449 = vunpack.c.l.b16 %v292
      %v450 = vunpack.c.l.b16 %v293
      %v451 = vunpack.c.h.b16 %v293
      %v452 = vunpack.c.l.b16 %v294
      %v453 = vunpack.c.h.b16 %v294
      %v454 = vunpack.c.l.b16 %v295
      %v455 = vunpack.c.l.b16 %v296
      %v456 = vunpack.c.h.b16 %v296
      %v457 = vunpack.c.l.b16 %v297
      %v458 = vunpack.c.h.b16 %v297
      %v459 = vunpack.c.l.b16 %v298
      %v460 = vunpack.c.l.b16 %v299
      %v461 = vunpack.c.h.b16 %v299
      %v462 = vunpack.c.l.b16 %v300
      %v463 = vunpack.c.h.b16 %v300
      %v464 = vunpack.c.l.b16 %v301
      %v465 = vunpack.c.l.b16 %v302
      %v466 = vunpack.c.h.b16 %v302
      %v467 = vunpack.c.l.b16 %v303
      %v468 = vunpack.c.h.b16 %v303
      %v469 = vunpack.c.l.b16 %v304
      %v470 = vunpack.c.l.b16 %v305
      %v471 = vunpack.c.h.b16 %v305
      %v472 = vunpack.c.l.b16 %v306
      %v473 = vunpack.c.h.b16 %v306
      %v474 = vunpack.c.l.b16 %v307
      %v475 = vunpack.c.l.b16 %v308
      %v476 = vunpack.c.h.b16 %v308
      %v477 = vunpack.c.l.b16 %v309
      %v478 = vunpack.c.h.b16 %v309
      %v479 = vunpack.c.l.b16 %v310
      %v480 = vunpack.c.l.b16 %v311
      %v481 = vunpack.c.h.b16 %v311
      %v482 = vunpack.c.l.b16 %v312
      %v483 = vunpack.c.h.b16 %v312
      %v484 = vunpack.c.l.b16 %v313
      %v485 = vunpack.c.l.b16 %v314
      %v486 = vunpack.c.h.b16 %v314
      %v487 = vunpack.c.l.b16 %v315
      %v488 = vunpack.c.h.b16 %v315
      %v489 = vunpack.c.l.b16 %v316
      %v490 = vunpack.c.l.b16 %v317
      %v491 = vunpack.c.h.b16 %v317
      %v492 = vunpack.c.l.b16 %v318
      %v493 = vunpack.c.h.b16 %v318
      %v494 = vunpack.c.l.b16 %v319
      %v495 = vunpack.c.l.b16 %v320
      %v496 = vunpack.c.h.b16 %v320
      %v497 = vunpack.c.l.b16 %v321
      %v498 = vunpack.c.h.b16 %v321
      %v499 = vunpack.c.l.b16 %v322
      %v500 = vunpack.c.l.b16 %v323
      %v501 = vunpack.c.h.b16 %v323
      %v502 = vunpack.c.l.b16 %v324
      %v503 = vunpack.c.h.b16 %v324
      %v504 = vunpack.c.l.b16 %v325
      %v505 = vunpack.c.l.b16 %v326
      %v506 = vunpack.c.h.b16 %v326
      %v507 = vunpack.c.l.b16 %v327
      %v508 = vunpack.c.h.b16 %v327
      %v509 = vunpack.c.l.b16 %v328
      %v510 = vunpack.c.l.b16 %v329
      %v511 = vunpack.c.h.b16 %v329
      %v512 = vunpack.c.l.b16 %v330
      %v513 = vunpack.c.h.b16 %v330
      %v514 = vunpack.c.l.b16 %v331
      %v515 = vunpack.c.l.b16 %v332
      %v516 = vunpack.c.h.b16 %v332
      %v517 = vunpack.c.l.b16 %v333
      %v518 = vunpack.c.h.b16 %v333
      %v519 = vunpack.c.l.b16 %v334
      %v520 = vunpack.c.l.b16 %v335
      %v521 = vunpack.c.h.b16 %v335
      %v522 = vunpack.c.l.b16 %v336
      %v523 = vunpack.c.h.b16 %v336
      %v524 = vunpack.c.l.b16 %v337
      %v525 = vunpack.c.l.b16 %v338
      %v526 = vunpack.c.h.b16 %v338
      %v527 = vunpack.c.l.b16 %v339
      %v528 = vunpack.c.h.b16 %v339
      %v529 = vunpack.c.l.b16 %v340
      %v530 = vunpack.c.l.b16 %v341
      %v531 = vunpack.c.h.b16 %v341
      %v532 = vunpack.c.l.b16 %v342
      %v533 = vunpack.c.h.b16 %v342
      %v534 = vunpack.c.l.b16 %v343
      %v535 = vunpack.c.l.b16 %v344
      %v536 = vunpack.c.h.b16 %v344
      %v537 = vunpack.c.l.b16 %v345
      %v538 = vunpack.c.h.b16 %v345
      %v539 = vunpack.c.l.b16 %v346
      %v540 = vunpack.c.l.b16 %v347
      %v541 = vunpack.c.h.b16 %v347
      %v542 = vunpack.c.l.b16 %v348
      %v543 = vunpack.c.h.b16 %v348
      %v544 = vunpack.c.l.b16 %v349
      %v545 = vunpack.c.l.b16 %v350
      %v546 = vunpack.c.h.b16 %v350
      %v547 = vunpack.c.l.b16 %v351
      %v548 = vunpack.c.h.b16 %v351
      %v549 = vunpack.c.l.b16 %v352
      %v550 = vunpack.c.l.b16 %v353
      %v551 = vunpack.c.h.b16 %v353
      %v552 = vunpack.c.l.b16 %v354
      %v553 = vunpack.c.h.b16 %v354
      %v554 = vunpack.c.l.b16 %v355
      %v555 = vunpack.c.l.b16 %v356
      %v556 = vunpack.c.h.b16 %v356
      %v557 = vunpack.c.l.b16 %v357
      %v558 = vunpack.c.h.b16 %v357
      %v559 = vunpack.c.l.b16 %v358
      %v560 = vpack.c.b16 %v445, %v440
      %v561 = vpack.c.b16 %v446, %v441
      %v562 = vpack.c.b16 %v447, %v442
      %v563 = vpack.c.b16 %v448, %v443
      %v564 = vpack.c.b16 %v449, %v444
      %v565 = vpack.c.b16 %v455, %v450
      %v566 = vpack.c.b16 %v456, %v451
      %v567 = vpack.c.b16 %v457, %v452
      %v568 = vpack.c.b16 %v458, %v453
      %v569 = vpack.c.b16 %v459, %v454
      %v570 = vpack.c.b16 %v465, %v460
      %v571 = vpack.c.b16 %v466, %v461
      %v572 = vpack.c.b16 %v467, %v462
      %v573 = vpack.c.b16 %v468, %v463
      %v574 = vpack.c.b16 %v469, %v464
      %v575 = vpack.c.b16 %v475, %v470
      %v576 = vpack.c.b16 %v476, %v471
      %v577 = vpack.c.b16 %v477, %v472
      %v578 = vpack.c.b16 %v478, %v473
      %v579 = vpack.c.b16 %v479, %v474
      %v580 = vpack.c.b16 %v485, %v480
      %v581 = vpack.c.b16 %v486, %v481
      %v582 = vpack.c.b16 %v487, %v482
      %v583 = vpack.c.b16 %v488, %v483
      %v584 = vpack.c.b16 %v489, %v484
      %v585 = vpack.c.b16 %v495, %v490
      %v586 = vpack.c.b16 %v496, %v491
      %v587 = vpack.c.b16 %v497, %v492
      %v588 = vpack.c.b16 %v498, %v493
      %v589 = vpack.c.b16 %v499, %v494
      %v590 = vpack.c.b16 %v505, %v500
      %v591 = vpack.c.b16 %v506, %v501
      %v592 = vpack.c.b16 %v507, %v502
      %v593 = vpack.c.b16 %v508, %v503
      %v594 = vpack.c.b16 %v509, %v504
      %v595 = vpack.c.b16 %v515, %v510
      %v596 = vpack.c.b16 %v516, %v511
      %v597 = vpack.c.b16 %v517, %v512
      %v598 = vpack.c.b16 %v518, %v513
      %v599 = vpack.c.b16 %v519, %v514
      %v600 = vpack.c.b16 %v525, %v520
      %v601 = vpack.c.b16 %v526, %v521
      %v602 = vpack.c.b16 %v527, %v522
      %v603 = vpack.c.b16 %v528, %v523
      %v604 = vpack.c.b16 %v529, %v524
      %v605 = vpack.c.b16 %v535, %v530
      %v606 = vpack.c.b16 %v536, %v531
      %v607 = vpack.c.b16 %v537, %v532
      %v608 = vpack.c.b16 %v538, %v533
      %v609 = vpack.c.b16 %v539, %v534
      %v610 = vpack.c.b16 %v545, %v540
      %v611 = vpack.c.b16 %v546, %v541
      %v612 = vpack.c.b16 %v547, %v542
      %v613 = vpack.c.b16 %v548, %v543
      %v614 = vpack.c.b16 %v549, %v544
      %v615 = vpack.c.b16 %v555, %v550
      %v616 = vpack.c.b16 %v556, %v551
      %v617 = vpack.c.b16 %v557, %v552
      %v618 = vpack.c.b16 %v558, %v553
      %v619 = vpack.c.b16 %v559, %v554
      %vm680 = vcmask 523264
      %v682 = vsel %vm680, %v366, 0
      %684 = vmatprep.subr.bf16.mxu0 %v596
      %685 = vmatpush1.bf16.msra.mxu0 %v595
      %686 = vmatprep.subr.bf16.mxu0 %v591
      %687 = vmatpush1.bf16.msra.mxu0 %v590
      %688 = vmatprep.subr.bf16.mxu0 %v586
      %689 = vmatpush1.bf16.msra.mxu0 %v585
      %690 = vmatprep.subr.bf16.mxu0 %v581
      %691 = vmatpush1.bf16.msra.mxu0 %v580
      %692 = vmatprep.subr.bf16.mxu0 %v576
      %693 = vmatpush1.bf16.msra.mxu0 %v575
      %694 = vmatprep.subr.bf16.mxu0 %v571
      %695 = vmatpush1.bf16.msra.mxu0 %v570
      %696 = vmatprep.subr.bf16.mxu0 %v566
      %697 = vmatpush1.bf16.msra.mxu0 %v565
      %698 = vmatprep.subr.bf16.mxu0 %v561
      %699 = vmatpush1.bf16.msra.mxu0 %v560
      %700 = vmatprep.subr.bf16.mxu0 0
      %701 = vmatpush2.bf16.msra.mxu0 0
      %702 = vmatprep.subr.bf16.mxu0 0
      %703 = vmatpush2.bf16.msra.mxu0 0
      %704 = vmatprep.subr.bf16.mxu0 0
      %705 = vmatpush2.bf16.msra.mxu0 0
      %706 = vmatprep.subr.bf16.mxu0 0
      %707 = vmatpush2.bf16.msra.mxu0 0
      %708 = vmatprep.subr.bf16.mxu0 %v616
      %709 = vmatpush2.bf16.msra.mxu0 %v615
      %710 = vmatprep.subr.bf16.mxu0 %v611
      %711 = vmatpush2.bf16.msra.mxu0 %v610
      %712 = vmatprep.subr.bf16.mxu0 %v606
      %713 = vmatpush2.bf16.msra.mxu0 %v605
      %714 = vmatprep.subr.bf16.mxu0 %v601
      %715 = vmatpush2.bf16.msra.mxu0 %v600
      %716 = vmatprep.mubr.bf16.mxu0 %v682
      %717 = vmatmul.mubr.bf16.gmra.mxu0 %v365
      %v718 = vpop.f32.mrf.mxu0
      %v719 = vadd.f32 0.0, %v718
      %v720 = vpop.f32.mrf.mxu0
      %v721 = vadd.f32 0.0, %v720
      %v722 = vpop.f32.mrf.mxu0
      %v723 = vadd.f32 0.0, %v722
      %v724 = vpop.f32.mrf.mxu0
      %v725 = vadd.f32 0.0, %v724
      %726 = vdwg.mxu0
      %727 = vmatprep.subr.bf16.mxu0 %v598
      %728 = vmatpush1.bf16.msra.mxu0 %v597
      %729 = vmatprep.subr.bf16.mxu0 %v593
      %730 = vmatpush1.bf16.msra.mxu0 %v592
      %731 = vmatprep.subr.bf16.mxu0 %v588
      %732 = vmatpush1.bf16.msra.mxu0 %v587
      %733 = vmatprep.subr.bf16.mxu0 %v583
      %734 = vmatpush1.bf16.msra.mxu0 %v582
      %735 = vmatprep.subr.bf16.mxu0 %v578
      %736 = vmatpush1.bf16.msra.mxu0 %v577
      %737 = vmatprep.subr.bf16.mxu0 %v573
      %738 = vmatpush1.bf16.msra.mxu0 %v572
      %739 = vmatprep.subr.bf16.mxu0 %v568
      %740 = vmatpush1.bf16.msra.mxu0 %v567
      %741 = vmatprep.subr.bf16.mxu0 %v563
      %742 = vmatpush1.bf16.msra.mxu0 %v562
      %743 = vmatprep.subr.bf16.mxu0 0
      %744 = vmatpush2.bf16.msra.mxu0 0
      %745 = vmatprep.subr.bf16.mxu0 0
      %746 = vmatpush2.bf16.msra.mxu0 0
      %747 = vmatprep.subr.bf16.mxu0 0
      %748 = vmatpush2.bf16.msra.mxu0 0
      %749 = vmatprep.subr.bf16.mxu0 0
      %750 = vmatpush2.bf16.msra.mxu0 0
      %751 = vmatprep.subr.bf16.mxu0 %v618
      %752 = vmatpush2.bf16.msra.mxu0 %v617
      %753 = vmatprep.subr.bf16.mxu0 %v613
      %754 = vmatpush2.bf16.msra.mxu0 %v612
      %755 = vmatprep.subr.bf16.mxu0 %v608
      %756 = vmatpush2.bf16.msra.mxu0 %v607
      %757 = vmatprep.subr.bf16.mxu0 %v603
      %758 = vmatpush2.bf16.msra.mxu0 %v602
      %759 = vmatprep.mubr.bf16.mxu0 %v682
      %760 = vmatmul.mubr.bf16.gmra.mxu0 %v365
      %v761 = vpop.f32.mrf.mxu0
      %v762 = vadd.f32 0.0, %v761
      %v763 = vpop.f32.mrf.mxu0
      %v764 = vadd.f32 0.0, %v763
      %v765 = vpop.f32.mrf.mxu0
      %v766 = vadd.f32 0.0, %v765
      %v767 = vpop.f32.mrf.mxu0
      %v768 = vadd.f32 0.0, %v767
      %769 = vdwg.mxu0
      %770 = vmatprep.subr.bf16.mxu0 0
      %771 = vmatpush1.bf16.msra.mxu0 %v599
      %772 = vmatprep.subr.bf16.mxu0 0
      %773 = vmatpush1.bf16.msra.mxu0 %v594
      %774 = vmatprep.subr.bf16.mxu0 0
      %775 = vmatpush1.bf16.msra.mxu0 %v589
      %776 = vmatprep.subr.bf16.mxu0 0
      %777 = vmatpush1.bf16.msra.mxu0 %v584
      %778 = vmatprep.subr.bf16.mxu0 0
      %779 = vmatpush1.bf16.msra.mxu0 %v579
      %780 = vmatprep.subr.bf16.mxu0 0
      %781 = vmatpush1.bf16.msra.mxu0 %v574
      %782 = vmatprep.subr.bf16.mxu0 0
      %783 = vmatpush1.bf16.msra.mxu0 %v569
      %784 = vmatprep.subr.bf16.mxu0 0
      %785 = vmatpush1.bf16.msra.mxu0 %v564
      %786 = vmatprep.subr.bf16.mxu0 0
      %787 = vmatpush2.bf16.msra.mxu0 0
      %788 = vmatprep.subr.bf16.mxu0 0
      %789 = vmatpush2.bf16.msra.mxu0 0
      %790 = vmatprep.subr.bf16.mxu0 0
      %791 = vmatpush2.bf16.msra.mxu0 0
      %792 = vmatprep.subr.bf16.mxu0 0
      %793 = vmatpush2.bf16.msra.mxu0 0
      %794 = vmatprep.subr.bf16.mxu0 0
      %795 = vmatpush2.bf16.msra.mxu0 %v619
      %796 = vmatprep.subr.bf16.mxu0 0
      %797 = vmatpush2.bf16.msra.mxu0 %v614
      %798 = vmatprep.subr.bf16.mxu0 0
      %799 = vmatpush2.bf16.msra.mxu0 %v609
      %800 = vmatprep.subr.bf16.mxu0 0
      %801 = vmatpush2.bf16.msra.mxu0 %v604
      %802 = vmatprep.mubr.bf16.mxu0 %v682
      %803 = vmatmul.mubr.bf16.gmra.mxu0 %v365
      %v804 = vpop.f32.mrf.mxu0
      %v805 = vadd.f32 0.0, %v804
      %v806 = vpop.f32.mrf.mxu0
      %v807 = vpop.f32.mrf.mxu0
      %v808 = vadd.f32 0.0, %v807
      %v809 = vpop.f32.mrf.mxu0
      %810 = vdwg.mxu0
      %v811 = vpack.c.bf16 %v723, %v719
      %v812 = vpack.c.bf16 %v725, %v721
      %v813 = vpack.c.bf16 %v768, %v764
      %v814 = vpack.c.bf16 %v808, %v805
      %v816 = vunpack.c.l.b16 %v811
      %v817 = vunpack.c.h.b16 %v811
      %v818 = vpack.c.b16 %v816, %v816
      %v819 = vpack.c.b16 %v817, %v817
      %vm822 = vcmask 257024
      %823 = vst.msk [vmem:[%s264] sm:$0xf] %vm822, %v818
      %824 = vst.msk [vmem:[%s264 + $0x4] sm:$0xf] %vm822, %v819
      %827 = vrot.lane.b32.xlu0 %v721, 64
      %v828 = vpop.permute.xlu0 %827
      %829 = vrot.lane.b32.xlu0 %v725, 64
      %v830 = vpop.permute.xlu0 %829
      %833 = vxpose.xlu0.b32.start [1/16] %v828, 128
      %834 = vxpose.xlu0.b32.cont [2/16] %v830, 128
      %835 = vxpose.xlu0.b32.cont [3/16] 0.0, 128
      %836 = vxpose.xlu0.b32.cont [4/16] 0.0, 128
      %837 = vxpose.xlu0.b32.cont [5/16] 0.0, 128
      %838 = vxpose.xlu0.b32.cont [6/16] 0.0, 128
      %839 = vxpose.xlu0.b32.cont [7/16] 0.0, 128
      %840 = vxpose.xlu0.b32.cont [8/16] 0.0, 128
      %841 = vxpose.xlu0.b32.cont [9/16] 0.0, 128
      %842 = vxpose.xlu0.b32.cont [10/16] 0.0, 128
      %843 = vxpose.xlu0.b32.cont [11/16] 0.0, 128
      %844 = vxpose.xlu0.b32.cont [12/16] 0.0, 128
      %845 = vxpose.xlu0.b32.cont [13/16] 0.0, 128
      %846 = vxpose.xlu0.b32.cont [14/16] 0.0, 128
      %847 = vxpose.xlu0.b32.cont [15/16] 0.0, 128
      %848 = vxpose.xlu0.b32.end [16/16] 0.0, 128
      %v849 = vpop.trf.xlu0
      %v850 = vpop.trf.xlu0
      %v851 = vpop.trf.xlu0
      %v852 = vpop.trf.xlu0
      %v853 = vpop.trf.xlu0
      %v854 = vpop.trf.xlu0
      %v855 = vpop.trf.xlu0
      %v856 = vpop.trf.xlu0
      %v857 = vpop.trf.xlu0
      %v858 = vpop.trf.xlu0
      %v859 = vpop.trf.xlu0
      %v860 = vpop.trf.xlu0
      %v861 = vpop.trf.xlu0
      %v862 = vpop.trf.xlu0
      %v863 = vpop.trf.xlu0
      %v864 = vpop.trf.xlu0
      %v865 = vpack.c.bf16 %v850, %v849
      %v866 = vpack.c.bf16 %v852, %v851
      %v869 = vunpack.c.l.b16 %v865
      %v870 = vunpack.c.h.b16 %v865
      %v871 = vunpack.c.l.b16 %v866
      %v872 = vunpack.c.h.b16 %v866
      %v873 = vpack.c.b16 %v869, %v869
      %v874 = vpack.c.b16 %v870, %v870
      %v875 = vpack.c.b16 %v871, %v871
      %v876 = vpack.c.b16 %v872, %v872
      %vm881 = vcmask 125952
      %882 = vst.msk [vmem:[%s273] sm:$0xf] %vm881, %v873
      %883 = vst.msk [vmem:[%s273 + $0x4] sm:$0xf] %vm881, %v874
      %884 = vst.msk [vmem:[%s273 + $0x8] sm:$0xf] %vm881, %v875
      %885 = vst.msk [vmem:[%s273 + $0xc] sm:$0xf] %vm881, %v876
      %v887 = vunpack.c.l.b16 %v813
      %v888 = vunpack.c.h.b16 %v813
      %v889 = vpack.c.b16 %v887, %v887
      %v890 = vpack.c.b16 %v888, %v888
      %893 = vst.msk [vmem:[%s282] sm:$0xf] %vm822, %v889
      %894 = vst.msk [vmem:[%s282 + $0x4] sm:$0xf] %vm822, %v890
      %895 = vrot.lane.b32.xlu0 %v818, 96
      %v896 = vpop.permute.xlu0 %895
      %897 = vrot.lane.b32.xlu0 %v819, 96
      %v898 = vpop.permute.xlu0 %897
      %s901 = scalar_lea.vmem %s264, 8
      %902 = vst.msk [vmem:[%s901] sm:$0xf] %vm822, %v896
      %903 = vst.msk [vmem:[%s901 + $0x4] sm:$0xf] %vm822, %v898
      %904 = vrot.lane.b32.xlu0 %v721, 32
      %v905 = vpop.permute.xlu0 %904
      %906 = vrot.lane.b32.xlu0 %v725, 32
      %v907 = vpop.permute.xlu0 %906
      %910 = vxpose.xlu0.b32.start [1/16] %v905, 128
      %911 = vxpose.xlu0.b32.cont [2/16] %v907, 128
      %912 = vxpose.xlu0.b32.cont [3/16] 0.0, 128
      %913 = vxpose.xlu0.b32.cont [4/16] 0.0, 128
      %914 = vxpose.xlu0.b32.cont [5/16] 0.0, 128
      %915 = vxpose.xlu0.b32.cont [6/16] 0.0, 128
      %916 = vxpose.xlu0.b32.cont [7/16] 0.0, 128
      %917 = vxpose.xlu0.b32.cont [8/16] 0.0, 128
      %918 = vxpose.xlu0.b32.cont [9/16] 0.0, 128
      %919 = vxpose.xlu0.b32.cont [10/16] 0.0, 128
      %920 = vxpose.xlu0.b32.cont [11/16] 0.0, 128
      %921 = vxpose.xlu0.b32.cont [12/16] 0.0, 128
      %922 = vxpose.xlu0.b32.cont [13/16] 0.0, 128
      %923 = vxpose.xlu0.b32.cont [14/16] 0.0, 128
      %924 = vxpose.xlu0.b32.cont [15/16] 0.0, 128
      %925 = vxpose.xlu0.b32.end [16/16] 0.0, 128
      %v926 = vpop.trf.xlu0
      %v927 = vpop.trf.xlu0
      %v928 = vpop.trf.xlu0
      %v929 = vpop.trf.xlu0
      %v930 = vpop.trf.xlu0
      %v931 = vpop.trf.xlu0
      %v932 = vpop.trf.xlu0
      %v933 = vpop.trf.xlu0
      %v934 = vpop.trf.xlu0
      %v935 = vpop.trf.xlu0
      %v936 = vpop.trf.xlu0
      %v937 = vpop.trf.xlu0
      %v938 = vpop.trf.xlu0
      %v939 = vpop.trf.xlu0
      %v940 = vpop.trf.xlu0
      %v941 = vpop.trf.xlu0
      %v942 = vpack.c.bf16 %v927, %v926
      %v943 = vpack.c.bf16 %v929, %v928
      %v946 = vunpack.c.l.b16 %v942
      %v947 = vunpack.c.h.b16 %v942
      %v948 = vunpack.c.l.b16 %v943
      %v949 = vunpack.c.h.b16 %v943
      %v950 = vpack.c.b16 %v946, %v946
      %v951 = vpack.c.b16 %v947, %v947
      %v952 = vpack.c.b16 %v948, %v948
      %v953 = vpack.c.b16 %v949, %v949
      %s958 = scalar_lea.vmem %s273, 16
      %959 = vst.msk [vmem:[%s958] sm:$0xf] %vm881, %v950
      %960 = vst.msk [vmem:[%s958 + $0x4] sm:$0xf] %vm881, %v951
      %961 = vst.msk [vmem:[%s958 + $0x8] sm:$0xf] %vm881, %v952
      %962 = vst.msk [vmem:[%s958 + $0xc] sm:$0xf] %vm881, %v953
      %963 = vrot.lane.b32.xlu0 %v889, 96
      %v964 = vpop.permute.xlu0 %963
      %965 = vrot.lane.b32.xlu0 %v890, 96
      %v966 = vpop.permute.xlu0 %965
      %s969 = scalar_lea.vmem %s282, 8
      %970 = vst.msk [vmem:[%s969] sm:$0xf] %vm822, %v964
      %971 = vst.msk [vmem:[%s969 + $0x4] sm:$0xf] %vm822, %v966
      %972 = vrot.lane.b32.xlu0 %v818, 64
      %v973 = vpop.permute.xlu0 %972
      %974 = vrot.lane.b32.xlu0 %v819, 64
      %v975 = vpop.permute.xlu0 %974
      %s978 = scalar_lea.vmem %s264, 16
      %979 = vst.msk [vmem:[%s978] sm:$0xf] %vm822, %v973
      %980 = vst.msk [vmem:[%s978 + $0x4] sm:$0xf] %vm822, %v975
      %981 = vxpose.xlu0.b32.start [1/16] %v762, 128
      %982 = vxpose.xlu0.b32.cont [2/16] %v766, 128
      %983 = vxpose.xlu0.b32.cont [3/16] 0.0, 128
      %984 = vxpose.xlu0.b32.cont [4/16] 0.0, 128
      %985 = vxpose.xlu0.b32.cont [5/16] 0.0, 128
      %986 = vxpose.xlu0.b32.cont [6/16] 0.0, 128
      %987 = vxpose.xlu0.b32.cont [7/16] 0.0, 128
      %988 = vxpose.xlu0.b32.cont [8/16] 0.0, 128
      %989 = vxpose.xlu0.b32.cont [9/16] 0.0, 128
      %990 = vxpose.xlu0.b32.cont [10/16] 0.0, 128
      %991 = vxpose.xlu0.b32.cont [11/16] 0.0, 128
      %992 = vxpose.xlu0.b32.cont [12/16] 0.0, 128
      %993 = vxpose.xlu0.b32.cont [13/16] 0.0, 128
      %994 = vxpose.xlu0.b32.cont [14/16] 0.0, 128
      %995 = vxpose.xlu0.b32.cont [15/16] 0.0, 128
      %996 = vxpose.xlu0.b32.end [16/16] 0.0, 128
      %v997 = vpop.trf.xlu0
      %v998 = vpop.trf.xlu0
      %v999 = vpop.trf.xlu0
      %v1000 = vpop.trf.xlu0
      %v1001 = vpop.trf.xlu0
      %v1002 = vpop.trf.xlu0
      %v1003 = vpop.trf.xlu0
      %v1004 = vpop.trf.xlu0
      %v1005 = vpop.trf.xlu0
      %v1006 = vpop.trf.xlu0
      %v1007 = vpop.trf.xlu0
      %v1008 = vpop.trf.xlu0
      %v1009 = vpop.trf.xlu0
      %v1010 = vpop.trf.xlu0
      %v1011 = vpop.trf.xlu0
      %v1012 = vpop.trf.xlu0
      %v1013 = vpack.c.bf16 %v998, %v997
      %v1014 = vpack.c.bf16 %v1000, %v999
      %v1017 = vunpack.c.l.b16 %v1013
      %v1018 = vunpack.c.h.b16 %v1013
      %v1019 = vunpack.c.l.b16 %v1014
      %v1020 = vunpack.c.h.b16 %v1014
      %v1021 = vpack.c.b16 %v1017, %v1017
      %v1022 = vpack.c.b16 %v1018, %v1018
      %v1023 = vpack.c.b16 %v1019, %v1019
      %v1024 = vpack.c.b16 %v1020, %v1020
      %s1029 = scalar_lea.vmem %s273, 32
      %1030 = vst.msk [vmem:[%s1029] sm:$0xf] %vm881, %v1021
      %1031 = vst.msk [vmem:[%s1029 + $0x4] sm:$0xf] %vm881, %v1022
      %1032 = vst.msk [vmem:[%s1029 + $0x8] sm:$0xf] %vm881, %v1023
      %1033 = vst.msk [vmem:[%s1029 + $0xc] sm:$0xf] %vm881, %v1024
      %1034 = vrot.lane.b32.xlu0 %v889, 64
      %v1035 = vpop.permute.xlu0 %1034
      %1036 = vrot.lane.b32.xlu0 %v890, 64
      %v1037 = vpop.permute.xlu0 %1036
      %s1040 = scalar_lea.vmem %s282, 16
      %1041 = vst.msk [vmem:[%s1040] sm:$0xf] %vm822, %v1035
      %1042 = vst.msk [vmem:[%s1040 + $0x4] sm:$0xf] %vm822, %v1037
      %1043 = vrot.lane.b32.xlu0 %v818, 32
      %v1044 = vpop.permute.xlu0 %1043
      %1045 = vrot.lane.b32.xlu0 %v819, 32
      %v1046 = vpop.permute.xlu0 %1045
      %s1049 = scalar_lea.vmem %s264, 24
      %1050 = vst.msk [vmem:[%s1049] sm:$0xf] %vm822, %v1044
      %1051 = vst.msk [vmem:[%s1049 + $0x4] sm:$0xf] %vm822, %v1046
      %1054 = vrot.lane.b32.xlu0 %v762, 96
      %v1055 = vpop.permute.xlu0 %1054
      %1056 = vrot.lane.b32.xlu0 %v766, 96
      %v1057 = vpop.permute.xlu0 %1056
      %1060 = vxpose.xlu0.b32.start [1/16] %v1055, 128
      %1061 = vxpose.xlu0.b32.cont [2/16] %v1057, 128
      %1062 = vxpose.xlu0.b32.cont [3/16] 0.0, 128
      %1063 = vxpose.xlu0.b32.cont [4/16] 0.0, 128
      %1064 = vxpose.xlu0.b32.cont [5/16] 0.0, 128
      %1065 = vxpose.xlu0.b32.cont [6/16] 0.0, 128
      %1066 = vxpose.xlu0.b32.cont [7/16] 0.0, 128
      %1067 = vxpose.xlu0.b32.cont [8/16] 0.0, 128
      %1068 = vxpose.xlu0.b32.cont [9/16] 0.0, 128
      %1069 = vxpose.xlu0.b32.cont [10/16] 0.0, 128
      %1070 = vxpose.xlu0.b32.cont [11/16] 0.0, 128
      %1071 = vxpose.xlu0.b32.cont [12/16] 0.0, 128
      %1072 = vxpose.xlu0.b32.cont [13/16] 0.0, 128
      %1073 = vxpose.xlu0.b32.cont [14/16] 0.0, 128
      %1074 = vxpose.xlu0.b32.cont [15/16] 0.0, 128
      %1075 = vxpose.xlu0.b32.end [16/16] 0.0, 128
      %v1076 = vpop.trf.xlu0
      %v1077 = vpop.trf.xlu0
      %v1078 = vpop.trf.xlu0
      %v1079 = vpop.trf.xlu0
      %v1080 = vpop.trf.xlu0
      %v1081 = vpop.trf.xlu0
      %v1082 = vpop.trf.xlu0
      %v1083 = vpop.trf.xlu0
      %v1084 = vpop.trf.xlu0
      %v1085 = vpop.trf.xlu0
      %v1086 = vpop.trf.xlu0
      %v1087 = vpop.trf.xlu0
      %v1088 = vpop.trf.xlu0
      %v1089 = vpop.trf.xlu0
      %v1090 = vpop.trf.xlu0
      %v1091 = vpop.trf.xlu0
      %v1092 = vpack.c.bf16 %v1077, %v1076
      %v1093 = vpack.c.bf16 %v1079, %v1078
      %v1096 = vunpack.c.l.b16 %v1092
      %v1097 = vunpack.c.h.b16 %v1092
      %v1098 = vunpack.c.l.b16 %v1093
      %v1099 = vunpack.c.h.b16 %v1093
      %v1100 = vpack.c.b16 %v1096, %v1096
      %v1101 = vpack.c.b16 %v1097, %v1097
      %v1102 = vpack.c.b16 %v1098, %v1098
      %v1103 = vpack.c.b16 %v1099, %v1099
      %s1108 = scalar_lea.vmem %s273, 48
      %1109 = vst.msk [vmem:[%s1108] sm:$0xf] %vm881, %v1100
      %1110 = vst.msk [vmem:[%s1108 + $0x4] sm:$0xf] %vm881, %v1101
      %1111 = vst.msk [vmem:[%s1108 + $0x8] sm:$0xf] %vm881, %v1102
      %1112 = vst.msk [vmem:[%s1108 + $0xc] sm:$0xf] %vm881, %v1103
      %1113 = vrot.lane.b32.xlu0 %v889, 32
      %v1114 = vpop.permute.xlu0 %1113
      %1115 = vrot.lane.b32.xlu0 %v890, 32
      %v1116 = vpop.permute.xlu0 %1115
      %s1119 = scalar_lea.vmem %s282, 24
      %1120 = vst.msk [vmem:[%s1119] sm:$0xf] %vm822, %v1114
      %1121 = vst.msk [vmem:[%s1119 + $0x4] sm:$0xf] %vm822, %v1116
      %v1123 = vunpack.c.l.b16 %v812
      %v1124 = vunpack.c.h.b16 %v812
      %v1125 = vpack.c.b16 %v1123, %v1123
      %v1126 = vpack.c.b16 %v1124, %v1124
      %s1129 = scalar_lea.vmem %s264, 32
      %1130 = vst.msk [vmem:[%s1129] sm:$0xf] %vm822, %v1125
      %1131 = vst.msk [vmem:[%s1129 + $0x4] sm:$0xf] %vm822, %v1126
      %1132 = vrot.lane.b32.xlu0 %v762, 64
      %v1133 = vpop.permute.xlu0 %1132
      %1134 = vrot.lane.b32.xlu0 %v766, 64
      %v1135 = vpop.permute.xlu0 %1134
      %1138 = vxpose.xlu0.b32.start [1/16] %v1133, 128
      %1139 = vxpose.xlu0.b32.cont [2/16] %v1135, 128
      %1140 = vxpose.xlu0.b32.cont [3/16] 0.0, 128
      %1141 = vxpose.xlu0.b32.cont [4/16] 0.0, 128
      %1142 = vxpose.xlu0.b32.cont [5/16] 0.0, 128
      %1143 = vxpose.xlu0.b32.cont [6/16] 0.0, 128
      %1144 = vxpose.xlu0.b32.cont [7/16] 0.0, 128
      %1145 = vxpose.xlu0.b32.cont [8/16] 0.0, 128
      %1146 = vxpose.xlu0.b32.cont [9/16] 0.0, 128
      %1147 = vxpose.xlu0.b32.cont [10/16] 0.0, 128
      %1148 = vxpose.xlu0.b32.cont [11/16] 0.0, 128
      %1149 = vxpose.xlu0.b32.cont [12/16] 0.0, 128
      %1150 = vxpose.xlu0.b32.cont [13/16] 0.0, 128
      %1151 = vxpose.xlu0.b32.cont [14/16] 0.0, 128
      %1152 = vxpose.xlu0.b32.cont [15/16] 0.0, 128
      %1153 = vxpose.xlu0.b32.end [16/16] 0.0, 128
      %v1154 = vpop.trf.xlu0
      %v1155 = vpop.trf.xlu0
      %v1156 = vpop.trf.xlu0
      %v1157 = vpop.trf.xlu0
      %v1158 = vpop.trf.xlu0
      %v1159 = vpop.trf.xlu0
      %v1160 = vpop.trf.xlu0
      %v1161 = vpop.trf.xlu0
      %v1162 = vpop.trf.xlu0
      %v1163 = vpop.trf.xlu0
      %v1164 = vpop.trf.xlu0
      %v1165 = vpop.trf.xlu0
      %v1166 = vpop.trf.xlu0
      %v1167 = vpop.trf.xlu0
      %v1168 = vpop.trf.xlu0
      %v1169 = vpop.trf.xlu0
      %v1170 = vpack.c.bf16 %v1155, %v1154
      %v1171 = vpack.c.bf16 %v1157, %v1156
      %v1174 = vunpack.c.l.b16 %v1170
      %v1175 = vunpack.c.h.b16 %v1170
      %v1176 = vunpack.c.l.b16 %v1171
      %v1177 = vunpack.c.h.b16 %v1171
      %v1178 = vpack.c.b16 %v1174, %v1174
      %v1179 = vpack.c.b16 %v1175, %v1175
      %v1180 = vpack.c.b16 %v1176, %v1176
      %v1181 = vpack.c.b16 %v1177, %v1177
      %s1186 = scalar_lea.vmem %s273, 64
      %1187 = vst.msk [vmem:[%s1186] sm:$0xf] %vm881, %v1178
      %1188 = vst.msk [vmem:[%s1186 + $0x4] sm:$0xf] %vm881, %v1179
      %1189 = vst.msk [vmem:[%s1186 + $0x8] sm:$0xf] %vm881, %v1180
      %1190 = vst.msk [vmem:[%s1186 + $0xc] sm:$0xf] %vm881, %v1181
      %v1192 = vunpack.c.l.b16 %v814
      %v1193 = vunpack.c.h.b16 %v814
      %v1194 = vpack.c.b16 %v1192, %v1192
      %v1195 = vpack.c.b16 %v1193, %v1193
      %s1198 = scalar_lea.vmem %s282, 32
      %1199 = vst.msk [vmem:[%s1198] sm:$0xf] %vm822, %v1194
      %1200 = vst.msk [vmem:[%s1198 + $0x4] sm:$0xf] %vm822, %v1195
      %1201 = vrot.lane.b32.xlu0 %v1125, 96
      %v1202 = vpop.permute.xlu0 %1201
      %1203 = vrot.lane.b32.xlu0 %v1126, 96
      %v1204 = vpop.permute.xlu0 %1203
      %s1207 = scalar_lea.vmem %s264, 40
      %1208 = vst.msk [vmem:[%s1207] sm:$0xf] %vm822, %v1202
      %1209 = vst.msk [vmem:[%s1207 + $0x4] sm:$0xf] %vm822, %v1204
      %1210 = vrot.lane.b32.xlu0 %v762, 32
      %v1211 = vpop.permute.xlu0 %1210
      %1212 = vrot.lane.b32.xlu0 %v766, 32
      %v1213 = vpop.permute.xlu0 %1212
      %1216 = vxpose.xlu0.b32.start [1/16] %v1211, 128
      %1217 = vxpose.xlu0.b32.cont [2/16] %v1213, 128
      %1218 = vxpose.xlu0.b32.cont [3/16] 0.0, 128
      %1219 = vxpose.xlu0.b32.cont [4/16] 0.0, 128
      %1220 = vxpose.xlu0.b32.cont [5/16] 0.0, 128
      %1221 = vxpose.xlu0.b32.cont [6/16] 0.0, 128
      %1222 = vxpose.xlu0.b32.cont [7/16] 0.0, 128
      %1223 = vxpose.xlu0.b32.cont [8/16] 0.0, 128
      %1224 = vxpose.xlu0.b32.cont [9/16] 0.0, 128
      %1225 = vxpose.xlu0.b32.cont [10/16] 0.0, 128
      %1226 = vxpose.xlu0.b32.cont [11/16] 0.0, 128
      %1227 = vxpose.xlu0.b32.cont [12/16] 0.0, 128
      %1228 = vxpose.xlu0.b32.cont [13/16] 0.0, 128
      %1229 = vxpose.xlu0.b32.cont [14/16] 0.0, 128
      %1230 = vxpose.xlu0.b32.cont [15/16] 0.0, 128
      %1231 = vxpose.xlu0.b32.end [16/16] 0.0, 128
      %v1232 = vpop.trf.xlu0
      %v1233 = vpop.trf.xlu0
      %v1234 = vpop.trf.xlu0
      %v1235 = vpop.trf.xlu0
      %v1236 = vpop.trf.xlu0
      %v1237 = vpop.trf.xlu0
      %v1238 = vpop.trf.xlu0
      %v1239 = vpop.trf.xlu0
      %v1240 = vpop.trf.xlu0
      %v1241 = vpop.trf.xlu0
      %v1242 = vpop.trf.xlu0
      %v1243 = vpop.trf.xlu0
      %v1244 = vpop.trf.xlu0
      %v1245 = vpop.trf.xlu0
      %v1246 = vpop.trf.xlu0
      %v1247 = vpop.trf.xlu0
      %v1248 = vpack.c.bf16 %v1233, %v1232
      %v1249 = vpack.c.bf16 %v1235, %v1234
      %v1252 = vunpack.c.l.b16 %v1248
      %v1253 = vunpack.c.h.b16 %v1248
      %v1254 = vunpack.c.l.b16 %v1249
      %v1255 = vunpack.c.h.b16 %v1249
      %v1256 = vpack.c.b16 %v1252, %v1252
      %v1257 = vpack.c.b16 %v1253, %v1253
      %v1258 = vpack.c.b16 %v1254, %v1254
      %v1259 = vpack.c.b16 %v1255, %v1255
      %s1264 = scalar_lea.vmem %s273, 80
      %1265 = vst.msk [vmem:[%s1264] sm:$0xf] %vm881, %v1256
      %1266 = vst.msk [vmem:[%s1264 + $0x4] sm:$0xf] %vm881, %v1257
      %1267 = vst.msk [vmem:[%s1264 + $0x8] sm:$0xf] %vm881, %v1258
      %1268 = vst.msk [vmem:[%s1264 + $0xc] sm:$0xf] %vm881, %v1259
      %1269 = vrot.lane.b32.xlu0 %v1194, 96
      %v1270 = vpop.permute.xlu0 %1269
      %1271 = vrot.lane.b32.xlu0 %v1195, 96
      %v1272 = vpop.permute.xlu0 %1271
      %s1275 = scalar_lea.vmem %s282, 40
      %1276 = vst.msk [vmem:[%s1275] sm:$0xf] %vm822, %v1270
      %1277 = vst.msk [vmem:[%s1275 + $0x4] sm:$0xf] %vm822, %v1272
      %s1278 = smul.u32 2, %s21
      %p1279 = scmp.lt.s32.totalorder %s20, 1
      %s1280 = scalar_select %p1279, %s20, 1
      %p1281 = scmp.lt.s32.totalorder %s1278, 1
      %s1282 = scalar_select %p1281, %s1278, 1
      %s1283 = smul.addr %s1280, 12
      %s1284 = sadd.s32 %s1282, %s1283
      %s1285 = smul.addr %s1284, 4
      %s1286 = scalar_lea.vmem %s2, %s1285
      %p1287 = scmp.lt.s32.totalorder %s20, 1
      %s1288 = scalar_select %p1287, %s20, 1
      %p1289 = scmp.lt.s32.totalorder %s21, 0
      %s1290 = scalar_select %p1289, %s21, 0
      %s1291 = smul.addr %s1288, 24
      %s1292 = sadd.s32 %s1290, %s1291
      %s1293 = smul.addr %s1292, 4
      %s1294 = scalar_lea.vmem %s3, %s1293
      %s1295 = smul.u32 2, %s21
      %p1296 = scmp.lt.s32.totalorder %s20, 1
      %s1297 = scalar_select %p1296, %s20, 1
      %p1298 = scmp.lt.s32.totalorder %s1295, 1
      %s1299 = scalar_select %p1298, %s1295, 1
      %s1300 = smul.addr %s1297, 12
      %s1301 = sadd.s32 %s1299, %s1300
      %s1302 = smul.addr %s1301, 4
      %s1303 = scalar_lea.vmem %s4, %s1302
      // Predicated region
      $region29: #{multi_head_attention.2} parent=27 // pred_check
        %p1304 = pneg %p97
      $region30: #{multi_head_attention.2} parent=27 // pred_check_branch
        %1306 = sbr.rel (%p1304) target = $region32
      $region31: #{multi_head_attention.2} parent=27 // pred_region
        %s1307 = smul.u32 2, %s21
      $region32: #{multi_head_attention.2} parent=27 // pred_fallthru
        _
      // Predicated region
      $region33: #{multi_head_attention.2} parent=27 // pred_check
        %p1308 = pneg %p125
      $region34: #{multi_head_attention.2} parent=27 // pred_check_branch
        %1310 = sbr.rel (%p1308) target = $region36
      $region35: #{multi_head_attention.2} parent=27 // pred_region
        _
      $region36: #{multi_head_attention.2} parent=27 // pred_fallthru
        _
      // Predicated region
      $region37: #{multi_head_attention.2} parent=27 // pred_check
        %p1311 = pneg %p153
      $region38: #{multi_head_attention.2} parent=27 // pred_check_branch
        %1313 = sbr.rel (%p1311) target = $region40
      $region39: #{multi_head_attention.2} parent=27 // pred_region
        %s1314 = smul.u32 2, %s21
      $region40: #{multi_head_attention.2} parent=27 // pred_fallthru
        _
    $region28: #{multi_head_attention.2} parent=5 // pred_fallthru
      _
    %p1315 = scmp.le.s32.totalorder 2, %s11
    // Predicated region
    $region41: #{multi_head_attention.2} parent=5 // pred_check
      %p1316 = pneg %p1315
    $region42: #{multi_head_attention.2} parent=5 // pred_check_branch
      %1318 = sbr.rel (%p1316) target = $region44
    $region43: #{multi_head_attention.2} parent=5 // pred_region
      %s1319 = ssub.s32 %s11, 2
      // Predicated region
      $region45: #{multi_head_attention.2} parent=43 // pred_check
        %p1320 = pneg %p103
      $region46: #{multi_head_attention.2} parent=43 // pred_check_branch
        %1322 = sbr.rel (%p1320) target = $region48
      $region47: #{multi_head_attention.2} parent=43 // pred_region
        %s1323 = smul.u32 2, %s23
        %p1324 = scmp.lt.s32.totalorder %s22, 1
        %s1325 = scalar_select %p1324, %s22, 1
        %p1326 = scmp.lt.s32.totalorder %s1323, 1
        %s1327 = scalar_select %p1326, %s1323, 1
        %s1328 = smul.addr %s1325, 12
        %s1329 = sadd.s32 %s1327, %s1328
        %s1330 = smul.addr %s1329, 4
        %s1331 = scalar_lea.vmem %s2, %s1330
      $region48: #{multi_head_attention.2} parent=43 // pred_fallthru
        _
      // Predicated region
      $region49: #{multi_head_attention.2} parent=43 // pred_check
        %p1332 = pneg %p131
      $region50: #{multi_head_attention.2} parent=43 // pred_check_branch
        %1334 = sbr.rel (%p1332) target = $region52
      $region51: #{multi_head_attention.2} parent=43 // pred_region
        %p1335 = scmp.lt.s32.totalorder %s22, 1
        %s1336 = scalar_select %p1335, %s22, 1
        %p1337 = scmp.lt.s32.totalorder %s23, 0
        %s1338 = scalar_select %p1337, %s23, 0
        %s1339 = smul.addr %s1336, 24
        %s1340 = sadd.s32 %s1338, %s1339
        %s1341 = smul.addr %s1340, 4
        %s1342 = scalar_lea.vmem %s3, %s1341
      $region52: #{multi_head_attention.2} parent=43 // pred_fallthru
        _
      // Predicated region
      $region53: #{multi_head_attention.2} parent=43 // pred_check
        %p1343 = pneg %p159
      $region54: #{multi_head_attention.2} parent=43 // pred_check_branch
        %1345 = sbr.rel (%p1343) target = $region56
      $region55: #{multi_head_attention.2} parent=43 // pred_region
        %s1346 = smul.u32 2, %s23
        %p1347 = scmp.lt.s32.totalorder %s22, 1
        %s1348 = scalar_select %p1347, %s22, 1
        %p1349 = scmp.lt.s32.totalorder %s1346, 1
        %s1350 = scalar_select %p1349, %s1346, 1
        %s1351 = smul.addr %s1348, 12
        %s1352 = sadd.s32 %s1350, %s1351
        %s1353 = smul.addr %s1352, 4
        %s1354 = scalar_lea.vmem %s4, %s1353
      $region56: #{multi_head_attention.2} parent=43 // pred_fallthru
        _
    $region44: #{multi_head_attention.2} parent=5 // pred_fallthru
      _
  $region6: #{multi_head_attention.2} parent=0 // loop_footer
    %s15 = sadd.s32 1, %s11
  $region7: #{multi_head_attention.2} parent=0 // loop_footer_branch
    %10 = sbr.rel target = $region3
  $region8: #{multi_head_attention.2} parent=0 // loop_exit
    _

// kernel: multi_head_attention.3
$region0: #{multi_head_attention.3}
  #allocation0 [shape = 'u32[]', space=smem, size = 0x4, offset = 0x4, fixed_abs, tag = 'smem constant byte address 0x4 - core index']
  #allocation1 [shape = 'u32[144,128]{1,0:T(1,128)}', space=vmem, size = 0x12000, scoped, tag = 'internal scratch']
  #allocation2 [shape = 'f32[6,16,1]{2,1,0:T(8,128)}', space=vmem, size = 0xc000, scoped, tag = 'scratch operand']
  #allocation3 [shape = 'f32[6,16,1]{2,1,0:T(8,128)}', space=vmem, size = 0xc000, scoped, tag = 'scratch operand']
  #allocation4 [shape = 'f32[6,16,32]{2,1,0:T(8,128)}', space=vmem, size = 0xc000, scoped, tag = 'scratch operand']
  %s0 = inlined_call_operand.vmem [shape: bf16[2,6,16,32], index: 0, kind: input, shape index: {}]
  %s1 = inlined_call_operand.vmem [shape: bf16[2,6,32,16], index: 1, kind: input, shape index: {}]
  %s2 = inlined_call_operand.vmem [shape: bf16[2,6,16,32], index: 2, kind: input, shape index: {}]
  %s3 = inlined_call_operand.vmem [shape: bf16[192,192], index: 3, kind: input, shape index: {}]
  %s4 = inlined_call_operand.vmem [shape: f32[1,192], index: 4, kind: input, shape index: {}]
  %s5 = inlined_call_operand.hbm [shape: f32[2,16,192], index: 5, kind: output, shape index: {}]
  %s6 = sld [smem:[#allocation0]]
  $region65: #{multi_head_attention.3} parent=0
    _
  %s8 = ssub.s32 1, %s6
  %s9 = scalar_select 0, %s8, %s6
  $region1: #{multi_head_attention.3} parent=0
    #allocation5 [shape = 'u8[32768]{0}', space=vmem, size = 0x8000, scoped, tag = 'output window, operand 0']
    #allocation6 [shape = 's32[2]{0}', space=sflag, size = 0x8, scoped, tag = 'scoped memory for multi_head_attention.3']
    %10 = vsyncpa [#allocation6], 0
    %s11 = scalar_lea.sflag [#allocation6], 1
    %12 = vsyncpa %s11, 0
    loop: start=0, step=1, limit=4
    $region2: #{multi_head_attention.3} parent=1 // loop_pre_header
      _
    $region3: #{multi_head_attention.3} parent=1 // loop_header
      %s14 = sphi 0, %s18
      %p15 = scmp.ge.s32.totalorder %s14, 4
      %s21 = sphi 0, %s40
      %s22 = sphi 0, %s36
      %s23 = sphi 0, %s32
      %s24 = sphi 0, %s21
      %s25 = sphi 0, %s22
      %s26 = sphi 0, %s23
      %s27 = sphi 0, %s24
      %s28 = sphi 0, %s25
      %s29 = sphi 0, %s26
      %s45 = sphi 0, %s47
      %s48 = sphi 0, %s45
      %s49 = sphi 0, %s48
      %s65 = sphi 0, %s49
      %s73 = sphi 0, %s75
      %s76 = sphi 0, %s73
      %s77 = sphi 0, %s76
      %s93 = sphi 0, %s77
      %s101 = sphi 0, %s103
      %s104 = sphi 0, %s101
      %s105 = sphi 0, %s104
      %s121 = sphi 0, %s105
      %s125 = sphi 0, %s125
      %s127 = sphi 0, %s125
      %s128 = sphi 0, %s127
      %s142 = sphi 0, %s128
      %s146 = sphi 0, %s146
      %s148 = sphi 0, %s146
      %s149 = sphi 0, %s148
      %s163 = sphi 0, %s149
      %s171 = sphi 0, %s173
      %s174 = sphi 0, %s171
      %s175 = sphi 0, %s174
      %s191 = sphi 0, %s175
    $region4: #{multi_head_attention.3} parent=1 // loop_header_branch
      %17 = sbr.rel (%p15) target = $region8
    $region5: #{multi_head_attention.3} parent=1 // loop_body
      %s19 = ssub.s32 %s14, 1
      %s20 = ssub.s32 %s14, 2
      %s30 = sadd.s32 1, %s23
      %p31 = scmp.ge.s32.totalorder %s30, 1
      %s32 = scalar_select %p31, 0, %s30
      %s33 = sadd.s32 1, %s22
      %s34 = scalar_select %p31, %s33, %s22
      %p35 = scmp.ge.s32.totalorder %s34, 1
      %s36 = scalar_select %p35, 0, %s34
      %s37 = sadd.s32 1, %s21
      %s38 = scalar_select %p35, %s37, %s21
      %p39 = scmp.ge.s32.totalorder %s38, 2
      %s40 = scalar_select %p39, 0, %s38
      %s41 = ssub.s32 %s21, %s40
      %s42 = ssub.s32 %s22, %s36
      %s43 = sor.u32 %s41, %s42
      %p44 = scmp.eq.s32.totalorder %s43, 0
      %s46 = sadd.s32 %s45, 1
      %s47 = scalar_select %p44, %s45, %s46
      %p50 = pneg %p44
      %p51 = scmp.eq.s32.totalorder %s14, 1
      %p52 = por %p50, %p51
      %p53 = scmp.ne.s32.totalorder %s45, %s48
      %p54 = scmp.eq.s32.totalorder %s14, 0
      %p55 = por %p53, %p54
      %p56 = scmp.ne.s32.totalorder %s45, %s48
      %p57 = scmp.eq.s32.totalorder %s19, 1
      %p58 = por %p56, %p57
      %p59 = scmp.ne.s32.totalorder %s48, %s49
      %p60 = scmp.eq.s32.totalorder %s19, 0
      %p61 = por %p59, %p60
      %p62 = scmp.ne.s32.totalorder %s48, %s49
      %p63 = scmp.eq.s32.totalorder %s20, 1
      %p64 = por %p62, %p63
      %p66 = scmp.ne.s32.totalorder %s49, %s65
      %p67 = scmp.eq.s32.totalorder %s20, 0
      %p68 = por %p66, %p67
      %s69 = ssub.s32 %s21, %s40
      %s70 = ssub.s32 %s23, %s32
      %s71 = sor.u32 %s69, %s70
      %p72 = scmp.eq.s32.totalorder %s71, 0
      %s74 = sadd.s32 %s73, 1
      %s75 = scalar_select %p72, %s73, %s74
      %p78 = pneg %p72
      %p79 = scmp.eq.s32.totalorder %s14, 1
      %p80 = por %p78, %p79
      %p81 = scmp.ne.s32.totalorder %s73, %s76
      %p82 = scmp.eq.s32.totalorder %s14, 0
      %p83 = por %p81, %p82
      %p84 = scmp.ne.s32.totalorder %s73, %s76
      %p85 = scmp.eq.s32.totalorder %s19, 1
      %p86 = por %p84, %p85
      %p87 = scmp.ne.s32.totalorder %s76, %s77
      %p88 = scmp.eq.s32.totalorder %s19, 0
      %p89 = por %p87, %p88
      %p90 = scmp.ne.s32.totalorder %s76, %s77
      %p91 = scmp.eq.s32.totalorder %s20, 1
      %p92 = por %p90, %p91
      %p94 = scmp.ne.s32.totalorder %s77, %s93
      %p95 = scmp.eq.s32.totalorder %s20, 0
      %p96 = por %p94, %p95
      %s97 = ssub.s32 %s21, %s40
      %s98 = ssub.s32 %s23, %s32
      %s99 = sor.u32 %s97, %s98
      %p100 = scmp.eq.s32.totalorder %s99, 0
      %s102 = sadd.s32 %s101, 1
      %s103 = scalar_select %p100, %s101, %s102
      %p106 = pneg %p100
      %p107 = scmp.eq.s32.totalorder %s14, 1
      %p108 = por %p106, %p107
      %p109 = scmp.ne.s32.totalorder %s101, %s104
      %p110 = scmp.eq.s32.totalorder %s14, 0
      %p111 = por %p109, %p110
      %p112 = scmp.ne.s32.totalorder %s101, %s104
      %p113 = scmp.eq.s32.totalorder %s19, 1
      %p114 = por %p112, %p113
      %p115 = scmp.ne.s32.totalorder %s104, %s105
      %p116 = scmp.eq.s32.totalorder %s19, 0
      %p117 = por %p115, %p116
      %p118 = scmp.ne.s32.totalorder %s104, %s105
      %p119 = scmp.eq.s32.totalorder %s20, 1
      %p120 = por %p118, %p119
      %p122 = scmp.ne.s32.totalorder %s105, %s121
      %p123 = scmp.eq.s32.totalorder %s20, 0
      %p124 = por %p122, %p123
      %s126 = sadd.s32 %s125, 1
      %p129 = scmp.eq.s32.totalorder %s14, 1
      %p130 = scmp.ne.s32.totalorder %s125, %s127
      %p131 = scmp.eq.s32.totalorder %s14, 0
      %p132 = por %p130, %p131
      %p133 = scmp.ne.s32.totalorder %s125, %s127
      %p134 = scmp.eq.s32.totalorder %s19, 1
      %p135 = por %p133, %p134
      %p136 = scmp.ne.s32.totalorder %s127, %s128
      %p137 = scmp.eq.s32.totalorder %s19, 0
      %p138 = por %p136, %p137
      %p139 = scmp.ne.s32.totalorder %s127, %s128
      %p140 = scmp.eq.s32.totalorder %s20, 1
      %p141 = por %p139, %p140
      %p143 = scmp.ne.s32.totalorder %s128, %s142
      %p144 = scmp.eq.s32.totalorder %s20, 0
      %p145 = por %p143, %p144
      %s147 = sadd.s32 %s146, 1
      %p150 = scmp.eq.s32.totalorder %s14, 1
      %p151 = scmp.ne.s32.totalorder %s146, %s148
      %p152 = scmp.eq.s32.totalorder %s14, 0
      %p153 = por %p151, %p152
      %p154 = scmp.ne.s32.totalorder %s146, %s148
      %p155 = scmp.eq.s32.totalorder %s19, 1
      %p156 = por %p154, %p155
      %p157 = scmp.ne.s32.totalorder %s148, %s149
      %p158 = scmp.eq.s32.totalorder %s19, 0
      %p159 = por %p157, %p158
      %p160 = scmp.ne.s32.totalorder %s148, %s149
      %p161 = scmp.eq.s32.totalorder %s20, 1
      %p162 = por %p160, %p161
      %p164 = scmp.ne.s32.totalorder %s149, %s163
      %p165 = scmp.eq.s32.totalorder %s20, 0
      %p166 = por %p164, %p165
      %s167 = ssub.s32 %s21, %s40
      %s168 = ssub.s32 %s22, %s36
      %s169 = sor.u32 %s167, %s168
      %p170 = scmp.eq.s32.totalorder %s169, 0
      %s172 = sadd.s32 %s171, 1
      %s173 = scalar_select %p170, %s171, %s172
      %p176 = pneg %p170
      %p177 = scmp.eq.s32.totalorder %s14, 1
      %p178 = por %p176, %p177
      %p179 = scmp.ne.s32.totalorder %s171, %s174
      %p180 = scmp.eq.s32.totalorder %s14, 0
      %p181 = por %p179, %p180
      %p182 = scmp.ne.s32.totalorder %s171, %s174
      %p183 = scmp.eq.s32.totalorder %s19, 1
      %p184 = por %p182, %p183
      %p185 = scmp.ne.s32.totalorder %s174, %s175
      %p186 = scmp.eq.s32.totalorder %s19, 0
      %p187 = por %p185, %p186
      %p188 = scmp.ne.s32.totalorder %s174, %s175
      %p189 = scmp.eq.s32.totalorder %s20, 1
      %p190 = por %p188, %p189
      %p192 = scmp.ne.s32.totalorder %s175, %s191
      %p193 = scmp.eq.s32.totalorder %s20, 0
      %p194 = por %p192, %p193
      %p195 = scmp.le.s32.totalorder 1, %s14
      %p196 = scmp.lt.s32.totalorder %s14, 3
      %p197 = pnand %p195, %p196
      %p198 = pneg %p197
      // Predicated region
      $region9: #{multi_head_attention.3} parent=5 // pred_check
        _
      $region10: #{multi_head_attention.3} parent=5 // pred_check_branch
        %200 = sbr.rel (%p197) target = $region12
      $region11: #{multi_head_attention.3} parent=5 // pred_region
        %s201 = ssub.s32 %s14, 1
        // Predicated region
        $region13: #{multi_head_attention.3} parent=11 // pred_check
          %p202 = pneg %p138
        $region14: #{multi_head_attention.3} parent=11 // pred_check_branch
          %204 = sbr.rel (%p202) target = $region16
        $region15: #{multi_head_attention.3} parent=11 // pred_region
          _
        $region16: #{multi_head_attention.3} parent=11 // pred_fallthru
          _
        // Predicated region
        $region17: #{multi_head_attention.3} parent=11 // pred_check
          %p205 = pneg %p159
        $region18: #{multi_head_attention.3} parent=11 // pred_check_branch
          %207 = sbr.rel (%p205) target = $region20
        $region19: #{multi_head_attention.3} parent=11 // pred_region
          _
        $region20: #{multi_head_attention.3} parent=11 // pred_fallthru
          _
      $region12: #{multi_head_attention.3} parent=5 // pred_fallthru
        _
      %p208 = scmp.lt.s32.totalorder %s14, 2
      // Predicated region
      $region21: #{multi_head_attention.3} parent=5 // pred_check
        %p209 = pneg %p208
      $region22: #{multi_head_attention.3} parent=5 // pred_check_branch
        %211 = sbr.rel (%p209) target = $region24
      $region23: #{multi_head_attention.3} parent=5 // pred_region
        // Predicated region
        $region25: #{multi_head_attention.3} parent=23 // pred_check
          %p212 = pneg %p55
        $region26: #{multi_head_attention.3} parent=23 // pred_check_branch
          %214 = sbr.rel (%p212) target = $region28
        $region27: #{multi_head_attention.3} parent=23 // pred_region
          %s215 = smul.u32 2, %s22
          %p216 = scmp.lt.s32.totalorder %s21, 1
          %s217 = scalar_select %p216, %s21, 1
          %p218 = scmp.lt.s32.totalorder %s215, 1
          %s219 = scalar_select %p218, %s215, 1
          %s220 = smul.addr %s217, 12
          %s221 = sadd.s32 %s219, %s220
          %s222 = smul.addr %s221, 4
          %s223 = scalar_lea.vmem %s0, %s222
          %s224 = smul.u32 2, %s22
        $region28: #{multi_head_attention.3} parent=23 // pred_fallthru
          _
        // Predicated region
        $region29: #{multi_head_attention.3} parent=23 // pred_check
          %p225 = pneg %p83
        $region30: #{multi_head_attention.3} parent=23 // pred_check_branch
          %227 = sbr.rel (%p225) target = $region32
        $region31: #{multi_head_attention.3} parent=23 // pred_region
          %p228 = scmp.lt.s32.totalorder %s21, 1
          %s229 = scalar_select %p228, %s21, 1
          %p230 = scmp.lt.s32.totalorder %s23, 0
          %s231 = scalar_select %p230, %s23, 0
          %s232 = smul.addr %s229, 24
          %s233 = sadd.s32 %s231, %s232
          %s234 = smul.addr %s233, 4
          %s235 = scalar_lea.vmem %s1, %s234
        $region32: #{multi_head_attention.3} parent=23 // pred_fallthru
          _
        // Predicated region
        $region33: #{multi_head_attention.3} parent=23 // pred_check
          %p236 = pneg %p111
        $region34: #{multi_head_attention.3} parent=23 // pred_check_branch
          %238 = sbr.rel (%p236) target = $region36
        $region35: #{multi_head_attention.3} parent=23 // pred_region
          %s239 = smul.u32 2, %s23
          %p240 = scmp.lt.s32.totalorder %s21, 1
          %s241 = scalar_select %p240, %s21, 1
          %p242 = scmp.lt.s32.totalorder %s239, 1
          %s243 = scalar_select %p242, %s239, 1
          %s244 = smul.addr %s241, 12
          %s245 = sadd.s32 %s243, %s244
          %s246 = smul.addr %s245, 4
          %s247 = scalar_lea.vmem %s2, %s246
          %s248 = smul.u32 2, %s23
        $region36: #{multi_head_attention.3} parent=23 // pred_fallthru
          _
      $region24: #{multi_head_attention.3} parent=5 // pred_fallthru
        _
      %p249 = scmp.le.s32.totalorder 1, %s14
      %p250 = scmp.lt.s32.totalorder %s14, 3
      %p251 = pnand %p249, %p250
      %p252 = pneg %p251
      // Predicated region
      $region37: #{multi_head_attention.3} parent=5 // pred_check
        _
      $region38: #{multi_head_attention.3} parent=5 // pred_check_branch
        %254 = sbr.rel (%p251) target = $region40
      $region39: #{multi_head_attention.3} parent=5 // pred_region
        %s255 = ssub.s32 %s14, 1
        %s256 = smul.u32 2, %s25
        %p257 = scmp.lt.s32.totalorder %s24, 1
        %s258 = scalar_select %p257, %s24, 1
        %p259 = scmp.lt.s32.totalorder %s256, 1
        %s260 = scalar_select %p259, %s256, 1
        %s261 = smul.addr %s258, 12
        %s262 = sadd.s32 %s260, %s261
        %s263 = smul.addr %s262, 4
        %s264 = scalar_lea.vmem %s0, %s263
        %p265 = pneg %p61
        %p266 = pneg %p58
        %p267 = scmp.lt.s32.totalorder %s24, 1
        %s268 = scalar_select %p267, %s24, 1
        %p269 = scmp.lt.s32.totalorder %s26, 0
        %s270 = scalar_select %p269, %s26, 0
        %s271 = smul.addr %s268, 24
        %s272 = sadd.s32 %s270, %s271
        %s273 = smul.addr %s272, 4
        %s274 = scalar_lea.vmem %s1, %s273
        %p275 = pneg %p89
        %p276 = pneg %p86
        %s277 = smul.u32 2, %s26
        %p278 = scmp.lt.s32.totalorder %s24, 1
        %s279 = scalar_select %p278, %s24, 1
        %p280 = scmp.lt.s32.totalorder %s277, 1
        %s281 = scalar_select %p280, %s277, 1
        %s282 = smul.addr %s279, 12
        %s283 = sadd.s32 %s281, %s282
        %s284 = smul.addr %s283, 4
        %s285 = scalar_lea.vmem %s2, %s284
        %p286 = pneg %p117
        %p287 = pneg %p114
        %p288 = pneg %p138
        %p289 = pneg %p135
        %p290 = pneg %p159
        %p291 = pneg %p156
        %p292 = pneg %p187
        %p293 = pneg %p184
        %s294 = sand.u32 %s174, 1
        %s295 = scalar_lea.sflag [#allocation6], %s294
        %s296 = sand.u32 %s174, 1
        %s297 = smul.addr %s296, 32
        %s298 = scalar_lea.vmem [#allocation5], %s297
        %s299 = smul.u32 2, %s25
        %p300 = scmp.lt.s32.totalorder %s24, 1
        %s301 = scalar_select %p300, %s24, 1
        %p302 = scmp.lt.s32.totalorder %s299, 1
        %s303 = scalar_select %p302, %s299, 1
        %s304 = smul.addr %s301, 12
        %s305 = sadd.s32 %s303, %s304
        %s306 = smul.addr %s305, 4
        %s307 = scalar_lea.vmem %s0, %s306
        %s308 = smul.u32 2, %s25
        %p309 = scmp.lt.s32.totalorder %s24, 1
        %s310 = scalar_select %p309, %s24, 1
        %p311 = scmp.lt.s32.totalorder %s26, 0
        %s312 = scalar_select %p311, %s26, 0
        %s313 = smul.addr %s310, 24
        %s314 = sadd.s32 %s312, %s313
        %s315 = smul.addr %s314, 4
        %s316 = scalar_lea.vmem %s1, %s315
        %s317 = smul.u32 2, %s26
        %p318 = scmp.lt.s32.totalorder %s24, 1
        %s319 = scalar_select %p318, %s24, 1
        %p320 = scmp.lt.s32.totalorder %s317, 1
        %s321 = scalar_select %p320, %s317, 1
        %s322 = smul.addr %s319, 12
        %s323 = sadd.s32 %s321, %s322
        %s324 = smul.addr %s323, 4
        %s325 = scalar_lea.vmem %s2, %s324
        %s326 = smul.u32 2, %s26
        %s327 = smul.u32 2, %s25
        %p329 = scmp.eq.s32.totalorder %s26, 0
        // Predicated region
        $region41: #{multi_head_attention.3} parent=39 // pred_check
          %p330 = pneg %p329
        $region42: #{multi_head_attention.3} parent=39 // pred_check_branch
          %332 = sbr.rel (%p330) target = $region44
        $region43: #{multi_head_attention.3} parent=39 // pred_region
          %vm333 = vcmask 7168
          %334 = vst.msk [vmem:[#allocation2] sm:$0xff] %vm333, -1e+30
          %335 = vst.msk [vmem:[#allocation2 + $0x8] sm:$0xff] %vm333, -1e+30
          %336 = vst.msk [vmem:[#allocation2 + $0x10] sm:$0xff] %vm333, -1e+30
          %337 = vst.msk [vmem:[#allocation2 + $0x18] sm:$0xff] %vm333, -1e+30
          %338 = vst.msk [vmem:[#allocation2 + $0x20] sm:$0xff] %vm333, -1e+30
          %339 = vst.msk [vmem:[#allocation2 + $0x28] sm:$0xff] %vm333, -1e+30
          %340 = vst.msk [vmem:[#allocation2 + $0x30] sm:$0xff] %vm333, -1e+30
          %341 = vst.msk [vmem:[#allocation2 + $0x38] sm:$0xff] %vm333, -1e+30
          %342 = vst.msk [vmem:[#allocation2 + $0x40] sm:$0xff] %vm333, -1e+30
          %343 = vst.msk [vmem:[#allocation2 + $0x48] sm:$0xff] %vm333, -1e+30
          %344 = vst.msk [vmem:[#allocation2 + $0x50] sm:$0xff] %vm333, -1e+30
          %345 = vst.msk [vmem:[#allocation2 + $0x58] sm:$0xff] %vm333, -1e+30
          %346 = vst.msk [vmem:[#allocation3] sm:$0xff] %vm333, 0.0
          %347 = vst.msk [vmem:[#allocation3 + $0x8] sm:$0xff] %vm333, 0.0
          %348 = vst.msk [vmem:[#allocation3 + $0x10] sm:$0xff] %vm333, 0.0
          %349 = vst.msk [vmem:[#allocation3 + $0x18] sm:$0xff] %vm333, 0.0
          %350 = vst.msk [vmem:[#allocation3 + $0x20] sm:$0xff] %vm333, 0.0
          %351 = vst.msk [vmem:[#allocation3 + $0x28] sm:$0xff] %vm333, 0.0
          %352 = vst.msk [vmem:[#allocation3 + $0x30] sm:$0xff] %vm333, 0.0
          %353 = vst.msk [vmem:[#allocation3 + $0x38] sm:$0xff] %vm333, 0.0
          %354 = vst.msk [vmem:[#allocation3 + $0x40] sm:$0xff] %vm333, 0.0
          %355 = vst.msk [vmem:[#allocation3 + $0x48] sm:$0xff] %vm333, 0.0
          %356 = vst.msk [vmem:[#allocation3 + $0x50] sm:$0xff] %vm333, 0.0
          %357 = vst.msk [vmem:[#allocation3 + $0x58] sm:$0xff] %vm333, 0.0
          %vm358 = vcmask 261120
          %359 = vst.msk [vmem:[#allocation4] sm:$0xff] %vm358, 0.0
          %360 = vst.msk [vmem:[#allocation4 + $0x8] sm:$0xff] %vm358, 0.0
          %361 = vst.msk [vmem:[#allocation4 + $0x10] sm:$0xff] %vm358, 0.0
          %362 = vst.msk [vmem:[#allocation4 + $0x18] sm:$0xff] %vm358, 0.0
          %363 = vst.msk [vmem:[#allocation4 + $0x20] sm:$0xff] %vm358, 0.0
          %364 = vst.msk [vmem:[#allocation4 + $0x28] sm:$0xff] %vm358, 0.0
          %365 = vst.msk [vmem:[#allocation4 + $0x30] sm:$0xff] %vm358, 0.0
          %366 = vst.msk [vmem:[#allocation4 + $0x38] sm:$0xff] %vm358, 0.0
          %367 = vst.msk [vmem:[#allocation4 + $0x40] sm:$0xff] %vm358, 0.0
          %368 = vst.msk [vmem:[#allocation4 + $0x48] sm:$0xff] %vm358, 0.0
          %369 = vst.msk [vmem:[#allocation4 + $0x50] sm:$0xff] %vm358, 0.0
          %370 = vst.msk [vmem:[#allocation4 + $0x58] sm:$0xff] %vm358, 0.0
        $region44: #{multi_head_attention.3} parent=39 // pred_fallthru
          _
        %p371 = scmp.le.s32.totalorder %s26, %s25
        // Predicated region
        $region45: #{multi_head_attention.3} parent=39 // pred_check
          %p372 = pneg %p371
        $region46: #{multi_head_attention.3} parent=39 // pred_check_branch
          %374 = sbr.rel (%p372) target = $region48
        $region47: #{multi_head_attention.3} parent=39 // pred_region
          %v375 = vld [vmem:[%s307] sm:$0xf]
          %v376 = vld [vmem:[%s307 + $0x4] sm:$0xf]
          %v377 = vld [vmem:[%s307 + $0x8] sm:$0xf]
          %v378 = vld [vmem:[%s307 + $0xc] sm:$0xf]
          %v379 = vld [vmem:[%s307 + $0x10] sm:$0xf]
          %v380 = vld [vmem:[%s307 + $0x14] sm:$0xf]
          %v381 = vld [vmem:[%s307 + $0x18] sm:$0xf]
          %v382 = vld [vmem:[%s307 + $0x1c] sm:$0xf]
          %v383 = vld [vmem:[%s307 + $0x20] sm:$0xf]
          %v384 = vld [vmem:[%s307 + $0x24] sm:$0xf]
          %v385 = vld [vmem:[%s307 + $0x28] sm:$0xf]
          %v386 = vld [vmem:[%s307 + $0x2c] sm:$0xf]
          %v387 = vld [vmem:[%s316] sm:$0xf]
          %v388 = vld [vmem:[%s316 + $0x4] sm:$0xf]
          %v389 = vld [vmem:[%s316 + $0x8] sm:$0xf]
          %v390 = vld [vmem:[%s316 + $0xc] sm:$0xf]
          %v391 = vld [vmem:[%s316 + $0x10] sm:$0xf]
          %v392 = vld [vmem:[%s316 + $0x14] sm:$0xf]
          %v393 = vld [vmem:[%s316 + $0x18] sm:$0xf]
          %v394 = vld [vmem:[%s316 + $0x1c] sm:$0xf]
          %v395 = vld [vmem:[%s316 + $0x20] sm:$0xf]
          %v396 = vld [vmem:[%s316 + $0x24] sm:$0xf]
          %v397 = vld [vmem:[%s316 + $0x28] sm:$0xf]
          %v398 = vld [vmem:[%s316 + $0x2c] sm:$0xf]
          %v399 = vld [vmem:[%s316 + $0x30] sm:$0xf]
          %v400 = vld [vmem:[%s316 + $0x34] sm:$0xf]
          %v401 = vld [vmem:[%s316 + $0x38] sm:$0xf]
          %v402 = vld [vmem:[%s316 + $0x3c] sm:$0xf]
          %v403 = vld [vmem:[%s316 + $0x40] sm:$0xf]
          %v404 = vld [vmem:[%s316 + $0x44] sm:$0xf]
          %v405 = vld [vmem:[%s316 + $0x48] sm:$0xf]
          %v406 = vld [vmem:[%s316 + $0x4c] sm:$0xf]
          %v407 = vld [vmem:[%s316 + $0x50] sm:$0xf]
          %v408 = vld [vmem:[%s316 + $0x54] sm:$0xf]
          %v409 = vld [vmem:[%s316 + $0x58] sm:$0xf]
          %v410 = vld [vmem:[%s316 + $0x5c] sm:$0xf]
          %v411 = vld [vmem:[%s325] sm:$0xf]
          %v412 = vld [vmem:[%s325 + $0x4] sm:$0xf]
          %v413 = vld [vmem:[%s325 + $0x8] sm:$0xf]
          %v414 = vld [vmem:[%s325 + $0xc] sm:$0xf]
          %v415 = vld [vmem:[%s325 + $0x10] sm:$0xf]
          %v416 = vld [vmem:[%s325 + $0x14] sm:$0xf]
          %v417 = vld [vmem:[%s325 + $0x18] sm:$0xf]
          %v418 = vld [vmem:[%s325 + $0x1c] sm:$0xf]
          %v419 = vld [vmem:[%s325 + $0x20] sm:$0xf]
          %v420 = vld [vmem:[%s325 + $0x24] sm:$0xf]
          %v421 = vld [vmem:[%s325 + $0x28] sm:$0xf]
          %v422 = vld [vmem:[%s325 + $0x2c] sm:$0xf]
          %v425 = vunpack.c.l.b16 %v375
          %v426 = vunpack.c.l.b16 %v376
          %v427 = vpack.c.b16 %v426, %v425
          %v432 = vunpack.c.l.b16 %v387
          %v433 = vunpack.c.l.b16 %v388
          %v434 = vunpack.c.l.b16 %v389
          %v435 = vunpack.c.l.b16 %v390
          %v436 = vpack.c.b16 %v433, %v432
          %v437 = vpack.c.b16 %v435, %v434
          %vm440 = vcmask 261120
          %v442 = vsel %vm440, %v427, 0
          %444 = vmatprep.subr.bf16.mxu0 0
          %445 = vmatpush1.bf16.msra.mxu0 0
          %446 = vmatprep.subr.bf16.mxu0 0
          %447 = vmatpush1.bf16.msra.mxu0 0
          %448 = vmatprep.subr.bf16.mxu0 0
          %449 = vmatpush1.bf16.msra.mxu0 0
          %450 = vmatprep.subr.bf16.mxu0 0
          %451 = vmatpush1.bf16.msra.mxu0 0
          %452 = vmatprep.subr.bf16.mxu0 0
          %453 = vmatpush1.bf16.msra.mxu0 0
          %454 = vmatprep.subr.bf16.mxu0 0
          %455 = vmatpush1.bf16.msra.mxu0 0
          %456 = vmatprep.subr.bf16.mxu0 0
          %457 = vmatpush1.bf16.msra.mxu0 %v437
          %458 = vmatprep.subr.bf16.mxu0 0
          %459 = vmatpush1.bf16.msra.mxu0 %v436
          %460 = vmatprep.subr.bf16.mxu0 0
          %461 = vmatpush2.bf16.msra.mxu0 0
          %462 = vmatprep.subr.bf16.mxu0 0
          %463 = vmatpush2.bf16.msra.mxu0 0
          %464 = vmatprep.subr.bf16.mxu0 0
          %465 = vmatpush2.bf16.msra.mxu0 0
          %466 = vmatprep.subr.bf16.mxu0 0
          %467 = vmatpush2.bf16.msra.mxu0 0
          %468 = vmatprep.subr.bf16.mxu0 0
          %469 = vmatpush2.bf16.msra.mxu0 0
          %470 = vmatprep.subr.bf16.mxu0 0
          %471 = vmatpush2.bf16.msra.mxu0 0
          %472 = vmatprep.subr.bf16.mxu0 0
          %473 = vmatpush2.bf16.msra.mxu0 0
          %474 = vmatprep.subr.bf16.mxu0 0
          %475 = vmatpush2.bf16.msra.mxu0 0
          %476 = vmatprep.mubr.bf16.mxu0 0
          %477 = vmatmul.mubr.bf16.gmra.mxu0 %v442
          %v478 = vpop.f32.mrf.mxu0
          %v479 = vadd.f32 0.0, %v478
          %v480 = vpop.f32.mrf.mxu0
          %v481 = vpop.f32.mrf.mxu0
          %v482 = vadd.f32 0.0, %v481
          %v483 = vpop.f32.mrf.mxu0
          %484 = vdwg.mxu0
          %v487 = vunpack.c.l.b16 %v377
          %v488 = vunpack.c.l.b16 %v378
          %v489 = vpack.c.b16 %v488, %v487
          %v494 = vunpack.c.l.b16 %v391
          %v495 = vunpack.c.l.b16 %v392
          %v496 = vunpack.c.l.b16 %v393
          %v497 = vunpack.c.l.b16 %v394
          %v498 = vpack.c.b16 %v495, %v494
          %v499 = vpack.c.b16 %v497, %v496
          %v503 = vsel %vm440, %v489, 0
          %505 = vmatprep.subr.bf16.mxu0 0
          %506 = vmatpush1.bf16.msra.mxu0 0
          %507 = vmatprep.subr.bf16.mxu0 0
          %508 = vmatpush1.bf16.msra.mxu0 0
          %509 = vmatprep.subr.bf16.mxu0 0
          %510 = vmatpush1.bf16.msra.mxu0 0
          %511 = vmatprep.subr.bf16.mxu0 0
          %512 = vmatpush1.bf16.msra.mxu0 0
          %513 = vmatprep.subr.bf16.mxu0 0
          %514 = vmatpush1.bf16.msra.mxu0 0
          %515 = vmatprep.subr.bf16.mxu0 0
          %516 = vmatpush1.bf16.msra.mxu0 0
          %517 = vmatprep.subr.bf16.mxu0 0
          %518 = vmatpush1.bf16.msra.mxu0 %v499
          %519 = vmatprep.subr.bf16.mxu0 0
          %520 = vmatpush1.bf16.msra.mxu0 %v498
          %521 = vmatprep.subr.bf16.mxu0 0
          %522 = vmatpush2.bf16.msra.mxu0 0
          %523 = vmatprep.subr.bf16.mxu0 0
          %524 = vmatpush2.bf16.msra.mxu0 0
          %525 = vmatprep.subr.bf16.mxu0 0
          %526 = vmatpush2.bf16.msra.mxu0 0
          %527 = vmatprep.subr.bf16.mxu0 0
          %528 = vmatpush2.bf16.msra.mxu0 0
          %529 = vmatprep.subr.bf16.mxu0 0
          %530 = vmatpush2.bf16.msra.mxu0 0
          %531 = vmatprep.subr.bf16.mxu0 0
          %532 = vmatpush2.bf16.msra.mxu0 0
          %533 = vmatprep.subr.bf16.mxu0 0
          %534 = vmatpush2.bf16.msra.mxu0 0
          %535 = vmatprep.subr.bf16.mxu0 0
          %536 = vmatpush2.bf16.msra.mxu0 0
          %537 = vmatprep.mubr.bf16.mxu0 0
          %538 = vmatmul.mubr.bf16.gmra.mxu0 %v503
          %v539 = vpop.f32.mrf.mxu0
          %v540 = vadd.f32 0.0, %v539
          %v541 = vpop.f32.mrf.mxu0
          %v542 = vpop.f32.mrf.mxu0
          %v543 = vadd.f32 0.0, %v542
          %v544 = vpop.f32.mrf.mxu0
          %545 = vdwg.mxu0
          %v548 = vunpack.c.l.b16 %v379
          %v549 = vunpack.c.l.b16 %v380
          %v550 = vpack.c.b16 %v549, %v548
          %v555 = vunpack.c.l.b16 %v395
          %v556 = vunpack.c.l.b16 %v396
          %v557 = vunpack.c.l.b16 %v397
          %v558 = vunpack.c.l.b16 %v398
          %v559 = vpack.c.b16 %v556, %v555
          %v560 = vpack.c.b16 %v558, %v557
          %v564 = vsel %vm440, %v550, 0
          %566 = vmatprep.subr.bf16.mxu0 0
          %567 = vmatpush1.bf16.msra.mxu0 0
          %568 = vmatprep.subr.bf16.mxu0 0
          %569 = vmatpush1.bf16.msra.mxu0 0
          %570 = vmatprep.subr.bf16.mxu0 0
          %571 = vmatpush1.bf16.msra.mxu0 0
          %572 = vmatprep.subr.bf16.mxu0 0
          %573 = vmatpush1.bf16.msra.mxu0 0
          %574 = vmatprep.subr.bf16.mxu0 0
          %575 = vmatpush1.bf16.msra.mxu0 0
          %576 = vmatprep.subr.bf16.mxu0 0
          %577 = vmatpush1.bf16.msra.mxu0 0
          %578 = vmatprep.subr.bf16.mxu0 0
          %579 = vmatpush1.bf16.msra.mxu0 %v560
          %580 = vmatprep.subr.bf16.mxu0 0
          %581 = vmatpush1.bf16.msra.mxu0 %v559
          %582 = vmatprep.subr.bf16.mxu0 0
          %583 = vmatpush2.bf16.msra.mxu0 0
          %584 = vmatprep.subr.bf16.mxu0 0
          %585 = vmatpush2.bf16.msra.mxu0 0
          %586 = vmatprep.subr.bf16.mxu0 0
          %587 = vmatpush2.bf16.msra.mxu0 0
          %588 = vmatprep.subr.bf16.mxu0 0
          %589 = vmatpush2.bf16.msra.mxu0 0
          %590 = vmatprep.subr.bf16.mxu0 0
          %591 = vmatpush2.bf16.msra.mxu0 0
          %592 = vmatprep.subr.bf16.mxu0 0
          %593 = vmatpush2.bf16.msra.mxu0 0
          %594 = vmatprep.subr.bf16.mxu0 0
          %595 = vmatpush2.bf16.msra.mxu0 0
          %596 = vmatprep.subr.bf16.mxu0 0
          %597 = vmatpush2.bf16.msra.mxu0 0
          %598 = vmatprep.mubr.bf16.mxu0 0
          %599 = vmatmul.mubr.bf16.gmra.mxu0 %v564
          %v600 = vpop.f32.mrf.mxu0
          %v601 = vadd.f32 0.0, %v600
          %v602 = vpop.f32.mrf.mxu0
          %v603 = vpop.f32.mrf.mxu0
          %v604 = vadd.f32 0.0, %v603
          %v605 = vpop.f32.mrf.mxu0
          %606 = vdwg.mxu0
          %v609 = vunpack.c.l.b16 %v381
          %v610 = vunpack.c.l.b16 %v382
          %v611 = vpack.c.b16 %v610, %v609
          %v616 = vunpack.c.l.b16 %v399
          %v617 = vunpack.c.l.b16 %v400
          %v618 = vunpack.c.l.b16 %v401
          %v619 = vunpack.c.l.b16 %v402
          %v620 = vpack.c.b16 %v617, %v616
          %v621 = vpack.c.b16 %v619, %v618
          %v625 = vsel %vm440, %v611, 0
          %627 = vmatprep.subr.bf16.mxu0 0
          %628 = vmatpush1.bf16.msra.mxu0 0
          %629 = vmatprep.subr.bf16.mxu0 0
          %630 = vmatpush1.bf16.msra.mxu0 0
          %631 = vmatprep.subr.bf16.mxu0 0
          %632 = vmatpush1.bf16.msra.mxu0 0
          %633 = vmatprep.subr.bf16.mxu0 0
          %634 = vmatpush1.bf16.msra.mxu0 0
          %635 = vmatprep.subr.bf16.mxu0 0
          %636 = vmatpush1.bf16.msra.mxu0 0
          %637 = vmatprep.subr.bf16.mxu0 0
          %638 = vmatpush1.bf16.msra.mxu0 0
          %639 = vmatprep.subr.bf16.mxu0 0
          %640 = vmatpush1.bf16.msra.mxu0 %v621
          %641 = vmatprep.subr.bf16.mxu0 0
          %642 = vmatpush1.bf16.msra.mxu0 %v620
          %643 = vmatprep.subr.bf16.mxu0 0
          %644 = vmatpush2.bf16.msra.mxu0 0
          %645 = vmatprep.subr.bf16.mxu0 0
          %646 = vmatpush2.bf16.msra.mxu0 0
          %647 = vmatprep.subr.bf16.mxu0 0
          %648 = vmatpush2.bf16.msra.mxu0 0
          %649 = vmatprep.subr.bf16.mxu0 0
          %650 = vmatpush2.bf16.msra.mxu0 0
          %651 = vmatprep.subr.bf16.mxu0 0
          %652 = vmatpush2.bf16.msra.mxu0 0
          %653 = vmatprep.subr.bf16.mxu0 0
          %654 = vmatpush2.bf16.msra.mxu0 0
          %655 = vmatprep.subr.bf16.mxu0 0
          %656 = vmatpush2.bf16.msra.mxu0 0
          %657 = vmatprep.subr.bf16.mxu0 0
          %658 = vmatpush2.bf16.msra.mxu0 0
          %659 = vmatprep.mubr.bf16.mxu0 0
          %660 = vmatmul.mubr.bf16.gmra.mxu0 %v625
          %v661 = vpop.f32.mrf.mxu0
          %v662 = vadd.f32 0.0, %v661
          %v663 = vpop.f32.mrf.mxu0
          %v664 = vpop.f32.mrf.mxu0
          %v665 = vadd.f32 0.0, %v664
          %v666 = vpop.f32.mrf.mxu0
          %667 = vdwg.mxu0
          %v670 = vunpack.c.l.b16 %v383
          %v671 = vunpack.c.l.b16 %v384
          %v672 = vpack.c.b16 %v671, %v670
          %v677 = vunpack.c.l.b16 %v403
          %v678 = vunpack.c.l.b16 %v404
          %v679 = vunpack.c.l.b16 %v405
          %v680 = vunpack.c.l.b16 %v406
          %v681 = vpack.c.b16 %v678, %v677
          %v682 = vpack.c.b16 %v680, %v679
          %v686 = vsel %vm440, %v672, 0
          %688 = vmatprep.subr.bf16.mxu0 0
          %689 = vmatpush1.bf16.msra.mxu0 0
          %690 = vmatprep.subr.bf16.mxu0 0
          %691 = vmatpush1.bf16.msra.mxu0 0
          %692 = vmatprep.subr.bf16.mxu0 0
          %693 = vmatpush1.bf16.msra.mxu0 0
          %694 = vmatprep.subr.bf16.mxu0 0
          %695 = vmatpush1.bf16.msra.mxu0 0
          %696 = vmatprep.subr.bf16.mxu0 0
          %697 = vmatpush1.bf16.msra.mxu0 0
          %698 = vmatprep.subr.bf16.mxu0 0
          %699 = vmatpush1.bf16.msra.mxu0 0
          %700 = vmatprep.subr.bf16.mxu0 0
          %701 = vmatpush1.bf16.msra.mxu0 %v682
          %702 = vmatprep.subr.bf16.mxu0 0
          %703 = vmatpush1.bf16.msra.mxu0 %v681
          %704 = vmatprep.subr.bf16.mxu0 0
          %705 = vmatpush2.bf16.msra.mxu0 0
          %706 = vmatprep.subr.bf16.mxu0 0
          %707 = vmatpush2.bf16.msra.mxu0 0
          %708 = vmatprep.subr.bf16.mxu0 0
          %709 = vmatpush2.bf16.msra.mxu0 0
          %710 = vmatprep.subr.bf16.mxu0 0
          %711 = vmatpush2.bf16.msra.mxu0 0
          %712 = vmatprep.subr.bf16.mxu0 0
          %713 = vmatpush2.bf16.msra.mxu0 0
          %714 = vmatprep.subr.bf16.mxu0 0
          %715 = vmatpush2.bf16.msra.mxu0 0
          %716 = vmatprep.subr.bf16.mxu0 0
          %717 = vmatpush2.bf16.msra.mxu0 0
          %718 = vmatprep.subr.bf16.mxu0 0
          %719 = vmatpush2.bf16.msra.mxu0 0
          %720 = vmatprep.mubr.bf16.mxu0 0
          %721 = vmatmul.mubr.bf16.gmra.mxu0 %v686
          %v722 = vpop.f32.mrf.mxu0
          %v723 = vadd.f32 0.0, %v722
          %v724 = vpop.f32.mrf.mxu0
          %v725 = vpop.f32.mrf.mxu0
          %v726 = vadd.f32 0.0, %v725
          %v727 = vpop.f32.mrf.mxu0
          %728 = vdwg.mxu0
          %v731 = vunpack.c.l.b16 %v385
          %v732 = vunpack.c.l.b16 %v386
          %v733 = vpack.c.b16 %v732, %v731
          %v738 = vunpack.c.l.b16 %v407
          %v739 = vunpack.c.l.b16 %v408
          %v740 = vunpack.c.l.b16 %v409
          %v741 = vunpack.c.l.b16 %v410
          %v742 = vpack.c.b16 %v739, %v738
          %v743 = vpack.c.b16 %v741, %v740
          %v747 = vsel %vm440, %v733, 0
          %749 = vmatprep.subr.bf16.mxu0 0
          %750 = vmatpush1.bf16.msra.mxu0 0
          %751 = vmatprep.subr.bf16.mxu0 0
          %752 = vmatpush1.bf16.msra.mxu0 0
          %753 = vmatprep.subr.bf16.mxu0 0
          %754 = vmatpush1.bf16.msra.mxu0 0
          %755 = vmatprep.subr.bf16.mxu0 0
          %756 = vmatpush1.bf16.msra.mxu0 0
          %757 = vmatprep.subr.bf16.mxu0 0
          %758 = vmatpush1.bf16.msra.mxu0 0
          %759 = vmatprep.subr.bf16.mxu0 0
          %760 = vmatpush1.bf16.msra.mxu0 0
          %761 = vmatprep.subr.bf16.mxu0 0
          %762 = vmatpush1.bf16.msra.mxu0 %v743
          %763 = vmatprep.subr.bf16.mxu0 0
          %764 = vmatpush1.bf16.msra.mxu0 %v742
          %765 = vmatprep.subr.bf16.mxu0 0
          %766 = vmatpush2.bf16.msra.mxu0 0
          %767 = vmatprep.subr.bf16.mxu0 0
          %768 = vmatpush2.bf16.msra.mxu0 0
          %769 = vmatprep.subr.bf16.mxu0 0
          %770 = vmatpush2.bf16.msra.mxu0 0
          %771 = vmatprep.subr.bf16.mxu0 0
          %772 = vmatpush2.bf16.msra.mxu0 0
          %773 = vmatprep.subr.bf16.mxu0 0
          %774 = vmatpush2.bf16.msra.mxu0 0
          %775 = vmatprep.subr.bf16.mxu0 0
          %776 = vmatpush2.bf16.msra.mxu0 0
          %777 = vmatprep.subr.bf16.mxu0 0
          %778 = vmatpush2.bf16.msra.mxu0 0
          %779 = vmatprep.subr.bf16.mxu0 0
          %780 = vmatpush2.bf16.msra.mxu0 0
          %781 = vmatprep.mubr.bf16.mxu0 0
          %782 = vmatmul.mubr.bf16.gmra.mxu0 %v747
          %v783 = vpop.f32.mrf.mxu0
          %v784 = vadd.f32 0.0, %v783
          %v785 = vpop.f32.mrf.mxu0
          %v786 = vpop.f32.mrf.mxu0
          %v787 = vadd.f32 0.0, %v786
          %v788 = vpop.f32.mrf.mxu0
          %789 = vdwg.mxu0
          %s790 = smul.u32 %s25, 16
          %v791 = vlaneseq
          %v792 = vshrl.u32 %v791, 7
          %v793 = vadd.s32 %v792, 8
          %v794 = vstv %s790
          %v795 = vadd.s32 %v794, %v792
          %v796 = vadd.s32 %v794, %v793
          %s797 = smul.u32 %s26, 16
          %v798 = vlaneseq
          %v799 = vand.u32 %v798, 127
          %v800 = vstv %s797
          %v801 = vadd.s32 %v800, %v799
          %vm802 = vcmp.ge.s32.totalorder %v795, %v801
          %vm803 = vcmp.ge.s32.totalorder %v796, %v801
          %v804 = vsel %vm802, 1, 0
          %v805 = vsel %vm803, 1, 0
          %vm806 = vcmp.eq.s32.totalorder %v804, 1
          %vm807 = vcmp.eq.s32.totalorder %v805, 1
          %v808 = vsel %vm806, %v479, -1e+30
          %v809 = vsel %vm807, %v482, -1e+30
          %v810 = vsel %vm806, %v540, -1e+30
          %v811 = vsel %vm807, %v543, -1e+30
          %v812 = vsel %vm806, %v601, -1e+30
          %v813 = vsel %vm807, %v604, -1e+30
          %v814 = vsel %vm806, %v662, -1e+30
          %v815 = vsel %vm807, %v665, -1e+30
          %v816 = vsel %vm806, %v723, -1e+30
          %v817 = vsel %vm807, %v726, -1e+30
          %v818 = vsel %vm806, %v784, -1e+30
          %v819 = vsel %vm807, %v787, -1e+30
          %v820 = vld [vmem:[#allocation2] sm:$0xff]
          %v821 = vld [vmem:[#allocation2 + $0x8] sm:$0xff]
          %v822 = vld [vmem:[#allocation2 + $0x10] sm:$0xff]
          %v823 = vld [vmem:[#allocation2 + $0x18] sm:$0xff]
          %v824 = vld [vmem:[#allocation2 + $0x20] sm:$0xff]
          %v825 = vld [vmem:[#allocation2 + $0x28] sm:$0xff]
          %v826 = vld [vmem:[#allocation2 + $0x30] sm:$0xff]
          %v827 = vld [vmem:[#allocation2 + $0x38] sm:$0xff]
          %v828 = vld [vmem:[#allocation2 + $0x40] sm:$0xff]
          %v829 = vld [vmem:[#allocation2 + $0x48] sm:$0xff]
          %v830 = vld [vmem:[#allocation2 + $0x50] sm:$0xff]
          %v831 = vld [vmem:[#allocation2 + $0x58] sm:$0xff]
          %vm832 = vcmask 130048
          %v833 = vsel %vm832, %v808, -inf
          %834 = vmax.xlane.f32.xlu0 %v833
          %v835 = vpop.xlane.xlu0 %834
          %v836 = vsel %vm832, %v809, -inf
          %837 = vmax.xlane.f32.xlu0 %v836
          %v838 = vpop.xlane.xlu0 %837
          %v839 = vsel %vm832, %v810, -inf
          %840 = vmax.xlane.f32.xlu0 %v839
          %v841 = vpop.xlane.xlu0 %840
          %v842 = vsel %vm832, %v811, -inf
          %843 = vmax.xlane.f32.xlu0 %v842
          %v844 = vpop.xlane.xlu0 %843
          %v845 = vsel %vm832, %v812, -inf
          %846 = vmax.xlane.f32.xlu0 %v845
          %v847 = vpop.xlane.xlu0 %846
          %v848 = vsel %vm832, %v813, -inf
          %849 = vmax.xlane.f32.xlu0 %v848
          %v850 = vpop.xlane.xlu0 %849
          %v851 = vsel %vm832, %v814, -inf
          %852 = vmax.xlane.f32.xlu0 %v851
          %v853 = vpop.xlane.xlu0 %852
          %v854 = vsel %vm832, %v815, -inf
          %855 = vmax.xlane.f32.xlu0 %v854
          %v856 = vpop.xlane.xlu0 %855
          %v857 = vsel %vm832, %v816, -inf
          %858 = vmax.xlane.f32.xlu0 %v857
          %v859 = vpop.xlane.xlu0 %858
          %v860 = vsel %vm832, %v817, -inf
          %861 = vmax.xlane.f32.xlu0 %v860
          %v862 = vpop.xlane.xlu0 %861
          %v863 = vsel %vm832, %v818, -inf
          %864 = vmax.xlane.f32.xlu0 %v863
          %v865 = vpop.xlane.xlu0 %864
          %v866 = vsel %vm832, %v819, -inf
          %867 = vmax.xlane.f32.xlu0 %v866
          %v868 = vpop.xlane.xlu0 %867
          %v869 = vmax.f32 %v820, %v835
          %v870 = vmax.f32 %v821, %v838
          %v871 = vmax.f32 %v822, %v841
          %v872 = vmax.f32 %v823, %v844
          %v873 = vmax.f32 %v824, %v847
          %v874 = vmax.f32 %v825, %v850
          %v875 = vmax.f32 %v826, %v853
          %v876 = vmax.f32 %v827, %v856
          %v877 = vmax.f32 %v828, %v859
          %v878 = vmax.f32 %v829, %v862
          %v879 = vmax.f32 %v830, %v865
          %v880 = vmax.f32 %v831, %v868
          %v881 = vsub.f32 %v820, %v869
          %v882 = vsub.f32 %v821, %v870
          %v883 = vsub.f32 %v822, %v871
          %v884 = vsub.f32 %v823, %v872
          %v885 = vsub.f32 %v824, %v873
          %v886 = vsub.f32 %v825, %v874
          %v887 = vsub.f32 %v826, %v875
          %v888 = vsub.f32 %v827, %v876
          %v889 = vsub.f32 %v828, %v877
          %v890 = vsub.f32 %v829, %v878
          %v891 = vsub.f32 %v830, %v879
          %v892 = vsub.f32 %v831, %v880
          %v893 = vmul.f32 %v881, 1.442695
          %v894 = vpow.pop %v893
          %v895 = vmul.f32 %v882, 1.442695
          %v896 = vpow.pop %v895
          %v897 = vmul.f32 %v883, 1.442695
          %v898 = vpow.pop %v897
          %v899 = vmul.f32 %v884, 1.442695
          %v900 = vpow.pop %v899
          %v901 = vmul.f32 %v885, 1.442695
          %v902 = vpow.pop %v901
          %v903 = vmul.f32 %v886, 1.442695
          %v904 = vpow.pop %v903
          %v905 = vmul.f32 %v887, 1.442695
          %v906 = vpow.pop %v905
          %v907 = vmul.f32 %v888, 1.442695
          %v908 = vpow.pop %v907
          %v909 = vmul.f32 %v889, 1.442695
          %v910 = vpow.pop %v909
          %v911 = vmul.f32 %v890, 1.442695
          %v912 = vpow.pop %v911
          %v913 = vmul.f32 %v891, 1.442695
          %v914 = vpow.pop %v913
          %v915 = vmul.f32 %v892, 1.442695
          %v916 = vpow.pop %v915
          %918 = vset.pattern.permute.xlu0 0
          %919 = vperm.xlu0 %918, %v869
          %v920 = vpop.permute.xlu0 %919
          %923 = vset.pattern.permute.xlu0 0
          %924 = vperm.xlu0 %923, %v870
          %v925 = vpop.permute.xlu0 %924
          %928 = vset.pattern.permute.xlu0 0
          %929 = vperm.xlu0 %928, %v871
          %v930 = vpop.permute.xlu0 %929
          %933 = vset.pattern.permute.xlu0 0
          %934 = vperm.xlu0 %933, %v872
          %v935 = vpop.permute.xlu0 %934
          %938 = vset.pattern.permute.xlu0 0
          %939 = vperm.xlu0 %938, %v873
          %v940 = vpop.permute.xlu0 %939
          %943 = vset.pattern.permute.xlu0 0
          %944 = vperm.xlu0 %943, %v874
          %v945 = vpop.permute.xlu0 %944
          %948 = vset.pattern.permute.xlu0 0
          %949 = vperm.xlu0 %948, %v875
          %v950 = vpop.permute.xlu0 %949
          %953 = vset.pattern.permute.xlu0 0
          %954 = vperm.xlu0 %953, %v876
          %v955 = vpop.permute.xlu0 %954
          %958 = vset.pattern.permute.xlu0 0
          %959 = vperm.xlu0 %958, %v877
          %v960 = vpop.permute.xlu0 %959
          %963 = vset.pattern.permute.xlu0 0
          %964 = vperm.xlu0 %963, %v878
          %v965 = vpop.permute.xlu0 %964
          %968 = vset.pattern.permute.xlu0 0
          %969 = vperm.xlu0 %968, %v879
          %v970 = vpop.permute.xlu0 %969
          %973 = vset.pattern.permute.xlu0 0
          %974 = vperm.xlu0 %973, %v880
          %v975 = vpop.permute.xlu0 %974
          %v977 = vsub.f32 %v808, %v920
          %v978 = vsub.f32 %v809, %v925
          %v979 = vsub.f32 %v810, %v930
          %v980 = vsub.f32 %v811, %v935
          %v981 = vsub.f32 %v812, %v940
          %v982 = vsub.f32 %v813, %v945
          %v983 = vsub.f32 %v814, %v950
          %v984 = vsub.f32 %v815, %v955
          %v985 = vsub.f32 %v816, %v960
          %v986 = vsub.f32 %v817, %v965
          %v987 = vsub.f32 %v818, %v970
          %v988 = vsub.f32 %v819, %v975
          %v989 = vmul.f32 %v977, 1.442695
          %v990 = vpow.pop %v989
          %v991 = vmul.f32 %v978, 1.442695
          %v992 = vpow.pop %v991
          %v993 = vmul.f32 %v979, 1.442695
          %v994 = vpow.pop %v993
          %v995 = vmul.f32 %v980, 1.442695
          %v996 = vpow.pop %v995
          %v997 = vmul.f32 %v981, 1.442695
          %v998 = vpow.pop %v997
          %v999 = vmul.f32 %v982, 1.442695
          %v1000 = vpow.pop %v999
          %v1001 = vmul.f32 %v983, 1.442695
          %v1002 = vpow.pop %v1001
          %v1003 = vmul.f32 %v984, 1.442695
          %v1004 = vpow.pop %v1003
          %v1005 = vmul.f32 %v985, 1.442695
          %v1006 = vpow.pop %v1005
          %v1007 = vmul.f32 %v986, 1.442695
          %v1008 = vpow.pop %v1007
          %v1009 = vmul.f32 %v987, 1.442695
          %v1010 = vpow.pop %v1009
          %v1011 = vmul.f32 %v988, 1.442695
          %v1012 = vpow.pop %v1011
          %v1013 = vld [vmem:[#allocation3] sm:$0xff]
          %v1014 = vld [vmem:[#allocation3 + $0x8] sm:$0xff]
          %v1015 = vld [vmem:[#allocation3 + $0x10] sm:$0xff]
          %v1016 = vld [vmem:[#allocation3 + $0x18] sm:$0xff]
          %v1017 = vld [vmem:[#allocation3 + $0x20] sm:$0xff]
          %v1018 = vld [vmem:[#allocation3 + $0x28] sm:$0xff]
          %v1019 = vld [vmem:[#allocation3 + $0x30] sm:$0xff]
          %v1020 = vld [vmem:[#allocation3 + $0x38] sm:$0xff]
          %v1021 = vld [vmem:[#allocation3 + $0x40] sm:$0xff]
          %v1022 = vld [vmem:[#allocation3 + $0x48] sm:$0xff]
          %v1023 = vld [vmem:[#allocation3 + $0x50] sm:$0xff]
          %v1024 = vld [vmem:[#allocation3 + $0x58] sm:$0xff]
          %v1025 = vmul.f32 %v894, %v1013
          %v1026 = vmul.f32 %v896, %v1014
          %v1027 = vmul.f32 %v898, %v1015
          %v1028 = vmul.f32 %v900, %v1016
          %v1029 = vmul.f32 %v902, %v1017
          %v1030 = vmul.f32 %v904, %v1018
          %v1031 = vmul.f32 %v906, %v1019
          %v1032 = vmul.f32 %v908, %v1020
          %v1033 = vmul.f32 %v910, %v1021
          %v1034 = vmul.f32 %v912, %v1022
          %v1035 = vmul.f32 %v914, %v1023
          %v1036 = vmul.f32 %v916, %v1024
          %v1037 = vsel %vm832, %v990, 0.0
          %1038 = vadd.xlane.f32.xlu0 %v1037
          %v1039 = vpop.xlane.xlu0 %1038
          %v1040 = vsel %vm832, %v992, 0.0
          %1041 = vadd.xlane.f32.xlu0 %v1040
          %v1042 = vpop.xlane.xlu0 %1041
          %v1043 = vsel %vm832, %v994, 0.0
          %1044 = vadd.xlane.f32.xlu0 %v1043
          %v1045 = vpop.xlane.xlu0 %1044
          %v1046 = vsel %vm832, %v996, 0.0
          %1047 = vadd.xlane.f32.xlu0 %v1046
          %v1048 = vpop.xlane.xlu0 %1047
          %v1049 = vsel %vm832, %v998, 0.0
          %1050 = vadd.xlane.f32.xlu0 %v1049
          %v1051 = vpop.xlane.xlu0 %1050
          %v1052 = vsel %vm832, %v1000, 0.0
          %1053 = vadd.xlane.f32.xlu0 %v1052
          %v1054 = vpop.xlane.xlu0 %1053
          %v1055 = vsel %vm832, %v1002, 0.0
          %1056 = vadd.xlane.f32.xlu0 %v1055
          %v1057 = vpop.xlane.xlu0 %1056
          %v1058 = vsel %vm832, %v1004, 0.0
          %1059 = vadd.xlane.f32.xlu0 %v1058
          %v1060 = vpop.xlane.xlu0 %1059
          %v1061 = vsel %vm832, %v1006, 0.0
          %1062 = vadd.xlane.f32.xlu0 %v1061
          %v1063 = vpop.xlane.xlu0 %1062
          %v1064 = vsel %vm832, %v1008, 0.0
          %1065 = vadd.xlane.f32.xlu0 %v1064
          %v1066 = vpop.xlane.xlu0 %1065
          %v1067 = vsel %vm832, %v1010, 0.0
          %1068 = vadd.xlane.f32.xlu0 %v1067
          %v1069 = vpop.xlane.xlu0 %1068
          %v1070 = vsel %vm832, %v1012, 0.0
          %1071 = vadd.xlane.f32.xlu0 %v1070
          %v1072 = vpop.xlane.xlu0 %1071
          %v1073 = vadd.f32 %v1025, %v1039
          %v1074 = vadd.f32 %v1026, %v1042
          %v1075 = vadd.f32 %v1027, %v1045
          %v1076 = vadd.f32 %v1028, %v1048
          %v1077 = vadd.f32 %v1029, %v1051
          %v1078 = vadd.f32 %v1030, %v1054
          %v1079 = vadd.f32 %v1031, %v1057
          %v1080 = vadd.f32 %v1032, %v1060
          %v1081 = vadd.f32 %v1033, %v1063
          %v1082 = vadd.f32 %v1034, %v1066
          %v1083 = vadd.f32 %v1035, %v1069
          %v1084 = vadd.f32 %v1036, %v1072
          %vm1085 = vcmask 7168
          %1086 = vst.msk [vmem:[#allocation3] sm:$0xff] %vm1085, %v1073
          %1087 = vst.msk [vmem:[#allocation3 + $0x8] sm:$0xff] %vm1085, %v1074
          %1088 = vst.msk [vmem:[#allocation3 + $0x10] sm:$0xff] %vm1085, %v1075
          %1089 = vst.msk [vmem:[#allocation3 + $0x18] sm:$0xff] %vm1085, %v1076
          %1090 = vst.msk [vmem:[#allocation3 + $0x20] sm:$0xff] %vm1085, %v1077
          %1091 = vst.msk [vmem:[#allocation3 + $0x28] sm:$0xff] %vm1085, %v1078
          %1092 = vst.msk [vmem:[#allocation3 + $0x30] sm:$0xff] %vm1085, %v1079
          %1093 = vst.msk [vmem:[#allocation3 + $0x38] sm:$0xff] %vm1085, %v1080
          %1094 = vst.msk [vmem:[#allocation3 + $0x40] sm:$0xff] %vm1085, %v1081
          %1095 = vst.msk [vmem:[#allocation3 + $0x48] sm:$0xff] %vm1085, %v1082
          %1096 = vst.msk [vmem:[#allocation3 + $0x50] sm:$0xff] %vm1085, %v1083
          %1097 = vst.msk [vmem:[#allocation3 + $0x58] sm:$0xff] %vm1085, %v1084
          %v1098 = vld [vmem:[#allocation4] sm:$0xff]
          %v1099 = vld [vmem:[#allocation4 + $0x8] sm:$0xff]
          %v1100 = vld [vmem:[#allocation4 + $0x10] sm:$0xff]
          %v1101 = vld [vmem:[#allocation4 + $0x18] sm:$0xff]
          %v1102 = vld [vmem:[#allocation4 + $0x20] sm:$0xff]
          %v1103 = vld [vmem:[#allocation4 + $0x28] sm:$0xff]
          %v1104 = vld [vmem:[#allocation4 + $0x30] sm:$0xff]
          %v1105 = vld [vmem:[#allocation4 + $0x38] sm:$0xff]
          %v1106 = vld [vmem:[#allocation4 + $0x40] sm:$0xff]
          %v1107 = vld [vmem:[#allocation4 + $0x48] sm:$0xff]
          %v1108 = vld [vmem:[#allocation4 + $0x50] sm:$0xff]
          %v1109 = vld [vmem:[#allocation4 + $0x58] sm:$0xff]
          %1111 = vset.pattern.permute.xlu0 0
          %1112 = vperm.xlu0 %1111, %v894
          %v1113 = vpop.permute.xlu0 %1112
          %1116 = vset.pattern.permute.xlu0 0
          %1117 = vperm.xlu0 %1116, %v896
          %v1118 = vpop.permute.xlu0 %1117
          %1121 = vset.pattern.permute.xlu0 0
          %1122 = vperm.xlu0 %1121, %v898
          %v1123 = vpop.permute.xlu0 %1122
          %1126 = vset.pattern.permute.xlu0 0
          %1127 = vperm.xlu0 %1126, %v900
          %v1128 = vpop.permute.xlu0 %1127
          %1131 = vset.pattern.permute.xlu0 0
          %1132 = vperm.xlu0 %1131, %v902
          %v1133 = vpop.permute.xlu0 %1132
          %1136 = vset.pattern.permute.xlu0 0
          %1137 = vperm.xlu0 %1136, %v904
          %v1138 = vpop.permute.xlu0 %1137
          %1141 = vset.pattern.permute.xlu0 0
          %1142 = vperm.xlu0 %1141, %v906
          %v1143 = vpop.permute.xlu0 %1142
          %1146 = vset.pattern.permute.xlu0 0
          %1147 = vperm.xlu0 %1146, %v908
          %v1148 = vpop.permute.xlu0 %1147
          %1151 = vset.pattern.permute.xlu0 0
          %1152 = vperm.xlu0 %1151, %v910
          %v1153 = vpop.permute.xlu0 %1152
          %1156 = vset.pattern.permute.xlu0 0
          %1157 = vperm.xlu0 %1156, %v912
          %v1158 = vpop.permute.xlu0 %1157
          %1161 = vset.pattern.permute.xlu0 0
          %1162 = vperm.xlu0 %1161, %v914
          %v1163 = vpop.permute.xlu0 %1162
          %1166 = vset.pattern.permute.xlu0 0
          %1167 = vperm.xlu0 %1166, %v916
          %v1168 = vpop.permute.xlu0 %1167
          %v1170 = vmul.f32 %v1113, %v1098
          %v1171 = vmul.f32 %v1118, %v1099
          %v1172 = vmul.f32 %v1123, %v1100
          %v1173 = vmul.f32 %v1128, %v1101
          %v1174 = vmul.f32 %v1133, %v1102
          %v1175 = vmul.f32 %v1138, %v1103
          %v1176 = vmul.f32 %v1143, %v1104
          %v1177 = vmul.f32 %v1148, %v1105
          %v1178 = vmul.f32 %v1153, %v1106
          %v1179 = vmul.f32 %v1158, %v1107
          %v1180 = vmul.f32 %v1163, %v1108
          %v1181 = vmul.f32 %v1168, %v1109
          %v1182 = vpack.c.bf16 %v992, %v990
          %v1183 = vpack.c.bf16 %v996, %v994
          %v1184 = vpack.c.bf16 %v1000, %v998
          %v1185 = vpack.c.bf16 %v1004, %v1002
          %v1186 = vpack.c.bf16 %v1008, %v1006
          %v1187 = vpack.c.bf16 %v1012, %v1010
          %v1190 = vunpack.c.l.b16 %v411
          %v1191 = vunpack.c.l.b16 %v412
          %v1192 = vpack.c.b16 %v1191, %v1190
          %v1195 = vsel %vm832, %v1182, 0
          %1197 = vmatprep.subr.bf16.mxu0 0
          %1198 = vmatpush1.bf16.msra.mxu0 0
          %1199 = vmatprep.subr.bf16.mxu0 0
          %1200 = vmatpush1.bf16.msra.mxu0 0
          %1201 = vmatprep.subr.bf16.mxu0 0
          %1202 = vmatpush1.bf16.msra.mxu0 0
          %1203 = vmatprep.subr.bf16.mxu0 0
          %1204 = vmatpush1.bf16.msra.mxu0 0
          %1205 = vmatprep.subr.bf16.mxu0 0
          %1206 = vmatpush1.bf16.msra.mxu0 0
          %1207 = vmatprep.subr.bf16.mxu0 0
          %1208 = vmatpush1.bf16.msra.mxu0 0
          %1209 = vmatprep.subr.bf16.mxu0 0
          %1210 = vmatpush1.bf16.msra.mxu0 0
          %1211 = vmatprep.subr.bf16.mxu0 0
          %1212 = vmatpush1.bf16.msra.mxu0 %v1192
          %1213 = vmatprep.subr.bf16.mxu0 0
          %1214 = vmatpush2.bf16.msra.mxu0 0
          %1215 = vmatprep.subr.bf16.mxu0 0
          %1216 = vmatpush2.bf16.msra.mxu0 0
          %1217 = vmatprep.subr.bf16.mxu0 0
          %1218 = vmatpush2.bf16.msra.mxu0 0
          %1219 = vmatprep.subr.bf16.mxu0 0
          %1220 = vmatpush2.bf16.msra.mxu0 0
          %1221 = vmatprep.subr.bf16.mxu0 0
          %1222 = vmatpush2.bf16.msra.mxu0 0
          %1223 = vmatprep.subr.bf16.mxu0 0
          %1224 = vmatpush2.bf16.msra.mxu0 0
          %1225 = vmatprep.subr.bf16.mxu0 0
          %1226 = vmatpush2.bf16.msra.mxu0 0
          %1227 = vmatprep.subr.bf16.mxu0 0
          %1228 = vmatpush2.bf16.msra.mxu0 0
          %1229 = vmatprep.mubr.bf16.mxu0 0
          %1230 = vmatmul.mubr.bf16.gmra.mxu0 %v1195
          %v1231 = vpop.f32.mrf.mxu0
          %v1232 = vadd.f32 0.0, %v1231
          %v1233 = vpop.f32.mrf.mxu0
          %v1234 = vpop.f32.mrf.mxu0
          %v1235 = vadd.f32 0.0, %v1234
          %v1236 = vpop.f32.mrf.mxu0
          %1237 = vdwg.mxu0
          %v1240 = vunpack.c.l.b16 %v413
          %v1241 = vunpack.c.l.b16 %v414
          %v1242 = vpack.c.b16 %v1241, %v1240
          %v1245 = vsel %vm832, %v1183, 0
          %1247 = vmatprep.subr.bf16.mxu0 0
          %1248 = vmatpush1.bf16.msra.mxu0 0
          %1249 = vmatprep.subr.bf16.mxu0 0
          %1250 = vmatpush1.bf16.msra.mxu0 0
          %1251 = vmatprep.subr.bf16.mxu0 0
          %1252 = vmatpush1.bf16.msra.mxu0 0
          %1253 = vmatprep.subr.bf16.mxu0 0
          %1254 = vmatpush1.bf16.msra.mxu0 0
          %1255 = vmatprep.subr.bf16.mxu0 0
          %1256 = vmatpush1.bf16.msra.mxu0 0
          %1257 = vmatprep.subr.bf16.mxu0 0
          %1258 = vmatpush1.bf16.msra.mxu0 0
          %1259 = vmatprep.subr.bf16.mxu0 0
          %1260 = vmatpush1.bf16.msra.mxu0 0
          %1261 = vmatprep.subr.bf16.mxu0 0
          %1262 = vmatpush1.bf16.msra.mxu0 %v1242
          %1263 = vmatprep.subr.bf16.mxu0 0
          %1264 = vmatpush2.bf16.msra.mxu0 0
          %1265 = vmatprep.subr.bf16.mxu0 0
          %1266 = vmatpush2.bf16.msra.mxu0 0
          %1267 = vmatprep.subr.bf16.mxu0 0
          %1268 = vmatpush2.bf16.msra.mxu0 0
          %1269 = vmatprep.subr.bf16.mxu0 0
          %1270 = vmatpush2.bf16.msra.mxu0 0
          %1271 = vmatprep.subr.bf16.mxu0 0
          %1272 = vmatpush2.bf16.msra.mxu0 0
          %1273 = vmatprep.subr.bf16.mxu0 0
          %1274 = vmatpush2.bf16.msra.mxu0 0
          %1275 = vmatprep.subr.bf16.mxu0 0
          %1276 = vmatpush2.bf16.msra.mxu0 0
          %1277 = vmatprep.subr.bf16.mxu0 0
          %1278 = vmatpush2.bf16.msra.mxu0 0
          %1279 = vmatprep.mubr.bf16.mxu0 0
          %1280 = vmatmul.mubr.bf16.gmra.mxu0 %v1245
          %v1281 = vpop.f32.mrf.mxu0
          %v1282 = vadd.f32 0.0, %v1281
          %v1283 = vpop.f32.mrf.mxu0
          %v1284 = vpop.f32.mrf.mxu0
          %v1285 = vadd.f32 0.0, %v1284
          %v1286 = vpop.f32.mrf.mxu0
          %1287 = vdwg.mxu0
          %v1290 = vunpack.c.l.b16 %v415
          %v1291 = vunpack.c.l.b16 %v416
          %v1292 = vpack.c.b16 %v1291, %v1290
          %v1295 = vsel %vm832, %v1184, 0
          %1297 = vmatprep.subr.bf16.mxu0 0
          %1298 = vmatpush1.bf16.msra.mxu0 0
          %1299 = vmatprep.subr.bf16.mxu0 0
          %1300 = vmatpush1.bf16.msra.mxu0 0
          %1301 = vmatprep.subr.bf16.mxu0 0
          %1302 = vmatpush1.bf16.msra.mxu0 0
          %1303 = vmatprep.subr.bf16.mxu0 0
          %1304 = vmatpush1.bf16.msra.mxu0 0
          %1305 = vmatprep.subr.bf16.mxu0 0
          %1306 = vmatpush1.bf16.msra.mxu0 0
          %1307 = vmatprep.subr.bf16.mxu0 0
          %1308 = vmatpush1.bf16.msra.mxu0 0
          %1309 = vmatprep.subr.bf16.mxu0 0
          %1310 = vmatpush1.bf16.msra.mxu0 0
          %1311 = vmatprep.subr.bf16.mxu0 0
          %1312 = vmatpush1.bf16.msra.mxu0 %v1292
          %1313 = vmatprep.subr.bf16.mxu0 0
          %1314 = vmatpush2.bf16.msra.mxu0 0
          %1315 = vmatprep.subr.bf16.mxu0 0
          %1316 = vmatpush2.bf16.msra.mxu0 0
          %1317 = vmatprep.subr.bf16.mxu0 0
          %1318 = vmatpush2.bf16.msra.mxu0 0
          %1319 = vmatprep.subr.bf16.mxu0 0
          %1320 = vmatpush2.bf16.msra.mxu0 0
          %1321 = vmatprep.subr.bf16.mxu0 0
          %1322 = vmatpush2.bf16.msra.mxu0 0
          %1323 = vmatprep.subr.bf16.mxu0 0
          %1324 = vmatpush2.bf16.msra.mxu0 0
          %1325 = vmatprep.subr.bf16.mxu0 0
          %1326 = vmatpush2.bf16.msra.mxu0 0
          %1327 = vmatprep.subr.bf16.mxu0 0
          %1328 = vmatpush2.bf16.msra.mxu0 0
          %1329 = vmatprep.mubr.bf16.mxu0 0
          %1330 = vmatmul.mubr.bf16.gmra.mxu0 %v1295
          %v1331 = vpop.f32.mrf.mxu0
          %v1332 = vadd.f32 0.0, %v1331
          %v1333 = vpop.f32.mrf.mxu0
          %v1334 = vpop.f32.mrf.mxu0
          %v1335 = vadd.f32 0.0, %v1334
          %v1336 = vpop.f32.mrf.mxu0
          %1337 = vdwg.mxu0
          %v1340 = vunpack.c.l.b16 %v417
          %v1341 = vunpack.c.l.b16 %v418
          %v1342 = vpack.c.b16 %v1341, %v1340
          %v1345 = vsel %vm832, %v1185, 0
          %1347 = vmatprep.subr.bf16.mxu0 0
          %1348 = vmatpush1.bf16.msra.mxu0 0
          %1349 = vmatprep.subr.bf16.mxu0 0
          %1350 = vmatpush1.bf16.msra.mxu0 0
          %1351 = vmatprep.subr.bf16.mxu0 0
          %1352 = vmatpush1.bf16.msra.mxu0 0
          %1353 = vmatprep.subr.bf16.mxu0 0
          %1354 = vmatpush1.bf16.msra.mxu0 0
          %1355 = vmatprep.subr.bf16.mxu0 0
          %1356 = vmatpush1.bf16.msra.mxu0 0
          %1357 = vmatprep.subr.bf16.mxu0 0
          %1358 = vmatpush1.bf16.msra.mxu0 0
          %1359 = vmatprep.subr.bf16.mxu0 0
          %1360 = vmatpush1.bf16.msra.mxu0 0
          %1361 = vmatprep.subr.bf16.mxu0 0
          %1362 = vmatpush1.bf16.msra.mxu0 %v1342
          %1363 = vmatprep.subr.bf16.mxu0 0
          %1364 = vmatpush2.bf16.msra.mxu0 0
          %1365 = vmatprep.subr.bf16.mxu0 0
          %1366 = vmatpush2.bf16.msra.mxu0 0
          %1367 = vmatprep.subr.bf16.mxu0 0
          %1368 = vmatpush2.bf16.msra.mxu0 0
          %1369 = vmatprep.subr.bf16.mxu0 0
          %1370 = vmatpush2.bf16.msra.mxu0 0
          %1371 = vmatprep.subr.bf16.mxu0 0
          %1372 = vmatpush2.bf16.msra.mxu0 0
          %1373 = vmatprep.subr.bf16.mxu0 0
          %1374 = vmatpush2.bf16.msra.mxu0 0
          %1375 = vmatprep.subr.bf16.mxu0 0
          %1376 = vmatpush2.bf16.msra.mxu0 0
          %1377 = vmatprep.subr.bf16.mxu0 0
          %1378 = vmatpush2.bf16.msra.mxu0 0
          %1379 = vmatprep.mubr.bf16.mxu0 0
          %1380 = vmatmul.mubr.bf16.gmra.mxu0 %v1345
          %v1381 = vpop.f32.mrf.mxu0
          %v1382 = vadd.f32 0.0, %v1381
          %v1383 = vpop.f32.mrf.mxu0
          %v1384 = vpop.f32.mrf.mxu0
          %v1385 = vadd.f32 0.0, %v1384
          %v1386 = vpop.f32.mrf.mxu0
          %1387 = vdwg.mxu0
          %v1390 = vunpack.c.l.b16 %v419
          %v1391 = vunpack.c.l.b16 %v420
          %v1392 = vpack.c.b16 %v1391, %v1390
          %v1395 = vsel %vm832, %v1186, 0
          %1397 = vmatprep.subr.bf16.mxu0 0
          %1398 = vmatpush1.bf16.msra.mxu0 0
          %1399 = vmatprep.subr.bf16.mxu0 0
          %1400 = vmatpush1.bf16.msra.mxu0 0
          %1401 = vmatprep.subr.bf16.mxu0 0
          %1402 = vmatpush1.bf16.msra.mxu0 0
          %1403 = vmatprep.subr.bf16.mxu0 0
          %1404 = vmatpush1.bf16.msra.mxu0 0
          %1405 = vmatprep.subr.bf16.mxu0 0
          %1406 = vmatpush1.bf16.msra.mxu0 0
          %1407 = vmatprep.subr.bf16.mxu0 0
          %1408 = vmatpush1.bf16.msra.mxu0 0
          %1409 = vmatprep.subr.bf16.mxu0 0
          %1410 = vmatpush1.bf16.msra.mxu0 0
          %1411 = vmatprep.subr.bf16.mxu0 0
          %1412 = vmatpush1.bf16.msra.mxu0 %v1392
          %1413 = vmatprep.subr.bf16.mxu0 0
          %1414 = vmatpush2.bf16.msra.mxu0 0
          %1415 = vmatprep.subr.bf16.mxu0 0
          %1416 = vmatpush2.bf16.msra.mxu0 0
          %1417 = vmatprep.subr.bf16.mxu0 0
          %1418 = vmatpush2.bf16.msra.mxu0 0
          %1419 = vmatprep.subr.bf16.mxu0 0
          %1420 = vmatpush2.bf16.msra.mxu0 0
          %1421 = vmatprep.subr.bf16.mxu0 0
          %1422 = vmatpush2.bf16.msra.mxu0 0
          %1423 = vmatprep.subr.bf16.mxu0 0
          %1424 = vmatpush2.bf16.msra.mxu0 0
          %1425 = vmatprep.subr.bf16.mxu0 0
          %1426 = vmatpush2.bf16.msra.mxu0 0
          %1427 = vmatprep.subr.bf16.mxu0 0
          %1428 = vmatpush2.bf16.msra.mxu0 0
          %1429 = vmatprep.mubr.bf16.mxu0 0
          %1430 = vmatmul.mubr.bf16.gmra.mxu0 %v1395
          %v1431 = vpop.f32.mrf.mxu0
          %v1432 = vadd.f32 0.0, %v1431
          %v1433 = vpop.f32.mrf.mxu0
          %v1434 = vpop.f32.mrf.mxu0
          %v1435 = vadd.f32 0.0, %v1434
          %v1436 = vpop.f32.mrf.mxu0
          %1437 = vdwg.mxu0
          %v1440 = vunpack.c.l.b16 %v421
          %v1441 = vunpack.c.l.b16 %v422
          %v1442 = vpack.c.b16 %v1441, %v1440
          %v1445 = vsel %vm832, %v1187, 0
          %1447 = vmatprep.subr.bf16.mxu0 0
          %1448 = vmatpush1.bf16.msra.mxu0 0
          %1449 = vmatprep.subr.bf16.mxu0 0
          %1450 = vmatpush1.bf16.msra.mxu0 0
          %1451 = vmatprep.subr.bf16.mxu0 0
          %1452 = vmatpush1.bf16.msra.mxu0 0
          %1453 = vmatprep.subr.bf16.mxu0 0
          %1454 = vmatpush1.bf16.msra.mxu0 0
          %1455 = vmatprep.subr.bf16.mxu0 0
          %1456 = vmatpush1.bf16.msra.mxu0 0
          %1457 = vmatprep.subr.bf16.mxu0 0
          %1458 = vmatpush1.bf16.msra.mxu0 0
          %1459 = vmatprep.subr.bf16.mxu0 0
          %1460 = vmatpush1.bf16.msra.mxu0 0
          %1461 = vmatprep.subr.bf16.mxu0 0
          %1462 = vmatpush1.bf16.msra.mxu0 %v1442
          %1463 = vmatprep.subr.bf16.mxu0 0
          %1464 = vmatpush2.bf16.msra.mxu0 0
          %1465 = vmatprep.subr.bf16.mxu0 0
          %1466 = vmatpush2.bf16.msra.mxu0 0
          %1467 = vmatprep.subr.bf16.mxu0 0
          %1468 = vmatpush2.bf16.msra.mxu0 0
          %1469 = vmatprep.subr.bf16.mxu0 0
          %1470 = vmatpush2.bf16.msra.mxu0 0
          %1471 = vmatprep.subr.bf16.mxu0 0
          %1472 = vmatpush2.bf16.msra.mxu0 0
          %1473 = vmatprep.subr.bf16.mxu0 0
          %1474 = vmatpush2.bf16.msra.mxu0 0
          %1475 = vmatprep.subr.bf16.mxu0 0
          %1476 = vmatpush2.bf16.msra.mxu0 0
          %1477 = vmatprep.subr.bf16.mxu0 0
          %1478 = vmatpush2.bf16.msra.mxu0 0
          %1479 = vmatprep.mubr.bf16.mxu0 0
          %1480 = vmatmul.mubr.bf16.gmra.mxu0 %v1445
          %v1481 = vpop.f32.mrf.mxu0
          %v1482 = vadd.f32 0.0, %v1481
          %v1483 = vpop.f32.mrf.mxu0
          %v1484 = vpop.f32.mrf.mxu0
          %v1485 = vadd.f32 0.0, %v1484
          %v1486 = vpop.f32.mrf.mxu0
          %1487 = vdwg.mxu0
          %v1488 = vadd.f32 %v1170, %v1232
          %v1489 = vadd.f32 %v1171, %v1235
          %v1490 = vadd.f32 %v1172, %v1282
          %v1491 = vadd.f32 %v1173, %v1285
          %v1492 = vadd.f32 %v1174, %v1332
          %v1493 = vadd.f32 %v1175, %v1335
          %v1494 = vadd.f32 %v1176, %v1382
          %v1495 = vadd.f32 %v1177, %v1385
          %v1496 = vadd.f32 %v1178, %v1432
          %v1497 = vadd.f32 %v1179, %v1435
          %v1498 = vadd.f32 %v1180, %v1482
          %v1499 = vadd.f32 %v1181, %v1485
          %1500 = vst.msk [vmem:[#allocation4] sm:$0xff] %vm440, %v1488
          %1501 = vst.msk [vmem:[#allocation4 + $0x8] sm:$0xff] %vm440, %v1489
          %1502 = vst.msk [vmem:[#allocation4 + $0x10] sm:$0xff] %vm440, %v1490
          %1503 = vst.msk [vmem:[#allocation4 + $0x18] sm:$0xff] %vm440, %v1491
          %1504 = vst.msk [vmem:[#allocation4 + $0x20] sm:$0xff] %vm440, %v1492
          %1505 = vst.msk [vmem:[#allocation4 + $0x28] sm:$0xff] %vm440, %v1493
          %1506 = vst.msk [vmem:[#allocation4 + $0x30] sm:$0xff] %vm440, %v1494
          %1507 = vst.msk [vmem:[#allocation4 + $0x38] sm:$0xff] %vm440, %v1495
          %1508 = vst.msk [vmem:[#allocation4 + $0x40] sm:$0xff] %vm440, %v1496
          %1509 = vst.msk [vmem:[#allocation4 + $0x48] sm:$0xff] %vm440, %v1497
          %1510 = vst.msk [vmem:[#allocation4 + $0x50] sm:$0xff] %vm440, %v1498
          %1511 = vst.msk [vmem:[#allocation4 + $0x58] sm:$0xff] %vm440, %v1499
          %1512 = vst.msk [vmem:[#allocation2] sm:$0xff] %vm1085, %v869
          %1513 = vst.msk [vmem:[#allocation2 + $0x8] sm:$0xff] %vm1085, %v870
          %1514 = vst.msk [vmem:[#allocation2 + $0x10] sm:$0xff] %vm1085, %v871
          %1515 = vst.msk [vmem:[#allocation2 + $0x18] sm:$0xff] %vm1085, %v872
          %1516 = vst.msk [vmem:[#allocation2 + $0x20] sm:$0xff] %vm1085, %v873
          %1517 = vst.msk [vmem:[#allocation2 + $0x28] sm:$0xff] %vm1085, %v874
          %1518 = vst.msk [vmem:[#allocation2 + $0x30] sm:$0xff] %vm1085, %v875
          %1519 = vst.msk [vmem:[#allocation2 + $0x38] sm:$0xff] %vm1085, %v876
          %1520 = vst.msk [vmem:[#allocation2 + $0x40] sm:$0xff] %vm1085, %v877
          %1521 = vst.msk [vmem:[#allocation2 + $0x48] sm:$0xff] %vm1085, %v878
          %1522 = vst.msk [vmem:[#allocation2 + $0x50] sm:$0xff] %vm1085, %v879
          %1523 = vst.msk [vmem:[#allocation2 + $0x58] sm:$0xff] %vm1085, %v880
        $region48: #{multi_head_attention.3} parent=39 // pred_fallthru
          _
        // Predicated region
        $region49: #{multi_head_attention.3} parent=39 // pred_check
          %p1524 = pneg %p329
        $region50: #{multi_head_attention.3} parent=39 // pred_check_branch
          %1526 = sbr.rel (%p1524) target = $region52
        $region51: #{multi_head_attention.3} parent=39 // pred_region
          %v1527 = vld [vmem:[#allocation3] sm:$0xff]
          %v1528 = vld [vmem:[#allocation3 + $0x8] sm:$0xff]
          %v1529 = vld [vmem:[#allocation3 + $0x10] sm:$0xff]
          %v1530 = vld [vmem:[#allocation3 + $0x18] sm:$0xff]
          %v1531 = vld [vmem:[#allocation3 + $0x20] sm:$0xff]
          %v1532 = vld [vmem:[#allocation3 + $0x28] sm:$0xff]
          %v1533 = vld [vmem:[#allocation3 + $0x30] sm:$0xff]
          %v1534 = vld [vmem:[#allocation3 + $0x38] sm:$0xff]
          %v1535 = vld [vmem:[#allocation3 + $0x40] sm:$0xff]
          %v1536 = vld [vmem:[#allocation3 + $0x48] sm:$0xff]
          %v1537 = vld [vmem:[#allocation3 + $0x50] sm:$0xff]
          %v1538 = vld [vmem:[#allocation3 + $0x58] sm:$0xff]
          %v1539 = vrcp.pop %v1527
          %v1540 = vrcp.pop %v1528
          %v1541 = vrcp.pop %v1529
          %v1542 = vrcp.pop %v1530
          %v1543 = vrcp.pop %v1531
          %v1544 = vrcp.pop %v1532
          %v1545 = vrcp.pop %v1533
          %v1546 = vrcp.pop %v1534
          %v1547 = vrcp.pop %v1535
          %v1548 = vrcp.pop %v1536
          %v1549 = vrcp.pop %v1537
          %v1550 = vrcp.pop %v1538
          %v1551 = vld [vmem:[#allocation4] sm:$0xff]
          %v1552 = vld [vmem:[#allocation4 + $0x8] sm:$0xff]
          %v1553 = vld [vmem:[#allocation4 + $0x10] sm:$0xff]
          %v1554 = vld [vmem:[#allocation4 + $0x18] sm:$0xff]
          %v1555 = vld [vmem:[#allocation4 + $0x20] sm:$0xff]
          %v1556 = vld [vmem:[#allocation4 + $0x28] sm:$0xff]
          %v1557 = vld [vmem:[#allocation4 + $0x30] sm:$0xff]
          %v1558 = vld [vmem:[#allocation4 + $0x38] sm:$0xff]
          %v1559 = vld [vmem:[#allocation4 + $0x40] sm:$0xff]
          %v1560 = vld [vmem:[#allocation4 + $0x48] sm:$0xff]
          %v1561 = vld [vmem:[#allocation4 + $0x50] sm:$0xff]
          %v1562 = vld [vmem:[#allocation4 + $0x58] sm:$0xff]
          %1564 = vset.pattern.permute.xlu0 0
          %1565 = vperm.xlu0 %1564, %v1539
          %v1566 = vpop.permute.xlu0 %1565
          %1569 = vset.pattern.permute.xlu0 0
          %1570 = vperm.xlu0 %1569, %v1540
          %v1571 = vpop.permute.xlu0 %1570
          %1574 = vset.pattern.permute.xlu0 0
          %1575 = vperm.xlu0 %1574, %v1541
          %v1576 = vpop.permute.xlu0 %1575
          %1579 = vset.pattern.permute.xlu0 0
          %1580 = vperm.xlu0 %1579, %v1542
          %v1581 = vpop.permute.xlu0 %1580
          %1584 = vset.pattern.permute.xlu0 0
          %1585 = vperm.xlu0 %1584, %v1543
          %v1586 = vpop.permute.xlu0 %1585
          %1589 = vset.pattern.permute.xlu0 0
          %1590 = vperm.xlu0 %1589, %v1544
          %v1591 = vpop.permute.xlu0 %1590
          %1594 = vset.pattern.permute.xlu0 0
          %1595 = vperm.xlu0 %1594, %v1545
          %v1596 = vpop.permute.xlu0 %1595
          %1599 = vset.pattern.permute.xlu0 0
          %1600 = vperm.xlu0 %1599, %v1546
          %v1601 = vpop.permute.xlu0 %1600
          %1604 = vset.pattern.permute.xlu0 0
          %1605 = vperm.xlu0 %1604, %v1547
          %v1606 = vpop.permute.xlu0 %1605
          %1609 = vset.pattern.permute.xlu0 0
          %1610 = vperm.xlu0 %1609, %v1548
          %v1611 = vpop.permute.xlu0 %1610
          %1614 = vset.pattern.permute.xlu0 0
          %1615 = vperm.xlu0 %1614, %v1549
          %v1616 = vpop.permute.xlu0 %1615
          %1619 = vset.pattern.permute.xlu0 0
          %1620 = vperm.xlu0 %1619, %v1550
          %v1621 = vpop.permute.xlu0 %1620
          %v1623 = vmul.f32 %v1551, %v1566
          %v1624 = vmul.f32 %v1552, %v1571
          %v1625 = vmul.f32 %v1553, %v1576
          %v1626 = vmul.f32 %v1554, %v1581
          %v1627 = vmul.f32 %v1555, %v1586
          %v1628 = vmul.f32 %v1556, %v1591
          %v1629 = vmul.f32 %v1557, %v1596
          %v1630 = vmul.f32 %v1558, %v1601
          %v1631 = vmul.f32 %v1559, %v1606
          %v1632 = vmul.f32 %v1560, %v1611
          %v1633 = vmul.f32 %v1561, %v1616
          %v1634 = vmul.f32 %v1562, %v1621
          %v1635 = vpack.c.bf16 %v1624, %v1623
          %v1636 = vpack.c.bf16 %v1626, %v1625
          %v1637 = vpack.c.bf16 %v1628, %v1627
          %v1638 = vpack.c.bf16 %v1630, %v1629
          %v1639 = vpack.c.bf16 %v1632, %v1631
          %v1640 = vpack.c.bf16 %v1634, %v1633
          %1642 = vrot.lane.b32.xlu0 %v1636, 32
          %v1643 = vpop.permute.xlu0 %1642
          %1645 = vrot.lane.b32.xlu0 %v1637, 64
          %v1646 = vpop.permute.xlu0 %1645
          %1648 = vrot.lane.b32.xlu0 %v1638, 96
          %v1649 = vpop.permute.xlu0 %1648
          %1651 = vrot.lane.b32.xlu0 %v1640, 32
          %v1652 = vpop.permute.xlu0 %1651
          %vm1653 = vcmask 261120
          %v1656 = vsel %vm1653, %v1635, %v1643
          %vm1657 = vcmask 523264
          %v1659 = vsel %vm1657, %v1656, %v1646
          %vm1660 = vcmask 785408
          %v1662 = vsel %vm1660, %v1659, %v1649
          %v1666 = vsel %vm1653, %v1639, %v1652
          %v1667 = vld [vmem:[%s3] sm:$0xff]
          %v1668 = vld [vmem:[%s3 + $0x8] sm:$0xff]
          %v1669 = vld [vmem:[%s3 + $0x10] sm:$0xff]
          %v1670 = vld [vmem:[%s3 + $0x18] sm:$0xff]
          %v1671 = vld [vmem:[%s3 + $0x20] sm:$0xff]
          %v1672 = vld [vmem:[%s3 + $0x28] sm:$0xff]
          %v1673 = vld [vmem:[%s3 + $0x30] sm:$0xff]
          %v1674 = vld [vmem:[%s3 + $0x38] sm:$0xff]
          %v1675 = vld [vmem:[%s3 + $0x40] sm:$0xff]
          %v1676 = vld [vmem:[%s3 + $0x48] sm:$0xff]
          %v1677 = vld [vmem:[%s3 + $0x50] sm:$0xff]
          %v1678 = vld [vmem:[%s3 + $0x58] sm:$0xff]
          %v1679 = vld [vmem:[%s3 + $0x60] sm:$0xff]
          %v1680 = vld [vmem:[%s3 + $0x68] sm:$0xff]
          %v1681 = vld [vmem:[%s3 + $0x70] sm:$0xff]
          %v1682 = vld [vmem:[%s3 + $0x78] sm:$0xff]
          %v1683 = vld [vmem:[%s3 + $0x80] sm:$0xff]
          %v1684 = vld [vmem:[%s3 + $0x88] sm:$0xff]
          %v1685 = vld [vmem:[%s3 + $0x90] sm:$0xff]
          %v1686 = vld [vmem:[%s3 + $0x98] sm:$0xff]
          %v1687 = vld [vmem:[%s3 + $0xa0] sm:$0xff]
          %v1688 = vld [vmem:[%s3 + $0xa8] sm:$0xff]
          %v1689 = vld [vmem:[%s3 + $0xb0] sm:$0xff]
          %v1690 = vld [vmem:[%s3 + $0xb8] sm:$0xff]
          %v1691 = vld [vmem:[%s4] sm:$0x3]
          %v1693 = vlaneseq
          %v1694 = vshrl.u32 %v1693, 7
          %v1695 = vsub.s32 0, %v1694
          %v1696 = vrot.slane %v1691, %v1695
          %v1697 = vlaneseq
          %v1698 = vshrl.u32 %v1697, 7
          %v1699 = vsub.s32 1, %v1698
          %v1700 = vrot.slane %v1691, %v1699
          %v1727 = vunpack.c.l.b16 %v1667
          %v1728 = vunpack.c.h.b16 %v1667
          %v1729 = vunpack.c.l.b16 %v1668
          %v1730 = vunpack.c.h.b16 %v1668
          %v1731 = vunpack.c.l.b16 %v1669
          %v1732 = vunpack.c.h.b16 %v1669
          %v1733 = vunpack.c.l.b16 %v1670
          %v1734 = vunpack.c.h.b16 %v1670
          %v1735 = vunpack.c.l.b16 %v1671
          %v1736 = vunpack.c.h.b16 %v1671
          %v1737 = vunpack.c.l.b16 %v1672
          %v1738 = vunpack.c.h.b16 %v1672
          %v1739 = vunpack.c.l.b16 %v1673
          %v1740 = vunpack.c.h.b16 %v1673
          %v1741 = vunpack.c.l.b16 %v1674
          %v1742 = vunpack.c.h.b16 %v1674
          %v1743 = vunpack.c.l.b16 %v1675
          %v1744 = vunpack.c.h.b16 %v1675
          %v1745 = vunpack.c.l.b16 %v1676
          %v1746 = vunpack.c.h.b16 %v1676
          %v1747 = vunpack.c.l.b16 %v1677
          %v1748 = vunpack.c.h.b16 %v1677
          %v1749 = vunpack.c.l.b16 %v1678
          %v1750 = vunpack.c.h.b16 %v1678
          %v1751 = vunpack.c.l.b16 %v1679
          %v1752 = vunpack.c.h.b16 %v1679
          %v1753 = vunpack.c.l.b16 %v1680
          %v1754 = vunpack.c.h.b16 %v1680
          %v1755 = vunpack.c.l.b16 %v1681
          %v1756 = vunpack.c.h.b16 %v1681
          %v1757 = vunpack.c.l.b16 %v1682
          %v1758 = vunpack.c.h.b16 %v1682
          %v1759 = vunpack.c.l.b16 %v1683
          %v1760 = vunpack.c.h.b16 %v1683
          %v1761 = vunpack.c.l.b16 %v1684
          %v1762 = vunpack.c.h.b16 %v1684
          %v1763 = vunpack.c.l.b16 %v1685
          %v1764 = vunpack.c.h.b16 %v1685
          %v1765 = vunpack.c.l.b16 %v1686
          %v1766 = vunpack.c.h.b16 %v1686
          %v1767 = vunpack.c.l.b16 %v1687
          %v1768 = vunpack.c.h.b16 %v1687
          %v1769 = vunpack.c.l.b16 %v1688
          %v1770 = vunpack.c.h.b16 %v1688
          %v1771 = vunpack.c.l.b16 %v1689
          %v1772 = vunpack.c.h.b16 %v1689
          %v1773 = vunpack.c.l.b16 %v1690
          %v1774 = vunpack.c.h.b16 %v1690
          %v1775 = vpack.c.b16 %v1729, %v1727
          %v1776 = vpack.c.b16 %v1730, %v1728
          %v1777 = vpack.c.b16 %v1733, %v1731
          %v1778 = vpack.c.b16 %v1734, %v1732
          %v1779 = vpack.c.b16 %v1737, %v1735
          %v1780 = vpack.c.b16 %v1738, %v1736
          %v1781 = vpack.c.b16 %v1741, %v1739
          %v1782 = vpack.c.b16 %v1742, %v1740
          %v1783 = vpack.c.b16 %v1745, %v1743
          %v1784 = vpack.c.b16 %v1746, %v1744
          %v1785 = vpack.c.b16 %v1749, %v1747
          %v1786 = vpack.c.b16 %v1750, %v1748
          %v1787 = vpack.c.b16 %v1753, %v1751
          %v1788 = vpack.c.b16 %v1754, %v1752
          %v1789 = vpack.c.b16 %v1757, %v1755
          %v1790 = vpack.c.b16 %v1758, %v1756
          %v1791 = vpack.c.b16 %v1761, %v1759
          %v1792 = vpack.c.b16 %v1762, %v1760
          %v1793 = vpack.c.b16 %v1765, %v1763
          %v1794 = vpack.c.b16 %v1766, %v1764
          %v1795 = vpack.c.b16 %v1769, %v1767
          %v1796 = vpack.c.b16 %v1770, %v1768
          %v1797 = vpack.c.b16 %v1773, %v1771
          %v1798 = vpack.c.b16 %v1774, %v1772
          %v1823 = vsel %vm1657, %v1666, 0
          %1825 = vmatprep.subr.bf16.mxu0 %v1790
          %1826 = vmatpush1.bf16.msra.mxu0 %v1789
          %1827 = vmatprep.subr.bf16.mxu0 %v1788
          %1828 = vmatpush1.bf16.msra.mxu0 %v1787
          %1829 = vmatprep.subr.bf16.mxu0 %v1786
          %1830 = vmatpush1.bf16.msra.mxu0 %v1785
          %1831 = vmatprep.subr.bf16.mxu0 %v1784
          %1832 = vmatpush1.bf16.msra.mxu0 %v1783
          %1833 = vmatprep.subr.bf16.mxu0 %v1782
          %1834 = vmatpush1.bf16.msra.mxu0 %v1781
          %1835 = vmatprep.subr.bf16.mxu0 %v1780
          %1836 = vmatpush1.bf16.msra.mxu0 %v1779
          %1837 = vmatprep.subr.bf16.mxu0 %v1778
          %1838 = vmatpush1.bf16.msra.mxu0 %v1777
          %1839 = vmatprep.subr.bf16.mxu0 %v1776
          %1840 = vmatpush1.bf16.msra.mxu0 %v1775
          %1841 = vmatprep.subr.bf16.mxu0 0
          %1842 = vmatpush2.bf16.msra.mxu0 0
          %1843 = vmatprep.subr.bf16.mxu0 0
          %1844 = vmatpush2.bf16.msra.mxu0 0
          %1845 = vmatprep.subr.bf16.mxu0 0
          %1846 = vmatpush2.bf16.msra.mxu0 0
          %1847 = vmatprep.subr.bf16.mxu0 0
          %1848 = vmatpush2.bf16.msra.mxu0 0
          %1849 = vmatprep.subr.bf16.mxu0 %v1798
          %1850 = vmatpush2.bf16.msra.mxu0 %v1797
          %1851 = vmatprep.subr.bf16.mxu0 %v1796
          %1852 = vmatpush2.bf16.msra.mxu0 %v1795
          %1853 = vmatprep.subr.bf16.mxu0 %v1794
          %1854 = vmatpush2.bf16.msra.mxu0 %v1793
          %1855 = vmatprep.subr.bf16.mxu0 %v1792
          %1856 = vmatpush2.bf16.msra.mxu0 %v1791
          %1857 = vmatprep.mubr.bf16.mxu0 %v1823
          %1858 = vmatmul.mubr.bf16.gmra.mxu0 %v1662
          %v1859 = vpop.f32.mrf.mxu0
          %v1860 = vadd.f32 %v1696, %v1859
          %v1861 = vpop.f32.mrf.mxu0
          %v1862 = vadd.f32 %v1700, %v1861
          %v1863 = vpop.f32.mrf.mxu0
          %v1864 = vadd.f32 %v1696, %v1863
          %v1865 = vpop.f32.mrf.mxu0
          %v1866 = vadd.f32 %v1700, %v1865
          %1867 = vdwg.mxu0
          %1868 = vst [vmem:[%s298] sm:$0xff] %v1860
          %1869 = vst.msk [vmem:[%s298 + $0x8] sm:$0xff] %vm1657, %v1862
          %1870 = vst [vmem:[%s298 + $0x10] sm:$0xff] %v1864
          %1871 = vst.msk [vmem:[%s298 + $0x18] sm:$0xff] %vm1657, %v1866
        $region52: #{multi_head_attention.3} parent=39 // pred_fallthru
          _
        %s1872 = sand.u32 %s174, 1
        %s1873 = scalar_lea.sflag [#allocation6], %s1872
        %s1874 = sand.u32 %s174, 1
        %s1875 = smul.addr %s1874, 32
        %s1876 = scalar_lea.vmem [#allocation5], %s1875
        // Predicated region
        $region53: #{multi_head_attention.3} parent=39 // pred_check
          %p1877 = pneg %p184
        $region54: #{multi_head_attention.3} parent=39 // pred_check_branch
          %1879 = sbr.rel (%p1877) target = $region56
        $region55: #{multi_head_attention.3} parent=39 // pred_region
          %s1880 = smul.u32 2, %s25
          %s1882 = ssub.s32 512, 512
          %1883 = vsyncadd %s1873, %s1882
          %s1884 = smul.addr %s1880, 2
          %s1885 = smul.addr %s24, 4
          %s1886 = sadd.s32 %s1884, %s1885
          %s1887 = smul.addr %s1886, 128
          %s1888 = scalar_lea.hbm %s5, %s1887
          %s1889 = sshll.u32 %s1876, 4
          %s1890 = int_to_ptr.vmem [resolvable:$true] %s1889
          %1895 = dma.vmem_to_hbm [thread:$0]  %s1890, 512, %s1888, %s1873, 256, 256, 16
        $region56: #{multi_head_attention.3} parent=39 // pred_fallthru
          _
      $region40: #{multi_head_attention.3} parent=5 // pred_fallthru
        _
      %p1896 = scmp.le.s32.totalorder 2, %s14
      // Predicated region
      $region57: #{multi_head_attention.3} parent=5 // pred_check
        %p1897 = pneg %p1896
      $region58: #{multi_head_attention.3} parent=5 // pred_check_branch
        %1899 = sbr.rel (%p1897) target = $region60
      $region59: #{multi_head_attention.3} parent=5 // pred_region
        %s1900 = ssub.s32 %s14, 2
        // Predicated region
        $region61: #{multi_head_attention.3} parent=59 // pred_check
          %p1901 = pneg %p190
        $region62: #{multi_head_attention.3} parent=59 // pred_check_branch
          %1903 = sbr.rel (%p1901) target = $region64
        $region63: #{multi_head_attention.3} parent=59 // pred_region
          %s1904 = sand.u32 %s175, 1
          %s1905 = scalar_lea.sflag [#allocation6], %s1904
          %s1906 = sand.u32 %s175, 1
          %s1907 = smul.addr %s1906, 32
          %s1908 = scalar_lea.vmem [#allocation5], %s1907
          %1909 = dma.done %s1905, 512
        $region64: #{multi_head_attention.3} parent=59 // pred_fallthru
          _
      $region60: #{multi_head_attention.3} parent=5 // pred_fallthru
        _
    $region6: #{multi_head_attention.3} parent=1 // loop_footer
      %s18 = sadd.s32 1, %s14
    $region7: #{multi_head_attention.3} parent=1 // loop_footer_branch
      %13 = sbr.rel target = $region3
    $region8: #{multi_head_attention.3} parent=1 // loop_exit
      _
    %1910 = vsyncpa [#allocation6], 1
    %s1911 = scalar_lea.sflag [#allocation6], 1
    %1912 = vsyncpa %s1911, 1

</llo_original>
